<compile_context>
chip_gen: v7x
topology: tpu7x:2x2x1
jax: 0.10.0
libtpu: 0.0.40
codegen_flags: <defaults>
</compile_context>

<pallas_src>
import functools

import jax
import jax.numpy as jnp
from jax.experimental import pallas as pl
from jax.experimental.pallas import tpu as pltpu


def _vae_kernel(x_ref, eps_ref,
                wenc_ref, benc_ref,
                wmulv_ref, bmulv_ref,
                wd1_ref, bd1_ref,
                wd2_ref, bd2_ref,
                out_ref, mulv_ref,
                *, znum):
    f32 = jnp.float32
    bf16 = jnp.bfloat16

    # encoder(x) -> relu -> h1   (Linear 1024 -> 1024), bf16 MXU, f32 acc.
    x_bf = x_ref[...].astype(bf16)                              # [Bp, 1024]
    h1 = jnp.dot(x_bf, wenc_ref[...], preferred_element_type=f32)
    h1 = jnp.maximum(h1 + benc_ref[...], 0.0)                   # F.relu, f32

    # Fused mu_fc | logv_fc: one 256-wide matmul instead of two 128-wide ones.
    mulv = jnp.dot(h1.astype(bf16), wmulv_ref[...], preferred_element_type=f32)
    mulv = mulv + bmulv_ref[...]                                # [Bp, 2*znum] f32
    mu = mulv[:, :znum]                                         # lane-aligned slices
    logvar = mulv[:, znum:]

    # reparameterize (training branch): z = eps * exp(0.5*logvar) + mu  (f32).
    z = eps_ref[...] * jnp.exp(0.5 * logvar) + mu

    # decode: relu(de1(z)) -> de2 (de2 lane-padded to 128 outputs).
    h3 = jnp.dot(z.astype(bf16), wd1_ref[...], preferred_element_type=f32)
    h3 = jnp.maximum(h3 + bd1_ref[...], 0.0)
    out = jnp.dot(h3.astype(bf16), wd2_ref[...], preferred_element_type=f32)

    out_ref[...] = out + bd2_ref[...]                           # [Bp, 128] lane-dense
    mulv_ref[...] = mulv                                        # [Bp, 2*znum] lane-dense


def prepare_params(params, out_pad=128):
    """One-time weight packing: bf16 weights, fused mu|logvar, lane-padded de2.

    Call once; pass the result to vae_forward.  Keeps per-forward HBM traffic
    down to the packed bf16 weight read (~2.7 MiB).
    """
    f32 = jnp.float32
    bf16 = jnp.bfloat16

    znum = params["w_mu"].shape[1]
    hnum = params["w_de1"].shape[1]
    outnum = params["w_de2"].shape[1]

    w_mulv = jnp.concatenate([params["w_mu"], params["w_lv"]], axis=1).astype(bf16)
    b_mulv = jnp.concatenate([params["b_mu"], params["b_lv"]], axis=1).astype(f32)

    w_de2p = jnp.zeros((hnum, out_pad), bf16).at[:, :outnum].set(
        params["w_de2"].astype(bf16))
    b_de2p = jnp.zeros((1, out_pad), f32).at[:, :outnum].set(
        params["b_de2"].astype(f32))

    packed = dict(
        w_enc=params["w_enc"].astype(bf16), b_enc=params["b_enc"].astype(f32),
        w_mulv=w_mulv, b_mulv=b_mulv,
        w_de1=params["w_de1"].astype(bf16), b_de1=params["b_de1"].astype(f32),
        w_de2=w_de2p, b_de2=b_de2p,
    )
    packed = jax.device_put(packed)
    meta = dict(znum=znum, hnum=hnum, outnum=outnum, out_pad=out_pad)
    return packed, meta


def vae_forward(x_nchw, eps, packed, meta):
    """Fused VAE forward. x_nchw: [B, C, H, W] with C*H*W == 1024.

    Returns (decode(z), mu, logvar) with original (unpadded) shapes.
    """
    f32 = jnp.float32
    znum, hnum = meta["znum"], meta["hnum"]
    outnum, out_pad = meta["outnum"], meta["out_pad"]

    B = x_nchw.shape[0]
    x_flat = x_nchw.reshape(B, -1).astype(f32)                  # .view(-1, 1024)
    assert x_flat.shape[1] == 1024, "encoder output must flatten to 1024"

    # Pad batch to a multiple of 16 (bf16 sublane packing) so every bf16 LHS
    # tile is (16,128)-aligned.  Padded rows are sliced off below.
    Bp = max(16, ((B + 15) // 16) * 16)
    x_p = jnp.zeros((Bp, 1024), f32).at[:B].set(x_flat)
    eps_p = jnp.zeros((Bp, znum), f32).at[:B].set(eps.astype(f32))

    args = (
        x_p, eps_p,
        packed["w_enc"], packed["b_enc"],
        packed["w_mulv"], packed["b_mulv"],
        packed["w_de1"], packed["b_de1"],
        packed["w_de2"], packed["b_de2"],
    )

    out_shapes = (
        jax.ShapeDtypeStruct((Bp, out_pad), f32),               # decode(z), lane-padded
        jax.ShapeDtypeStruct((Bp, 2 * znum), f32),              # [mu | logvar]
    )

    # Advisory cost estimate so XLA schedules the surrounding pad/slice ops.
    flops = 2 * Bp * (1024 * 1024 + 1024 * 2 * znum + znum * hnum + hnum * out_pad)
    bytes_in = sum(int(a.size) * a.dtype.itemsize for a in args)
    bytes_out = Bp * out_pad * 4 + Bp * 2 * znum * 4
    cost = pl.CostEstimate(flops=flops,
                           transcendentals=Bp * znum,
                           bytes_accessed=bytes_in + bytes_out)

    vmem = pl.BlockSpec(memory_space=pltpu.MemorySpace.VMEM)

    out_padded, mulv = pl.pallas_call(
        functools.partial(_vae_kernel, znum=znum),
        out_shape=out_shapes,
        in_specs=[vmem] * len(args),
        out_specs=(vmem, vmem),
        compiler_params=pltpu.CompilerParams(vmem_limit_bytes=16 << 20),
        cost_estimate=cost,
    )(*args)

    out = out_padded[:B, :outnum]
    mu = mulv[:B, :znum]
    logvar = mulv[:B, znum:]
    return out, mu, logvar


def init_params(key, znum=128, hnum=256, outnum=14):
    """Deterministic synthetic weights. All Linear weights stored as [in, out], f32."""
    ks = jax.random.split(key, 10)
    scale = 0.02

    def lin(kw, kb, fan_in, fan_out):
        w = scale * jax.random.normal(kw, (fan_in, fan_out), dtype=jnp.float32)
        b = scale * jax.random.normal(kb, (1, fan_out), dtype=jnp.float32)
        return w, b

    w_enc, b_enc = lin(ks[0], ks[1], 1024, 1024)    # synthetic encoder Linear
    w_mu, b_mu = lin(ks[2], ks[3], 1024, znum)      # mu_fc
    w_lv, b_lv = lin(ks[4], ks[5], 1024, znum)      # logv_fc
    w_de1, b_de1 = lin(ks[6], ks[7], znum, hnum)    # de1
    w_de2, b_de2 = lin(ks[8], ks[9], hnum, outnum)  # de2
    return dict(w_enc=w_enc, b_enc=b_enc, w_mu=w_mu, b_mu=b_mu,
                w_lv=w_lv, b_lv=b_lv, w_de1=w_de1, b_de1=b_de1,
                w_de2=w_de2, b_de2=b_de2)


def _reference_forward(x_nchw, eps, p):
    """Pure-JAX reference matching the PyTorch semantics (training branch).

    Uses the same bf16-quantized weight values the kernel sees so the
    comparison tolerance stays tight (the kernel additionally feeds bf16
    activations to the MXU; that residual error is well inside 1e-2).
    """
    def bf(w):
        return w.astype(jnp.bfloat16).astype(jnp.float32)

    x = x_nchw.reshape(x_nchw.shape[0], -1).astype(jnp.float32)
    h1 = jnp.maximum(x @ bf(p["w_enc"]) + p["b_enc"], 0.0)
    mu = h1 @ bf(p["w_mu"]) + p["b_mu"]
    logvar = h1 @ bf(p["w_lv"]) + p["b_lv"]
    z = eps * jnp.exp(0.5 * logvar) + mu
    h3 = jnp.maximum(z @ bf(p["w_de1"]) + p["b_de1"], 0.0)
    out = h3 @ bf(p["w_de2"]) + p["b_de2"]
    return out, mu, logvar


if __name__ == "__main__":
    key = jax.random.PRNGKey(0)
    k_x, k_eps, k_w = jax.random.split(key, 3)

    B, C, H, W = 2, 4, 16, 16          # C*H*W = 1024, matches .view(-1, 1024)
    znum, hnum, outnum = 128, 256, 14

    x = jax.random.normal(k_x, (B, C, H, W), dtype=jnp.float32)
    eps = jax.random.normal(k_eps, (B, znum), dtype=jnp.float32)
    params = init_params(k_w, znum=znum, hnum=hnum, outnum=outnum)

    # One-time weight packing (bf16 cast, mu|logvar fuse, de2 lane-pad).
    packed, meta = prepare_params(params)
    jax.block_until_ready(packed)

    out, mu, logvar = vae_forward(x, eps, packed, meta)
    jax.block_until_ready((out, mu, logvar))

    ref_out, ref_mu, ref_lv = _reference_forward(x, eps, params)
    assert out.shape == (B, outnum) and mu.shape == (B, znum) and logvar.shape == (B, znum)
    assert jnp.allclose(out, ref_out, atol=1e-2, rtol=1e-2)
    assert jnp.allclose(mu, ref_mu, atol=1e-2, rtol=1e-2)
    assert jnp.allclose(logvar, ref_lv, atol=1e-2, rtol=1e-2)

    print("KERNEL_OK")
</pallas_src>

<mosaic_0001>
module attributes {stable_mosaic.version = 11 : i64} {
  func.func @_vae_kernel(%arg0: memref<16x1024xf32, #tpu.memory_space<vmem>>, %arg1: memref<16x128xf32, #tpu.memory_space<vmem>>, %arg2: memref<1024x1024xbf16, #tpu.memory_space<vmem>>, %arg3: memref<1x1024xf32, #tpu.memory_space<vmem>>, %arg4: memref<1024x256xbf16, #tpu.memory_space<vmem>>, %arg5: memref<1x256xf32, #tpu.memory_space<vmem>>, %arg6: memref<128x256xbf16, #tpu.memory_space<vmem>>, %arg7: memref<1x256xf32, #tpu.memory_space<vmem>>, %arg8: memref<256x128xbf16, #tpu.memory_space<vmem>>, %arg9: memref<1x128xf32, #tpu.memory_space<vmem>>, %arg10: memref<16x128xf32, #tpu.memory_space<vmem>>, %arg11: memref<16x256xf32, #tpu.memory_space<vmem>>) attributes {dimension_semantics = [], scalar_prefetch = 0 : i64, scratch_operands = 0 : i64, tpu.core_type = #tpu.core_type<tc>} {
    %c0 = arith.constant 0 : index
    %c0_0 = arith.constant 0 : index
    %0 = vector.load %arg0[%c0, %c0_0] : memref<16x1024xf32, #tpu.memory_space<vmem>>, vector<16x1024xf32>
    %1 = arith.truncf %0 : vector<16x1024xf32> to vector<16x1024xbf16>
    %c0_1 = arith.constant 0 : index
    %c0_2 = arith.constant 0 : index
    %2 = vector.load %arg2[%c0_1, %c0_2] : memref<1024x1024xbf16, #tpu.memory_space<vmem>>, vector<1024x1024xbf16>
    %cst = arith.constant dense<0.000000e+00> : vector<16x1024xf32>
    %3 = tpu.matmul %1, %2, %cst {dimension_numbers = #tpu.dot_dimension_numbers<[1], [0], [0], [1], [0, 0, 1, 1], [], []>} : vector<16x1024xbf16>, vector<1024x1024xbf16>, vector<16x1024xf32> -> vector<16x1024xf32>
    %c0_3 = arith.constant 0 : index
    %c0_4 = arith.constant 0 : index
    %4 = vector.load %arg3[%c0_3, %c0_4] : memref<1x1024xf32, #tpu.memory_space<vmem>>, vector<1x1024xf32>
    %5 = vector.broadcast %4 : vector<1x1024xf32> to vector<16x1024xf32>
    %6 = arith.addf %3, %5 : vector<16x1024xf32>
    %cst_5 = arith.constant 0.000000e+00 : f32
    %7 = vector.broadcast %cst_5 : f32 to vector<16x1024xf32>
    %8 = arith.maximumf %6, %7 : vector<16x1024xf32>
    %9 = arith.truncf %8 : vector<16x1024xf32> to vector<16x1024xbf16>
    %c0_6 = arith.constant 0 : index
    %c0_7 = arith.constant 0 : index
    %10 = vector.load %arg4[%c0_6, %c0_7] : memref<1024x256xbf16, #tpu.memory_space<vmem>>, vector<1024x256xbf16>
    %cst_8 = arith.constant dense<0.000000e+00> : vector<16x256xf32>
    %11 = tpu.matmul %9, %10, %cst_8 {dimension_numbers = #tpu.dot_dimension_numbers<[1], [0], [0], [1], [0, 0, 1, 1], [], []>} : vector<16x1024xbf16>, vector<1024x256xbf16>, vector<16x256xf32> -> vector<16x256xf32>
    %c0_9 = arith.constant 0 : index
    %c0_10 = arith.constant 0 : index
    %12 = vector.load %arg5[%c0_9, %c0_10] : memref<1x256xf32, #tpu.memory_space<vmem>>, vector<1x256xf32>
    %13 = vector.broadcast %12 : vector<1x256xf32> to vector<16x256xf32>
    %14 = arith.addf %11, %13 : vector<16x256xf32>
    %15 = vector.extract_strided_slice %14 {offsets = [0, 0], sizes = [16, 128], strides = [1, 1]} : vector<16x256xf32> to vector<16x128xf32>
    %16 = vector.extract_strided_slice %14 {offsets = [0, 128], sizes = [16, 128], strides = [1, 1]} : vector<16x256xf32> to vector<16x128xf32>
    %c0_11 = arith.constant 0 : index
    %c0_12 = arith.constant 0 : index
    %17 = vector.load %arg1[%c0_11, %c0_12] : memref<16x128xf32, #tpu.memory_space<vmem>>, vector<16x128xf32>
    %cst_13 = arith.constant 5.000000e-01 : f32
    %18 = vector.broadcast %cst_13 : f32 to vector<16x128xf32>
    %19 = arith.mulf %18, %16 : vector<16x128xf32>
    %20 = math.exp %19 : vector<16x128xf32>
    %21 = arith.mulf %17, %20 : vector<16x128xf32>
    %22 = arith.addf %21, %15 : vector<16x128xf32>
    %23 = arith.truncf %22 : vector<16x128xf32> to vector<16x128xbf16>
    %c0_14 = arith.constant 0 : index
    %c0_15 = arith.constant 0 : index
    %24 = vector.load %arg6[%c0_14, %c0_15] : memref<128x256xbf16, #tpu.memory_space<vmem>>, vector<128x256xbf16>
    %cst_16 = arith.constant dense<0.000000e+00> : vector<16x256xf32>
    %25 = tpu.matmul %23, %24, %cst_16 {dimension_numbers = #tpu.dot_dimension_numbers<[1], [0], [0], [1], [0, 0, 1, 1], [], []>} : vector<16x128xbf16>, vector<128x256xbf16>, vector<16x256xf32> -> vector<16x256xf32>
    %c0_17 = arith.constant 0 : index
    %c0_18 = arith.constant 0 : index
    %26 = vector.load %arg7[%c0_17, %c0_18] : memref<1x256xf32, #tpu.memory_space<vmem>>, vector<1x256xf32>
    %27 = vector.broadcast %26 : vector<1x256xf32> to vector<16x256xf32>
    %28 = arith.addf %25, %27 : vector<16x256xf32>
    %cst_19 = arith.constant 0.000000e+00 : f32
    %29 = vector.broadcast %cst_19 : f32 to vector<16x256xf32>
    %30 = arith.maximumf %28, %29 : vector<16x256xf32>
    %31 = arith.truncf %30 : vector<16x256xf32> to vector<16x256xbf16>
    %c0_20 = arith.constant 0 : index
    %c0_21 = arith.constant 0 : index
    %32 = vector.load %arg8[%c0_20, %c0_21] : memref<256x128xbf16, #tpu.memory_space<vmem>>, vector<256x128xbf16>
    %cst_22 = arith.constant dense<0.000000e+00> : vector<16x128xf32>
    %33 = tpu.matmul %31, %32, %cst_22 {dimension_numbers = #tpu.dot_dimension_numbers<[1], [0], [0], [1], [0, 0, 1, 1], [], []>} : vector<16x256xbf16>, vector<256x128xbf16>, vector<16x128xf32> -> vector<16x128xf32>
    %c0_23 = arith.constant 0 : index
    %c0_24 = arith.constant 0 : index
    %34 = vector.load %arg9[%c0_23, %c0_24] : memref<1x128xf32, #tpu.memory_space<vmem>>, vector<1x128xf32>
    %35 = vector.broadcast %34 : vector<1x128xf32> to vector<16x128xf32>
    %36 = arith.addf %33, %35 : vector<16x128xf32>
    %c0_25 = arith.constant 0 : index
    %c0_26 = arith.constant 0 : index
    %37 = vector.load %arg10[%c0_25, %c0_26] : memref<16x128xf32, #tpu.memory_space<vmem>>, vector<16x128xf32>
    tpu.vector_store %arg10[%c0_25, %c0_26], %36 {strides = array<i32>} : memref<16x128xf32, #tpu.memory_space<vmem>>, vector<16x128xf32>,
    %c0_27 = arith.constant 0 : index
    %c0_28 = arith.constant 0 : index
    %38 = vector.load %arg11[%c0_27, %c0_28] : memref<16x256xf32, #tpu.memory_space<vmem>>, vector<16x256xf32>
    tpu.vector_store %arg11[%c0_27, %c0_28], %14 {strides = array<i32>} : memref<16x256xf32, #tpu.memory_space<vmem>>, vector<16x256xf32>,
    return
  }
}

</mosaic_0001>

<llo_original>
// kernel: tpu_custom_call.1
$region0: #{tpu_custom_call.1}
  #allocation0 [shape = 'u32[]', space=smem, size = 0x4, offset = 0x4, fixed_abs, tag = 'smem constant byte address 0x4 - core index']
  #allocation1 [shape = 'u32[144,128]{1,0:T(1,128)}', space=vmem, size = 0x12000, scoped, tag = 'internal scratch']
  %s0 = inlined_call_operand.hbm [shape: f32[16,1024], index: 0, kind: input, shape index: {}]
  %s1 = inlined_call_operand.hbm [shape: f32[16,128], index: 1, kind: input, shape index: {}]
  %s2 = inlined_call_operand.hbm [shape: bf16[1024,1024], index: 2, kind: input, shape index: {}]
  %s3 = inlined_call_operand.hbm [shape: f32[1,1024], index: 3, kind: input, shape index: {}]
  %s4 = inlined_call_operand.hbm [shape: bf16[1024,256], index: 4, kind: input, shape index: {}]
  %s5 = inlined_call_operand.hbm [shape: f32[1,256], index: 5, kind: input, shape index: {}]
  %s6 = inlined_call_operand.hbm [shape: bf16[128,256], index: 6, kind: input, shape index: {}]
  %s7 = inlined_call_operand.hbm [shape: f32[1,256], index: 7, kind: input, shape index: {}]
  %s8 = inlined_call_operand.hbm [shape: bf16[256,128], index: 8, kind: input, shape index: {}]
  %s9 = inlined_call_operand.hbm [shape: f32[1,128], index: 9, kind: input, shape index: {}]
  %s10 = inlined_call_operand.hbm [shape: f32[16,128], index: 10, kind: output, shape index: {0}]
  %s11 = inlined_call_operand.hbm [shape: f32[16,256], index: 11, kind: output, shape index: {1}]
  %12 = xla_tuple %s10, %s11
  %s13 = sld [smem:[#allocation0]]
  $region98: #{tpu_custom_call.1} parent=0
    _
  %s15 = ssub.s32 1, %s13
  %s16 = scalar_select 0, %s15, %s13
  $region1: #{tpu_custom_call.1} parent=0
    #allocation2 [shape = 'u8[65536]{0}', space=vmem, size = 0x10000, scoped, tag = 'input window, operand 0, single buffered']
    #allocation3 [shape = 's32[1]{0}', space=sflag, size = 0x4, scoped, tag = 'scoped memory for tpu_custom_call.1']
    #allocation4 [shape = 's32[1]{0}', space=sflag, size = 0x4, scoped, tag = 'scoped memory for tpu_custom_call.1']
    #allocation5 [shape = 'u8[8192]{0}', space=vmem, size = 0x2000, scoped, tag = 'input window, operand 1, single buffered']
    #allocation6 [shape = 's32[1]{0}', space=sflag, size = 0x4, scoped, tag = 'scoped memory for tpu_custom_call.1']
    #allocation7 [shape = 'u8[2097152]{0}', space=vmem, size = 0x200000, scoped, tag = 'input window, operand 2, single buffered']
    #allocation8 [shape = 'u8[4096]{0}', space=vmem, size = 0x1000, scoped, tag = 'input window, operand 3, single buffered']
    #allocation9 [shape = 's32[1]{0}', space=sflag, size = 0x4, scoped, tag = 'scoped memory for tpu_custom_call.1']
    #allocation10 [shape = 'u8[524288]{0}', space=vmem, size = 0x80000, scoped, tag = 'input window, operand 4, single buffered']
    #allocation11 [shape = 'u8[1024]{0}', space=vmem, size = 0x400, scoped, tag = 'input window, operand 5, single buffered']
    #allocation12 [shape = 's32[1]{0}', space=sflag, size = 0x4, scoped, tag = 'scoped memory for tpu_custom_call.1']
    #allocation13 [shape = 'u8[65536]{0}', space=vmem, size = 0x10000, scoped, tag = 'input window, operand 6, single buffered']
    #allocation14 [shape = 'u8[1024]{0}', space=vmem, size = 0x400, scoped, tag = 'input window, operand 7, single buffered']
    #allocation15 [shape = 's32[1]{0}', space=sflag, size = 0x4, scoped, tag = 'scoped memory for tpu_custom_call.1']
    #allocation16 [shape = 'u8[65536]{0}', space=vmem, size = 0x10000, scoped, tag = 'input window, operand 8, single buffered']
    #allocation17 [shape = 'u8[512]{0}', space=vmem, size = 0x400, scoped, tag = 'input window, operand 9, single buffered']
    #allocation18 [shape = 's32[1]{0}', space=sflag, size = 0x4, scoped, tag = 'scoped memory for tpu_custom_call.1']
    #allocation19 [shape = 'u8[8192]{0}', space=vmem, size = 0x2000, scoped, tag = 'output window, operand 0, single buffered']
    #allocation20 [shape = 'u8[16384]{0}', space=vmem, size = 0x4000, scoped, tag = 'output window, operand 1, single buffered']
    #allocation21 [shape = 's32[1]{0}', space=sflag, size = 0x4, scoped, tag = 'scoped memory for tpu_custom_call.1']
    %17 = vsyncpa [#allocation3], 0
    %18 = vsyncpa [#allocation6], 0
    %19 = vsyncpa [#allocation9], 0
    %20 = vsyncpa [#allocation12], 0
    %21 = vsyncpa [#allocation15], 0
    %22 = vsyncpa [#allocation18], 0
    %23 = vsyncpa [#allocation4], 0
    %24 = vsyncpa [#allocation21], 0
    // Predicated region
    $region2: #{tpu_custom_call.1} parent=1 // pred_check
      _
    $region3: #{tpu_custom_call.1} parent=1 // pred_check_branch
      %26 = sbr.rel (0) target = $region5
    $region4: #{tpu_custom_call.1} parent=1 // pred_region
      %s28 = ssub.s32 2048, 2048
      %29 = vsyncadd [#allocation3], %s28
      %s30 = sshll.u32 [#allocation2], 4
      %s31 = int_to_ptr.vmem [resolvable:$true] %s30
      %36 = dma.hbm_to_vmem [thread:$0]  %s0, 2048, %s31, [#allocation3], 1024, 1024, 64
    $region5: #{tpu_custom_call.1} parent=1 // pred_fallthru
      _
    // Predicated region
    $region6: #{tpu_custom_call.1} parent=1 // pred_check
      _
    $region7: #{tpu_custom_call.1} parent=1 // pred_check_branch
      %38 = sbr.rel (0) target = $region9
    $region8: #{tpu_custom_call.1} parent=1 // pred_region
      %s40 = ssub.s32 256, 256
      %41 = vsyncadd [#allocation6], %s40
      %s42 = sshll.u32 [#allocation5], 4
      %s43 = int_to_ptr.vmem [resolvable:$true] %s42
      %48 = dma.hbm_to_vmem [thread:$0]  %s1, 256, %s43, [#allocation6], 128, 128, 8
    $region9: #{tpu_custom_call.1} parent=1 // pred_fallthru
      _
    // Predicated region
    $region10: #{tpu_custom_call.1} parent=1 // pred_check
      _
    $region11: #{tpu_custom_call.1} parent=1 // pred_check_branch
      %50 = sbr.rel (0) target = $region13
    $region12: #{tpu_custom_call.1} parent=1 // pred_region
      %s52 = ssub.s32 65536, 65536
      %53 = vsyncadd [#allocation6], %s52
      %s54 = sshll.u32 [#allocation7], 4
      %s55 = int_to_ptr.vmem [resolvable:$true] %s54
      %60 = dma.hbm_to_vmem [thread:$0]  %s2, 65536, %s55, [#allocation6], 512, 512, 32
    $region13: #{tpu_custom_call.1} parent=1 // pred_fallthru
      _
    // Predicated region
    $region14: #{tpu_custom_call.1} parent=1 // pred_check
      _
    $region15: #{tpu_custom_call.1} parent=1 // pred_check_branch
      %62 = sbr.rel (0) target = $region17
    $region16: #{tpu_custom_call.1} parent=1 // pred_region
      %s64 = ssub.s32 128, 128
      %65 = vsyncadd [#allocation9], %s64
      %s67 = sshll.u32 [#allocation8], 4
      %s68 = int_to_ptr.vmem [resolvable:$true] %s67
      %70 = dma.hbm_to_vmem [thread:$0]  %s3, 128, %s68, [#allocation9]
    $region17: #{tpu_custom_call.1} parent=1 // pred_fallthru
      _
    // Predicated region
    $region18: #{tpu_custom_call.1} parent=1 // pred_check
      _
    $region19: #{tpu_custom_call.1} parent=1 // pred_check_branch
      %72 = sbr.rel (0) target = $region21
    $region20: #{tpu_custom_call.1} parent=1 // pred_region
      %s74 = ssub.s32 16384, 16384
      %75 = vsyncadd [#allocation9], %s74
      %s76 = sshll.u32 [#allocation10], 4
      %s77 = int_to_ptr.vmem [resolvable:$true] %s76
      %82 = dma.hbm_to_vmem [thread:$0]  %s4, 16384, %s77, [#allocation9], 128, 128, 8
    $region21: #{tpu_custom_call.1} parent=1 // pred_fallthru
      _
    // Predicated region
    $region22: #{tpu_custom_call.1} parent=1 // pred_check
      _
    $region23: #{tpu_custom_call.1} parent=1 // pred_check_branch
      %84 = sbr.rel (0) target = $region25
    $region24: #{tpu_custom_call.1} parent=1 // pred_region
      %s86 = ssub.s32 32, 32
      %87 = vsyncadd [#allocation12], %s86
      %s89 = sshll.u32 [#allocation11], 4
      %s90 = int_to_ptr.vmem [resolvable:$true] %s89
      %92 = dma.hbm_to_vmem [thread:$0]  %s5, 32, %s90, [#allocation12]
    $region25: #{tpu_custom_call.1} parent=1 // pred_fallthru
      _
    // Predicated region
    $region26: #{tpu_custom_call.1} parent=1 // pred_check
      _
    $region27: #{tpu_custom_call.1} parent=1 // pred_check_branch
      %94 = sbr.rel (0) target = $region29
    $region28: #{tpu_custom_call.1} parent=1 // pred_region
      %s96 = ssub.s32 2048, 2048
      %97 = vsyncadd [#allocation12], %s96
      %s98 = sshll.u32 [#allocation13], 4
      %s99 = int_to_ptr.vmem [resolvable:$true] %s98
      %104 = dma.hbm_to_vmem [thread:$0]  %s6, 2048, %s99, [#allocation12], 128, 128, 8
    $region29: #{tpu_custom_call.1} parent=1 // pred_fallthru
      _
    // Predicated region
    $region30: #{tpu_custom_call.1} parent=1 // pred_check
      _
    $region31: #{tpu_custom_call.1} parent=1 // pred_check_branch
      %106 = sbr.rel (0) target = $region33
    $region32: #{tpu_custom_call.1} parent=1 // pred_region
      %s108 = ssub.s32 32, 32
      %109 = vsyncadd [#allocation15], %s108
      %s111 = sshll.u32 [#allocation14], 4
      %s112 = int_to_ptr.vmem [resolvable:$true] %s111
      %114 = dma.hbm_to_vmem [thread:$0]  %s7, 32, %s112, [#allocation15]
    $region33: #{tpu_custom_call.1} parent=1 // pred_fallthru
      _
    // Predicated region
    $region34: #{tpu_custom_call.1} parent=1 // pred_check
      _
    $region35: #{tpu_custom_call.1} parent=1 // pred_check_branch
      %116 = sbr.rel (0) target = $region37
    $region36: #{tpu_custom_call.1} parent=1 // pred_region
      %s118 = ssub.s32 2048, 2048
      %119 = vsyncadd [#allocation15], %s118
      %s120 = sshll.u32 [#allocation16], 4
      %s121 = int_to_ptr.vmem [resolvable:$true] %s120
      %126 = dma.hbm_to_vmem [thread:$0]  %s8, 2048, %s121, [#allocation15], 64, 64, 4
    $region37: #{tpu_custom_call.1} parent=1 // pred_fallthru
      _
    // Predicated region
    $region38: #{tpu_custom_call.1} parent=1 // pred_check
      _
    $region39: #{tpu_custom_call.1} parent=1 // pred_check_branch
      %128 = sbr.rel (0) target = $region41
    $region40: #{tpu_custom_call.1} parent=1 // pred_region
      %s130 = ssub.s32 16, 16
      %131 = vsyncadd [#allocation18], %s130
      %s133 = sshll.u32 [#allocation17], 4
      %s134 = int_to_ptr.vmem [resolvable:$true] %s133
      %136 = dma.hbm_to_vmem [thread:$0]  %s9, 16, %s134, [#allocation18]
    $region41: #{tpu_custom_call.1} parent=1 // pred_fallthru
      _
    // Predicated region
    $region42: #{tpu_custom_call.1} parent=1 // pred_check
      _
    $region43: #{tpu_custom_call.1} parent=1 // pred_check_branch
      %138 = sbr.rel (0) target = $region45
    $region44: #{tpu_custom_call.1} parent=1 // pred_region
      %139 = dma.done [#allocation3], 2048
    $region45: #{tpu_custom_call.1} parent=1 // pred_fallthru
      _
    // Predicated region
    $region46: #{tpu_custom_call.1} parent=1 // pred_check
      _
    $region47: #{tpu_custom_call.1} parent=1 // pred_check_branch
      %141 = sbr.rel (0) target = $region49
    $region48: #{tpu_custom_call.1} parent=1 // pred_region
      %142 = dma.done [#allocation6], 256
    $region49: #{tpu_custom_call.1} parent=1 // pred_fallthru
      _
    // Predicated region
    $region50: #{tpu_custom_call.1} parent=1 // pred_check
      _
    $region51: #{tpu_custom_call.1} parent=1 // pred_check_branch
      %144 = sbr.rel (0) target = $region53
    $region52: #{tpu_custom_call.1} parent=1 // pred_region
      %145 = dma.done [#allocation6], 65536
    $region53: #{tpu_custom_call.1} parent=1 // pred_fallthru
      _
    // Predicated region
    $region54: #{tpu_custom_call.1} parent=1 // pred_check
      _
    $region55: #{tpu_custom_call.1} parent=1 // pred_check_branch
      %147 = sbr.rel (0) target = $region57
    $region56: #{tpu_custom_call.1} parent=1 // pred_region
      %148 = dma.done [#allocation9], 128
    $region57: #{tpu_custom_call.1} parent=1 // pred_fallthru
      _
    // Predicated region
    $region58: #{tpu_custom_call.1} parent=1 // pred_check
      _
    $region59: #{tpu_custom_call.1} parent=1 // pred_check_branch
      %150 = sbr.rel (0) target = $region61
    $region60: #{tpu_custom_call.1} parent=1 // pred_region
      %151 = dma.done [#allocation9], 16384
    $region61: #{tpu_custom_call.1} parent=1 // pred_fallthru
      _
    // Predicated region
    $region62: #{tpu_custom_call.1} parent=1 // pred_check
      _
    $region63: #{tpu_custom_call.1} parent=1 // pred_check_branch
      %153 = sbr.rel (0) target = $region65
    $region64: #{tpu_custom_call.1} parent=1 // pred_region
      %154 = dma.done [#allocation12], 32
    $region65: #{tpu_custom_call.1} parent=1 // pred_fallthru
      _
    // Predicated region
    $region66: #{tpu_custom_call.1} parent=1 // pred_check
      _
    $region67: #{tpu_custom_call.1} parent=1 // pred_check_branch
      %156 = sbr.rel (0) target = $region69
    $region68: #{tpu_custom_call.1} parent=1 // pred_region
      %157 = dma.done [#allocation12], 2048
    $region69: #{tpu_custom_call.1} parent=1 // pred_fallthru
      _
    // Predicated region
    $region70: #{tpu_custom_call.1} parent=1 // pred_check
      _
    $region71: #{tpu_custom_call.1} parent=1 // pred_check_branch
      %159 = sbr.rel (0) target = $region73
    $region72: #{tpu_custom_call.1} parent=1 // pred_region
      %160 = dma.done [#allocation15], 32
    $region73: #{tpu_custom_call.1} parent=1 // pred_fallthru
      _
    // Predicated region
    $region74: #{tpu_custom_call.1} parent=1 // pred_check
      _
    $region75: #{tpu_custom_call.1} parent=1 // pred_check_branch
      %162 = sbr.rel (0) target = $region77
    $region76: #{tpu_custom_call.1} parent=1 // pred_region
      %163 = dma.done [#allocation15], 2048
    $region77: #{tpu_custom_call.1} parent=1 // pred_fallthru
      _
    // Predicated region
    $region78: #{tpu_custom_call.1} parent=1 // pred_check
      _
    $region79: #{tpu_custom_call.1} parent=1 // pred_check_branch
      %165 = sbr.rel (0) target = $region81
    $region80: #{tpu_custom_call.1} parent=1 // pred_region
      %166 = dma.done [#allocation18], 16
    $region81: #{tpu_custom_call.1} parent=1 // pred_fallthru
      _
    %v168 = vld [vmem:[#allocation2] sm:$0xff]
    %v169 = vld [vmem:[#allocation2 + $0x8] sm:$0xff]
    %v170 = vld [vmem:[#allocation2 + $0x10] sm:$0xff]
    %v171 = vld [vmem:[#allocation2 + $0x18] sm:$0xff]
    %v172 = vld [vmem:[#allocation2 + $0x20] sm:$0xff]
    %v173 = vld [vmem:[#allocation2 + $0x28] sm:$0xff]
    %v174 = vld [vmem:[#allocation2 + $0x30] sm:$0xff]
    %v175 = vld [vmem:[#allocation2 + $0x38] sm:$0xff]
    %v176 = vld [vmem:[#allocation2 + $0x40] sm:$0xff]
    %v177 = vld [vmem:[#allocation2 + $0x48] sm:$0xff]
    %v178 = vld [vmem:[#allocation2 + $0x50] sm:$0xff]
    %v179 = vld [vmem:[#allocation2 + $0x58] sm:$0xff]
    %v180 = vld [vmem:[#allocation2 + $0x60] sm:$0xff]
    %v181 = vld [vmem:[#allocation2 + $0x68] sm:$0xff]
    %v182 = vld [vmem:[#allocation2 + $0x70] sm:$0xff]
    %v183 = vld [vmem:[#allocation2 + $0x78] sm:$0xff]
    %v184 = vpack.c.bf16 %v176, %v168
    %v185 = vpack.c.bf16 %v177, %v169
    %v186 = vpack.c.bf16 %v178, %v170
    %v187 = vpack.c.bf16 %v179, %v171
    %v188 = vpack.c.bf16 %v180, %v172
    %v189 = vpack.c.bf16 %v181, %v173
    %v190 = vpack.c.bf16 %v182, %v174
    %v191 = vpack.c.bf16 %v183, %v175
    %v192 = vld [vmem:[#allocation7] sm:$0xff]
    %v193 = vld [vmem:[#allocation7 + $0x8] sm:$0xff]
    %v194 = vld [vmem:[#allocation7 + $0x10] sm:$0xff]
    %v195 = vld [vmem:[#allocation7 + $0x18] sm:$0xff]
    %v196 = vld [vmem:[#allocation7 + $0x20] sm:$0xff]
    %v197 = vld [vmem:[#allocation7 + $0x28] sm:$0xff]
    %v198 = vld [vmem:[#allocation7 + $0x30] sm:$0xff]
    %v199 = vld [vmem:[#allocation7 + $0x38] sm:$0xff]
    %v200 = vld [vmem:[#allocation7 + $0x40] sm:$0xff]
    %v201 = vld [vmem:[#allocation7 + $0x48] sm:$0xff]
    %v202 = vld [vmem:[#allocation7 + $0x50] sm:$0xff]
    %v203 = vld [vmem:[#allocation7 + $0x58] sm:$0xff]
    %v204 = vld [vmem:[#allocation7 + $0x60] sm:$0xff]
    %v205 = vld [vmem:[#allocation7 + $0x68] sm:$0xff]
    %v206 = vld [vmem:[#allocation7 + $0x70] sm:$0xff]
    %v207 = vld [vmem:[#allocation7 + $0x78] sm:$0xff]
    %v208 = vld [vmem:[#allocation7 + $0x80] sm:$0xff]
    %v209 = vld [vmem:[#allocation7 + $0x88] sm:$0xff]
    %v210 = vld [vmem:[#allocation7 + $0x90] sm:$0xff]
    %v211 = vld [vmem:[#allocation7 + $0x98] sm:$0xff]
    %v212 = vld [vmem:[#allocation7 + $0xa0] sm:$0xff]
    %v213 = vld [vmem:[#allocation7 + $0xa8] sm:$0xff]
    %v214 = vld [vmem:[#allocation7 + $0xb0] sm:$0xff]
    %v215 = vld [vmem:[#allocation7 + $0xb8] sm:$0xff]
    %v216 = vld [vmem:[#allocation7 + $0xc0] sm:$0xff]
    %v217 = vld [vmem:[#allocation7 + $0xc8] sm:$0xff]
    %v218 = vld [vmem:[#allocation7 + $0xd0] sm:$0xff]
    %v219 = vld [vmem:[#allocation7 + $0xd8] sm:$0xff]
    %v220 = vld [vmem:[#allocation7 + $0xe0] sm:$0xff]
    %v221 = vld [vmem:[#allocation7 + $0xe8] sm:$0xff]
    %v222 = vld [vmem:[#allocation7 + $0xf0] sm:$0xff]
    %v223 = vld [vmem:[#allocation7 + $0xf8] sm:$0xff]
    %v224 = vld [vmem:[#allocation7 + $0x100] sm:$0xff]
    %v225 = vld [vmem:[#allocation7 + $0x108] sm:$0xff]
    %v226 = vld [vmem:[#allocation7 + $0x110] sm:$0xff]
    %v227 = vld [vmem:[#allocation7 + $0x118] sm:$0xff]
    %v228 = vld [vmem:[#allocation7 + $0x120] sm:$0xff]
    %v229 = vld [vmem:[#allocation7 + $0x128] sm:$0xff]
    %v230 = vld [vmem:[#allocation7 + $0x130] sm:$0xff]
    %v231 = vld [vmem:[#allocation7 + $0x138] sm:$0xff]
    %v232 = vld [vmem:[#allocation7 + $0x140] sm:$0xff]
    %v233 = vld [vmem:[#allocation7 + $0x148] sm:$0xff]
    %v234 = vld [vmem:[#allocation7 + $0x150] sm:$0xff]
    %v235 = vld [vmem:[#allocation7 + $0x158] sm:$0xff]
    %v236 = vld [vmem:[#allocation7 + $0x160] sm:$0xff]
    %v237 = vld [vmem:[#allocation7 + $0x168] sm:$0xff]
    %v238 = vld [vmem:[#allocation7 + $0x170] sm:$0xff]
    %v239 = vld [vmem:[#allocation7 + $0x178] sm:$0xff]
    %v240 = vld [vmem:[#allocation7 + $0x180] sm:$0xff]
    %v241 = vld [vmem:[#allocation7 + $0x188] sm:$0xff]
    %v242 = vld [vmem:[#allocation7 + $0x190] sm:$0xff]
    %v243 = vld [vmem:[#allocation7 + $0x198] sm:$0xff]
    %v244 = vld [vmem:[#allocation7 + $0x1a0] sm:$0xff]
    %v245 = vld [vmem:[#allocation7 + $0x1a8] sm:$0xff]
    %v246 = vld [vmem:[#allocation7 + $0x1b0] sm:$0xff]
    %v247 = vld [vmem:[#allocation7 + $0x1b8] sm:$0xff]
    %v248 = vld [vmem:[#allocation7 + $0x1c0] sm:$0xff]
    %v249 = vld [vmem:[#allocation7 + $0x1c8] sm:$0xff]
    %v250 = vld [vmem:[#allocation7 + $0x1d0] sm:$0xff]
    %v251 = vld [vmem:[#allocation7 + $0x1d8] sm:$0xff]
    %v252 = vld [vmem:[#allocation7 + $0x1e0] sm:$0xff]
    %v253 = vld [vmem:[#allocation7 + $0x1e8] sm:$0xff]
    %v254 = vld [vmem:[#allocation7 + $0x1f0] sm:$0xff]
    %v255 = vld [vmem:[#allocation7 + $0x1f8] sm:$0xff]
    %v256 = vld [vmem:[#allocation7 + $0x200] sm:$0xff]
    %v257 = vld [vmem:[#allocation7 + $0x208] sm:$0xff]
    %v258 = vld [vmem:[#allocation7 + $0x210] sm:$0xff]
    %v259 = vld [vmem:[#allocation7 + $0x218] sm:$0xff]
    %v260 = vld [vmem:[#allocation7 + $0x220] sm:$0xff]
    %v261 = vld [vmem:[#allocation7 + $0x228] sm:$0xff]
    %v262 = vld [vmem:[#allocation7 + $0x230] sm:$0xff]
    %v263 = vld [vmem:[#allocation7 + $0x238] sm:$0xff]
    %v264 = vld [vmem:[#allocation7 + $0x240] sm:$0xff]
    %v265 = vld [vmem:[#allocation7 + $0x248] sm:$0xff]
    %v266 = vld [vmem:[#allocation7 + $0x250] sm:$0xff]
    %v267 = vld [vmem:[#allocation7 + $0x258] sm:$0xff]
    %v268 = vld [vmem:[#allocation7 + $0x260] sm:$0xff]
    %v269 = vld [vmem:[#allocation7 + $0x268] sm:$0xff]
    %v270 = vld [vmem:[#allocation7 + $0x270] sm:$0xff]
    %v271 = vld [vmem:[#allocation7 + $0x278] sm:$0xff]
    %v272 = vld [vmem:[#allocation7 + $0x280] sm:$0xff]
    %v273 = vld [vmem:[#allocation7 + $0x288] sm:$0xff]
    %v274 = vld [vmem:[#allocation7 + $0x290] sm:$0xff]
    %v275 = vld [vmem:[#allocation7 + $0x298] sm:$0xff]
    %v276 = vld [vmem:[#allocation7 + $0x2a0] sm:$0xff]
    %v277 = vld [vmem:[#allocation7 + $0x2a8] sm:$0xff]
    %v278 = vld [vmem:[#allocation7 + $0x2b0] sm:$0xff]
    %v279 = vld [vmem:[#allocation7 + $0x2b8] sm:$0xff]
    %v280 = vld [vmem:[#allocation7 + $0x2c0] sm:$0xff]
    %v281 = vld [vmem:[#allocation7 + $0x2c8] sm:$0xff]
    %v282 = vld [vmem:[#allocation7 + $0x2d0] sm:$0xff]
    %v283 = vld [vmem:[#allocation7 + $0x2d8] sm:$0xff]
    %v284 = vld [vmem:[#allocation7 + $0x2e0] sm:$0xff]
    %v285 = vld [vmem:[#allocation7 + $0x2e8] sm:$0xff]
    %v286 = vld [vmem:[#allocation7 + $0x2f0] sm:$0xff]
    %v287 = vld [vmem:[#allocation7 + $0x2f8] sm:$0xff]
    %v288 = vld [vmem:[#allocation7 + $0x300] sm:$0xff]
    %v289 = vld [vmem:[#allocation7 + $0x308] sm:$0xff]
    %v290 = vld [vmem:[#allocation7 + $0x310] sm:$0xff]
    %v291 = vld [vmem:[#allocation7 + $0x318] sm:$0xff]
    %v292 = vld [vmem:[#allocation7 + $0x320] sm:$0xff]
    %v293 = vld [vmem:[#allocation7 + $0x328] sm:$0xff]
    %v294 = vld [vmem:[#allocation7 + $0x330] sm:$0xff]
    %v295 = vld [vmem:[#allocation7 + $0x338] sm:$0xff]
    %v296 = vld [vmem:[#allocation7 + $0x340] sm:$0xff]
    %v297 = vld [vmem:[#allocation7 + $0x348] sm:$0xff]
    %v298 = vld [vmem:[#allocation7 + $0x350] sm:$0xff]
    %v299 = vld [vmem:[#allocation7 + $0x358] sm:$0xff]
    %v300 = vld [vmem:[#allocation7 + $0x360] sm:$0xff]
    %v301 = vld [vmem:[#allocation7 + $0x368] sm:$0xff]
    %v302 = vld [vmem:[#allocation7 + $0x370] sm:$0xff]
    %v303 = vld [vmem:[#allocation7 + $0x378] sm:$0xff]
    %v304 = vld [vmem:[#allocation7 + $0x380] sm:$0xff]
    %v305 = vld [vmem:[#allocation7 + $0x388] sm:$0xff]
    %v306 = vld [vmem:[#allocation7 + $0x390] sm:$0xff]
    %v307 = vld [vmem:[#allocation7 + $0x398] sm:$0xff]
    %v308 = vld [vmem:[#allocation7 + $0x3a0] sm:$0xff]
    %v309 = vld [vmem:[#allocation7 + $0x3a8] sm:$0xff]
    %v310 = vld [vmem:[#allocation7 + $0x3b0] sm:$0xff]
    %v311 = vld [vmem:[#allocation7 + $0x3b8] sm:$0xff]
    %v312 = vld [vmem:[#allocation7 + $0x3c0] sm:$0xff]
    %v313 = vld [vmem:[#allocation7 + $0x3c8] sm:$0xff]
    %v314 = vld [vmem:[#allocation7 + $0x3d0] sm:$0xff]
    %v315 = vld [vmem:[#allocation7 + $0x3d8] sm:$0xff]
    %v316 = vld [vmem:[#allocation7 + $0x3e0] sm:$0xff]
    %v317 = vld [vmem:[#allocation7 + $0x3e8] sm:$0xff]
    %v318 = vld [vmem:[#allocation7 + $0x3f0] sm:$0xff]
    %v319 = vld [vmem:[#allocation7 + $0x3f8] sm:$0xff]
    %v320 = vld [vmem:[#allocation7 + $0x400] sm:$0xff]
    %v321 = vld [vmem:[#allocation7 + $0x408] sm:$0xff]
    %v322 = vld [vmem:[#allocation7 + $0x410] sm:$0xff]
    %v323 = vld [vmem:[#allocation7 + $0x418] sm:$0xff]
    %v324 = vld [vmem:[#allocation7 + $0x420] sm:$0xff]
    %v325 = vld [vmem:[#allocation7 + $0x428] sm:$0xff]
    %v326 = vld [vmem:[#allocation7 + $0x430] sm:$0xff]
    %v327 = vld [vmem:[#allocation7 + $0x438] sm:$0xff]
    %v328 = vld [vmem:[#allocation7 + $0x440] sm:$0xff]
    %v329 = vld [vmem:[#allocation7 + $0x448] sm:$0xff]
    %v330 = vld [vmem:[#allocation7 + $0x450] sm:$0xff]
    %v331 = vld [vmem:[#allocation7 + $0x458] sm:$0xff]
    %v332 = vld [vmem:[#allocation7 + $0x460] sm:$0xff]
    %v333 = vld [vmem:[#allocation7 + $0x468] sm:$0xff]
    %v334 = vld [vmem:[#allocation7 + $0x470] sm:$0xff]
    %v335 = vld [vmem:[#allocation7 + $0x478] sm:$0xff]
    %v336 = vld [vmem:[#allocation7 + $0x480] sm:$0xff]
    %v337 = vld [vmem:[#allocation7 + $0x488] sm:$0xff]
    %v338 = vld [vmem:[#allocation7 + $0x490] sm:$0xff]
    %v339 = vld [vmem:[#allocation7 + $0x498] sm:$0xff]
    %v340 = vld [vmem:[#allocation7 + $0x4a0] sm:$0xff]
    %v341 = vld [vmem:[#allocation7 + $0x4a8] sm:$0xff]
    %v342 = vld [vmem:[#allocation7 + $0x4b0] sm:$0xff]
    %v343 = vld [vmem:[#allocation7 + $0x4b8] sm:$0xff]
    %v344 = vld [vmem:[#allocation7 + $0x4c0] sm:$0xff]
    %v345 = vld [vmem:[#allocation7 + $0x4c8] sm:$0xff]
    %v346 = vld [vmem:[#allocation7 + $0x4d0] sm:$0xff]
    %v347 = vld [vmem:[#allocation7 + $0x4d8] sm:$0xff]
    %v348 = vld [vmem:[#allocation7 + $0x4e0] sm:$0xff]
    %v349 = vld [vmem:[#allocation7 + $0x4e8] sm:$0xff]
    %v350 = vld [vmem:[#allocation7 + $0x4f0] sm:$0xff]
    %v351 = vld [vmem:[#allocation7 + $0x4f8] sm:$0xff]
    %v352 = vld [vmem:[#allocation7 + $0x500] sm:$0xff]
    %v353 = vld [vmem:[#allocation7 + $0x508] sm:$0xff]
    %v354 = vld [vmem:[#allocation7 + $0x510] sm:$0xff]
    %v355 = vld [vmem:[#allocation7 + $0x518] sm:$0xff]
    %v356 = vld [vmem:[#allocation7 + $0x520] sm:$0xff]
    %v357 = vld [vmem:[#allocation7 + $0x528] sm:$0xff]
    %v358 = vld [vmem:[#allocation7 + $0x530] sm:$0xff]
    %v359 = vld [vmem:[#allocation7 + $0x538] sm:$0xff]
    %v360 = vld [vmem:[#allocation7 + $0x540] sm:$0xff]
    %v361 = vld [vmem:[#allocation7 + $0x548] sm:$0xff]
    %v362 = vld [vmem:[#allocation7 + $0x550] sm:$0xff]
    %v363 = vld [vmem:[#allocation7 + $0x558] sm:$0xff]
    %v364 = vld [vmem:[#allocation7 + $0x560] sm:$0xff]
    %v365 = vld [vmem:[#allocation7 + $0x568] sm:$0xff]
    %v366 = vld [vmem:[#allocation7 + $0x570] sm:$0xff]
    %v367 = vld [vmem:[#allocation7 + $0x578] sm:$0xff]
    %v368 = vld [vmem:[#allocation7 + $0x580] sm:$0xff]
    %v369 = vld [vmem:[#allocation7 + $0x588] sm:$0xff]
    %v370 = vld [vmem:[#allocation7 + $0x590] sm:$0xff]
    %v371 = vld [vmem:[#allocation7 + $0x598] sm:$0xff]
    %v372 = vld [vmem:[#allocation7 + $0x5a0] sm:$0xff]
    %v373 = vld [vmem:[#allocation7 + $0x5a8] sm:$0xff]
    %v374 = vld [vmem:[#allocation7 + $0x5b0] sm:$0xff]
    %v375 = vld [vmem:[#allocation7 + $0x5b8] sm:$0xff]
    %v376 = vld [vmem:[#allocation7 + $0x5c0] sm:$0xff]
    %v377 = vld [vmem:[#allocation7 + $0x5c8] sm:$0xff]
    %v378 = vld [vmem:[#allocation7 + $0x5d0] sm:$0xff]
    %v379 = vld [vmem:[#allocation7 + $0x5d8] sm:$0xff]
    %v380 = vld [vmem:[#allocation7 + $0x5e0] sm:$0xff]
    %v381 = vld [vmem:[#allocation7 + $0x5e8] sm:$0xff]
    %v382 = vld [vmem:[#allocation7 + $0x5f0] sm:$0xff]
    %v383 = vld [vmem:[#allocation7 + $0x5f8] sm:$0xff]
    %v384 = vld [vmem:[#allocation7 + $0x600] sm:$0xff]
    %v385 = vld [vmem:[#allocation7 + $0x608] sm:$0xff]
    %v386 = vld [vmem:[#allocation7 + $0x610] sm:$0xff]
    %v387 = vld [vmem:[#allocation7 + $0x618] sm:$0xff]
    %v388 = vld [vmem:[#allocation7 + $0x620] sm:$0xff]
    %v389 = vld [vmem:[#allocation7 + $0x628] sm:$0xff]
    %v390 = vld [vmem:[#allocation7 + $0x630] sm:$0xff]
    %v391 = vld [vmem:[#allocation7 + $0x638] sm:$0xff]
    %v392 = vld [vmem:[#allocation7 + $0x640] sm:$0xff]
    %v393 = vld [vmem:[#allocation7 + $0x648] sm:$0xff]
    %v394 = vld [vmem:[#allocation7 + $0x650] sm:$0xff]
    %v395 = vld [vmem:[#allocation7 + $0x658] sm:$0xff]
    %v396 = vld [vmem:[#allocation7 + $0x660] sm:$0xff]
    %v397 = vld [vmem:[#allocation7 + $0x668] sm:$0xff]
    %v398 = vld [vmem:[#allocation7 + $0x670] sm:$0xff]
    %v399 = vld [vmem:[#allocation7 + $0x678] sm:$0xff]
    %v400 = vld [vmem:[#allocation7 + $0x680] sm:$0xff]
    %v401 = vld [vmem:[#allocation7 + $0x688] sm:$0xff]
    %v402 = vld [vmem:[#allocation7 + $0x690] sm:$0xff]
    %v403 = vld [vmem:[#allocation7 + $0x698] sm:$0xff]
    %v404 = vld [vmem:[#allocation7 + $0x6a0] sm:$0xff]
    %v405 = vld [vmem:[#allocation7 + $0x6a8] sm:$0xff]
    %v406 = vld [vmem:[#allocation7 + $0x6b0] sm:$0xff]
    %v407 = vld [vmem:[#allocation7 + $0x6b8] sm:$0xff]
    %v408 = vld [vmem:[#allocation7 + $0x6c0] sm:$0xff]
    %v409 = vld [vmem:[#allocation7 + $0x6c8] sm:$0xff]
    %v410 = vld [vmem:[#allocation7 + $0x6d0] sm:$0xff]
    %v411 = vld [vmem:[#allocation7 + $0x6d8] sm:$0xff]
    %v412 = vld [vmem:[#allocation7 + $0x6e0] sm:$0xff]
    %v413 = vld [vmem:[#allocation7 + $0x6e8] sm:$0xff]
    %v414 = vld [vmem:[#allocation7 + $0x6f0] sm:$0xff]
    %v415 = vld [vmem:[#allocation7 + $0x6f8] sm:$0xff]
    %v416 = vld [vmem:[#allocation7 + $0x700] sm:$0xff]
    %v417 = vld [vmem:[#allocation7 + $0x708] sm:$0xff]
    %v418 = vld [vmem:[#allocation7 + $0x710] sm:$0xff]
    %v419 = vld [vmem:[#allocation7 + $0x718] sm:$0xff]
    %v420 = vld [vmem:[#allocation7 + $0x720] sm:$0xff]
    %v421 = vld [vmem:[#allocation7 + $0x728] sm:$0xff]
    %v422 = vld [vmem:[#allocation7 + $0x730] sm:$0xff]
    %v423 = vld [vmem:[#allocation7 + $0x738] sm:$0xff]
    %v424 = vld [vmem:[#allocation7 + $0x740] sm:$0xff]
    %v425 = vld [vmem:[#allocation7 + $0x748] sm:$0xff]
    %v426 = vld [vmem:[#allocation7 + $0x750] sm:$0xff]
    %v427 = vld [vmem:[#allocation7 + $0x758] sm:$0xff]
    %v428 = vld [vmem:[#allocation7 + $0x760] sm:$0xff]
    %v429 = vld [vmem:[#allocation7 + $0x768] sm:$0xff]
    %v430 = vld [vmem:[#allocation7 + $0x770] sm:$0xff]
    %v431 = vld [vmem:[#allocation7 + $0x778] sm:$0xff]
    %v432 = vld [vmem:[#allocation7 + $0x780] sm:$0xff]
    %v433 = vld [vmem:[#allocation7 + $0x788] sm:$0xff]
    %v434 = vld [vmem:[#allocation7 + $0x790] sm:$0xff]
    %v435 = vld [vmem:[#allocation7 + $0x798] sm:$0xff]
    %v436 = vld [vmem:[#allocation7 + $0x7a0] sm:$0xff]
    %v437 = vld [vmem:[#allocation7 + $0x7a8] sm:$0xff]
    %v438 = vld [vmem:[#allocation7 + $0x7b0] sm:$0xff]
    %v439 = vld [vmem:[#allocation7 + $0x7b8] sm:$0xff]
    %v440 = vld [vmem:[#allocation7 + $0x7c0] sm:$0xff]
    %v441 = vld [vmem:[#allocation7 + $0x7c8] sm:$0xff]
    %v442 = vld [vmem:[#allocation7 + $0x7d0] sm:$0xff]
    %v443 = vld [vmem:[#allocation7 + $0x7d8] sm:$0xff]
    %v444 = vld [vmem:[#allocation7 + $0x7e0] sm:$0xff]
    %v445 = vld [vmem:[#allocation7 + $0x7e8] sm:$0xff]
    %v446 = vld [vmem:[#allocation7 + $0x7f0] sm:$0xff]
    %v447 = vld [vmem:[#allocation7 + $0x7f8] sm:$0xff]
    %v448 = vld [vmem:[#allocation7 + $0x800] sm:$0xff]
    %v449 = vld [vmem:[#allocation7 + $0x808] sm:$0xff]
    %v450 = vld [vmem:[#allocation7 + $0x810] sm:$0xff]
    %v451 = vld [vmem:[#allocation7 + $0x818] sm:$0xff]
    %v452 = vld [vmem:[#allocation7 + $0x820] sm:$0xff]
    %v453 = vld [vmem:[#allocation7 + $0x828] sm:$0xff]
    %v454 = vld [vmem:[#allocation7 + $0x830] sm:$0xff]
    %v455 = vld [vmem:[#allocation7 + $0x838] sm:$0xff]
    %v456 = vld [vmem:[#allocation7 + $0x840] sm:$0xff]
    %v457 = vld [vmem:[#allocation7 + $0x848] sm:$0xff]
    %v458 = vld [vmem:[#allocation7 + $0x850] sm:$0xff]
    %v459 = vld [vmem:[#allocation7 + $0x858] sm:$0xff]
    %v460 = vld [vmem:[#allocation7 + $0x860] sm:$0xff]
    %v461 = vld [vmem:[#allocation7 + $0x868] sm:$0xff]
    %v462 = vld [vmem:[#allocation7 + $0x870] sm:$0xff]
    %v463 = vld [vmem:[#allocation7 + $0x878] sm:$0xff]
    %v464 = vld [vmem:[#allocation7 + $0x880] sm:$0xff]
    %v465 = vld [vmem:[#allocation7 + $0x888] sm:$0xff]
    %v466 = vld [vmem:[#allocation7 + $0x890] sm:$0xff]
    %v467 = vld [vmem:[#allocation7 + $0x898] sm:$0xff]
    %v468 = vld [vmem:[#allocation7 + $0x8a0] sm:$0xff]
    %v469 = vld [vmem:[#allocation7 + $0x8a8] sm:$0xff]
    %v470 = vld [vmem:[#allocation7 + $0x8b0] sm:$0xff]
    %v471 = vld [vmem:[#allocation7 + $0x8b8] sm:$0xff]
    %v472 = vld [vmem:[#allocation7 + $0x8c0] sm:$0xff]
    %v473 = vld [vmem:[#allocation7 + $0x8c8] sm:$0xff]
    %v474 = vld [vmem:[#allocation7 + $0x8d0] sm:$0xff]
    %v475 = vld [vmem:[#allocation7 + $0x8d8] sm:$0xff]
    %v476 = vld [vmem:[#allocation7 + $0x8e0] sm:$0xff]
    %v477 = vld [vmem:[#allocation7 + $0x8e8] sm:$0xff]
    %v478 = vld [vmem:[#allocation7 + $0x8f0] sm:$0xff]
    %v479 = vld [vmem:[#allocation7 + $0x8f8] sm:$0xff]
    %v480 = vld [vmem:[#allocation7 + $0x900] sm:$0xff]
    %v481 = vld [vmem:[#allocation7 + $0x908] sm:$0xff]
    %v482 = vld [vmem:[#allocation7 + $0x910] sm:$0xff]
    %v483 = vld [vmem:[#allocation7 + $0x918] sm:$0xff]
    %v484 = vld [vmem:[#allocation7 + $0x920] sm:$0xff]
    %v485 = vld [vmem:[#allocation7 + $0x928] sm:$0xff]
    %v486 = vld [vmem:[#allocation7 + $0x930] sm:$0xff]
    %v487 = vld [vmem:[#allocation7 + $0x938] sm:$0xff]
    %v488 = vld [vmem:[#allocation7 + $0x940] sm:$0xff]
    %v489 = vld [vmem:[#allocation7 + $0x948] sm:$0xff]
    %v490 = vld [vmem:[#allocation7 + $0x950] sm:$0xff]
    %v491 = vld [vmem:[#allocation7 + $0x958] sm:$0xff]
    %v492 = vld [vmem:[#allocation7 + $0x960] sm:$0xff]
    %v493 = vld [vmem:[#allocation7 + $0x968] sm:$0xff]
    %v494 = vld [vmem:[#allocation7 + $0x970] sm:$0xff]
    %v495 = vld [vmem:[#allocation7 + $0x978] sm:$0xff]
    %v496 = vld [vmem:[#allocation7 + $0x980] sm:$0xff]
    %v497 = vld [vmem:[#allocation7 + $0x988] sm:$0xff]
    %v498 = vld [vmem:[#allocation7 + $0x990] sm:$0xff]
    %v499 = vld [vmem:[#allocation7 + $0x998] sm:$0xff]
    %v500 = vld [vmem:[#allocation7 + $0x9a0] sm:$0xff]
    %v501 = vld [vmem:[#allocation7 + $0x9a8] sm:$0xff]
    %v502 = vld [vmem:[#allocation7 + $0x9b0] sm:$0xff]
    %v503 = vld [vmem:[#allocation7 + $0x9b8] sm:$0xff]
    %v504 = vld [vmem:[#allocation7 + $0x9c0] sm:$0xff]
    %v505 = vld [vmem:[#allocation7 + $0x9c8] sm:$0xff]
    %v506 = vld [vmem:[#allocation7 + $0x9d0] sm:$0xff]
    %v507 = vld [vmem:[#allocation7 + $0x9d8] sm:$0xff]
    %v508 = vld [vmem:[#allocation7 + $0x9e0] sm:$0xff]
    %v509 = vld [vmem:[#allocation7 + $0x9e8] sm:$0xff]
    %v510 = vld [vmem:[#allocation7 + $0x9f0] sm:$0xff]
    %v511 = vld [vmem:[#allocation7 + $0x9f8] sm:$0xff]
    %v512 = vld [vmem:[#allocation7 + $0xa00] sm:$0xff]
    %v513 = vld [vmem:[#allocation7 + $0xa08] sm:$0xff]
    %v514 = vld [vmem:[#allocation7 + $0xa10] sm:$0xff]
    %v515 = vld [vmem:[#allocation7 + $0xa18] sm:$0xff]
    %v516 = vld [vmem:[#allocation7 + $0xa20] sm:$0xff]
    %v517 = vld [vmem:[#allocation7 + $0xa28] sm:$0xff]
    %v518 = vld [vmem:[#allocation7 + $0xa30] sm:$0xff]
    %v519 = vld [vmem:[#allocation7 + $0xa38] sm:$0xff]
    %v520 = vld [vmem:[#allocation7 + $0xa40] sm:$0xff]
    %v521 = vld [vmem:[#allocation7 + $0xa48] sm:$0xff]
    %v522 = vld [vmem:[#allocation7 + $0xa50] sm:$0xff]
    %v523 = vld [vmem:[#allocation7 + $0xa58] sm:$0xff]
    %v524 = vld [vmem:[#allocation7 + $0xa60] sm:$0xff]
    %v525 = vld [vmem:[#allocation7 + $0xa68] sm:$0xff]
    %v526 = vld [vmem:[#allocation7 + $0xa70] sm:$0xff]
    %v527 = vld [vmem:[#allocation7 + $0xa78] sm:$0xff]
    %v528 = vld [vmem:[#allocation7 + $0xa80] sm:$0xff]
    %v529 = vld [vmem:[#allocation7 + $0xa88] sm:$0xff]
    %v530 = vld [vmem:[#allocation7 + $0xa90] sm:$0xff]
    %v531 = vld [vmem:[#allocation7 + $0xa98] sm:$0xff]
    %v532 = vld [vmem:[#allocation7 + $0xaa0] sm:$0xff]
    %v533 = vld [vmem:[#allocation7 + $0xaa8] sm:$0xff]
    %v534 = vld [vmem:[#allocation7 + $0xab0] sm:$0xff]
    %v535 = vld [vmem:[#allocation7 + $0xab8] sm:$0xff]
    %v536 = vld [vmem:[#allocation7 + $0xac0] sm:$0xff]
    %v537 = vld [vmem:[#allocation7 + $0xac8] sm:$0xff]
    %v538 = vld [vmem:[#allocation7 + $0xad0] sm:$0xff]
    %v539 = vld [vmem:[#allocation7 + $0xad8] sm:$0xff]
    %v540 = vld [vmem:[#allocation7 + $0xae0] sm:$0xff]
    %v541 = vld [vmem:[#allocation7 + $0xae8] sm:$0xff]
    %v542 = vld [vmem:[#allocation7 + $0xaf0] sm:$0xff]
    %v543 = vld [vmem:[#allocation7 + $0xaf8] sm:$0xff]
    %v544 = vld [vmem:[#allocation7 + $0xb00] sm:$0xff]
    %v545 = vld [vmem:[#allocation7 + $0xb08] sm:$0xff]
    %v546 = vld [vmem:[#allocation7 + $0xb10] sm:$0xff]
    %v547 = vld [vmem:[#allocation7 + $0xb18] sm:$0xff]
    %v548 = vld [vmem:[#allocation7 + $0xb20] sm:$0xff]
    %v549 = vld [vmem:[#allocation7 + $0xb28] sm:$0xff]
    %v550 = vld [vmem:[#allocation7 + $0xb30] sm:$0xff]
    %v551 = vld [vmem:[#allocation7 + $0xb38] sm:$0xff]
    %v552 = vld [vmem:[#allocation7 + $0xb40] sm:$0xff]
    %v553 = vld [vmem:[#allocation7 + $0xb48] sm:$0xff]
    %v554 = vld [vmem:[#allocation7 + $0xb50] sm:$0xff]
    %v555 = vld [vmem:[#allocation7 + $0xb58] sm:$0xff]
    %v556 = vld [vmem:[#allocation7 + $0xb60] sm:$0xff]
    %v557 = vld [vmem:[#allocation7 + $0xb68] sm:$0xff]
    %v558 = vld [vmem:[#allocation7 + $0xb70] sm:$0xff]
    %v559 = vld [vmem:[#allocation7 + $0xb78] sm:$0xff]
    %v560 = vld [vmem:[#allocation7 + $0xb80] sm:$0xff]
    %v561 = vld [vmem:[#allocation7 + $0xb88] sm:$0xff]
    %v562 = vld [vmem:[#allocation7 + $0xb90] sm:$0xff]
    %v563 = vld [vmem:[#allocation7 + $0xb98] sm:$0xff]
    %v564 = vld [vmem:[#allocation7 + $0xba0] sm:$0xff]
    %v565 = vld [vmem:[#allocation7 + $0xba8] sm:$0xff]
    %v566 = vld [vmem:[#allocation7 + $0xbb0] sm:$0xff]
    %v567 = vld [vmem:[#allocation7 + $0xbb8] sm:$0xff]
    %v568 = vld [vmem:[#allocation7 + $0xbc0] sm:$0xff]
    %v569 = vld [vmem:[#allocation7 + $0xbc8] sm:$0xff]
    %v570 = vld [vmem:[#allocation7 + $0xbd0] sm:$0xff]
    %v571 = vld [vmem:[#allocation7 + $0xbd8] sm:$0xff]
    %v572 = vld [vmem:[#allocation7 + $0xbe0] sm:$0xff]
    %v573 = vld [vmem:[#allocation7 + $0xbe8] sm:$0xff]
    %v574 = vld [vmem:[#allocation7 + $0xbf0] sm:$0xff]
    %v575 = vld [vmem:[#allocation7 + $0xbf8] sm:$0xff]
    %v576 = vld [vmem:[#allocation7 + $0xc00] sm:$0xff]
    %v577 = vld [vmem:[#allocation7 + $0xc08] sm:$0xff]
    %v578 = vld [vmem:[#allocation7 + $0xc10] sm:$0xff]
    %v579 = vld [vmem:[#allocation7 + $0xc18] sm:$0xff]
    %v580 = vld [vmem:[#allocation7 + $0xc20] sm:$0xff]
    %v581 = vld [vmem:[#allocation7 + $0xc28] sm:$0xff]
    %v582 = vld [vmem:[#allocation7 + $0xc30] sm:$0xff]
    %v583 = vld [vmem:[#allocation7 + $0xc38] sm:$0xff]
    %v584 = vld [vmem:[#allocation7 + $0xc40] sm:$0xff]
    %v585 = vld [vmem:[#allocation7 + $0xc48] sm:$0xff]
    %v586 = vld [vmem:[#allocation7 + $0xc50] sm:$0xff]
    %v587 = vld [vmem:[#allocation7 + $0xc58] sm:$0xff]
    %v588 = vld [vmem:[#allocation7 + $0xc60] sm:$0xff]
    %v589 = vld [vmem:[#allocation7 + $0xc68] sm:$0xff]
    %v590 = vld [vmem:[#allocation7 + $0xc70] sm:$0xff]
    %v591 = vld [vmem:[#allocation7 + $0xc78] sm:$0xff]
    %v592 = vld [vmem:[#allocation7 + $0xc80] sm:$0xff]
    %v593 = vld [vmem:[#allocation7 + $0xc88] sm:$0xff]
    %v594 = vld [vmem:[#allocation7 + $0xc90] sm:$0xff]
    %v595 = vld [vmem:[#allocation7 + $0xc98] sm:$0xff]
    %v596 = vld [vmem:[#allocation7 + $0xca0] sm:$0xff]
    %v597 = vld [vmem:[#allocation7 + $0xca8] sm:$0xff]
    %v598 = vld [vmem:[#allocation7 + $0xcb0] sm:$0xff]
    %v599 = vld [vmem:[#allocation7 + $0xcb8] sm:$0xff]
    %v600 = vld [vmem:[#allocation7 + $0xcc0] sm:$0xff]
    %v601 = vld [vmem:[#allocation7 + $0xcc8] sm:$0xff]
    %v602 = vld [vmem:[#allocation7 + $0xcd0] sm:$0xff]
    %v603 = vld [vmem:[#allocation7 + $0xcd8] sm:$0xff]
    %v604 = vld [vmem:[#allocation7 + $0xce0] sm:$0xff]
    %v605 = vld [vmem:[#allocation7 + $0xce8] sm:$0xff]
    %v606 = vld [vmem:[#allocation7 + $0xcf0] sm:$0xff]
    %v607 = vld [vmem:[#allocation7 + $0xcf8] sm:$0xff]
    %v608 = vld [vmem:[#allocation7 + $0xd00] sm:$0xff]
    %v609 = vld [vmem:[#allocation7 + $0xd08] sm:$0xff]
    %v610 = vld [vmem:[#allocation7 + $0xd10] sm:$0xff]
    %v611 = vld [vmem:[#allocation7 + $0xd18] sm:$0xff]
    %v612 = vld [vmem:[#allocation7 + $0xd20] sm:$0xff]
    %v613 = vld [vmem:[#allocation7 + $0xd28] sm:$0xff]
    %v614 = vld [vmem:[#allocation7 + $0xd30] sm:$0xff]
    %v615 = vld [vmem:[#allocation7 + $0xd38] sm:$0xff]
    %v616 = vld [vmem:[#allocation7 + $0xd40] sm:$0xff]
    %v617 = vld [vmem:[#allocation7 + $0xd48] sm:$0xff]
    %v618 = vld [vmem:[#allocation7 + $0xd50] sm:$0xff]
    %v619 = vld [vmem:[#allocation7 + $0xd58] sm:$0xff]
    %v620 = vld [vmem:[#allocation7 + $0xd60] sm:$0xff]
    %v621 = vld [vmem:[#allocation7 + $0xd68] sm:$0xff]
    %v622 = vld [vmem:[#allocation7 + $0xd70] sm:$0xff]
    %v623 = vld [vmem:[#allocation7 + $0xd78] sm:$0xff]
    %v624 = vld [vmem:[#allocation7 + $0xd80] sm:$0xff]
    %v625 = vld [vmem:[#allocation7 + $0xd88] sm:$0xff]
    %v626 = vld [vmem:[#allocation7 + $0xd90] sm:$0xff]
    %v627 = vld [vmem:[#allocation7 + $0xd98] sm:$0xff]
    %v628 = vld [vmem:[#allocation7 + $0xda0] sm:$0xff]
    %v629 = vld [vmem:[#allocation7 + $0xda8] sm:$0xff]
    %v630 = vld [vmem:[#allocation7 + $0xdb0] sm:$0xff]
    %v631 = vld [vmem:[#allocation7 + $0xdb8] sm:$0xff]
    %v632 = vld [vmem:[#allocation7 + $0xdc0] sm:$0xff]
    %v633 = vld [vmem:[#allocation7 + $0xdc8] sm:$0xff]
    %v634 = vld [vmem:[#allocation7 + $0xdd0] sm:$0xff]
    %v635 = vld [vmem:[#allocation7 + $0xdd8] sm:$0xff]
    %v636 = vld [vmem:[#allocation7 + $0xde0] sm:$0xff]
    %v637 = vld [vmem:[#allocation7 + $0xde8] sm:$0xff]
    %v638 = vld [vmem:[#allocation7 + $0xdf0] sm:$0xff]
    %v639 = vld [vmem:[#allocation7 + $0xdf8] sm:$0xff]
    %v640 = vld [vmem:[#allocation7 + $0xe00] sm:$0xff]
    %v641 = vld [vmem:[#allocation7 + $0xe08] sm:$0xff]
    %v642 = vld [vmem:[#allocation7 + $0xe10] sm:$0xff]
    %v643 = vld [vmem:[#allocation7 + $0xe18] sm:$0xff]
    %v644 = vld [vmem:[#allocation7 + $0xe20] sm:$0xff]
    %v645 = vld [vmem:[#allocation7 + $0xe28] sm:$0xff]
    %v646 = vld [vmem:[#allocation7 + $0xe30] sm:$0xff]
    %v647 = vld [vmem:[#allocation7 + $0xe38] sm:$0xff]
    %v648 = vld [vmem:[#allocation7 + $0xe40] sm:$0xff]
    %v649 = vld [vmem:[#allocation7 + $0xe48] sm:$0xff]
    %v650 = vld [vmem:[#allocation7 + $0xe50] sm:$0xff]
    %v651 = vld [vmem:[#allocation7 + $0xe58] sm:$0xff]
    %v652 = vld [vmem:[#allocation7 + $0xe60] sm:$0xff]
    %v653 = vld [vmem:[#allocation7 + $0xe68] sm:$0xff]
    %v654 = vld [vmem:[#allocation7 + $0xe70] sm:$0xff]
    %v655 = vld [vmem:[#allocation7 + $0xe78] sm:$0xff]
    %v656 = vld [vmem:[#allocation7 + $0xe80] sm:$0xff]
    %v657 = vld [vmem:[#allocation7 + $0xe88] sm:$0xff]
    %v658 = vld [vmem:[#allocation7 + $0xe90] sm:$0xff]
    %v659 = vld [vmem:[#allocation7 + $0xe98] sm:$0xff]
    %v660 = vld [vmem:[#allocation7 + $0xea0] sm:$0xff]
    %v661 = vld [vmem:[#allocation7 + $0xea8] sm:$0xff]
    %v662 = vld [vmem:[#allocation7 + $0xeb0] sm:$0xff]
    %v663 = vld [vmem:[#allocation7 + $0xeb8] sm:$0xff]
    %v664 = vld [vmem:[#allocation7 + $0xec0] sm:$0xff]
    %v665 = vld [vmem:[#allocation7 + $0xec8] sm:$0xff]
    %v666 = vld [vmem:[#allocation7 + $0xed0] sm:$0xff]
    %v667 = vld [vmem:[#allocation7 + $0xed8] sm:$0xff]
    %v668 = vld [vmem:[#allocation7 + $0xee0] sm:$0xff]
    %v669 = vld [vmem:[#allocation7 + $0xee8] sm:$0xff]
    %v670 = vld [vmem:[#allocation7 + $0xef0] sm:$0xff]
    %v671 = vld [vmem:[#allocation7 + $0xef8] sm:$0xff]
    %v672 = vld [vmem:[#allocation7 + $0xf00] sm:$0xff]
    %v673 = vld [vmem:[#allocation7 + $0xf08] sm:$0xff]
    %v674 = vld [vmem:[#allocation7 + $0xf10] sm:$0xff]
    %v675 = vld [vmem:[#allocation7 + $0xf18] sm:$0xff]
    %v676 = vld [vmem:[#allocation7 + $0xf20] sm:$0xff]
    %v677 = vld [vmem:[#allocation7 + $0xf28] sm:$0xff]
    %v678 = vld [vmem:[#allocation7 + $0xf30] sm:$0xff]
    %v679 = vld [vmem:[#allocation7 + $0xf38] sm:$0xff]
    %v680 = vld [vmem:[#allocation7 + $0xf40] sm:$0xff]
    %v681 = vld [vmem:[#allocation7 + $0xf48] sm:$0xff]
    %v682 = vld [vmem:[#allocation7 + $0xf50] sm:$0xff]
    %v683 = vld [vmem:[#allocation7 + $0xf58] sm:$0xff]
    %v684 = vld [vmem:[#allocation7 + $0xf60] sm:$0xff]
    %v685 = vld [vmem:[#allocation7 + $0xf68] sm:$0xff]
    %v686 = vld [vmem:[#allocation7 + $0xf70] sm:$0xff]
    %v687 = vld [vmem:[#allocation7 + $0xf78] sm:$0xff]
    %v688 = vld [vmem:[#allocation7 + $0xf80] sm:$0xff]
    %v689 = vld [vmem:[#allocation7 + $0xf88] sm:$0xff]
    %v690 = vld [vmem:[#allocation7 + $0xf90] sm:$0xff]
    %v691 = vld [vmem:[#allocation7 + $0xf98] sm:$0xff]
    %v692 = vld [vmem:[#allocation7 + $0xfa0] sm:$0xff]
    %v693 = vld [vmem:[#allocation7 + $0xfa8] sm:$0xff]
    %v694 = vld [vmem:[#allocation7 + $0xfb0] sm:$0xff]
    %v695 = vld [vmem:[#allocation7 + $0xfb8] sm:$0xff]
    %v696 = vld [vmem:[#allocation7 + $0xfc0] sm:$0xff]
    %v697 = vld [vmem:[#allocation7 + $0xfc8] sm:$0xff]
    %v698 = vld [vmem:[#allocation7 + $0xfd0] sm:$0xff]
    %v699 = vld [vmem:[#allocation7 + $0xfd8] sm:$0xff]
    %v700 = vld [vmem:[#allocation7 + $0xfe0] sm:$0xff]
    %v701 = vld [vmem:[#allocation7 + $0xfe8] sm:$0xff]
    %v702 = vld [vmem:[#allocation7 + $0xff0] sm:$0xff]
    %v703 = vld [vmem:[#allocation7 + $0xff8] sm:$0xff]
    %v704 = vld [vmem:[#allocation8] sm:$0xff]
    %v706 = vlaneseq
    %v707 = vshrl.u32 %v706, 7
    %v708 = vsub.s32 0, %v707
    %v709 = vrot.slane %v704, %v708
    %v710 = vlaneseq
    %v711 = vshrl.u32 %v710, 7
    %v712 = vsub.s32 1, %v711
    %v713 = vrot.slane %v704, %v712
    %v714 = vlaneseq
    %v715 = vshrl.u32 %v714, 7
    %v716 = vsub.s32 2, %v715
    %v717 = vrot.slane %v704, %v716
    %v718 = vlaneseq
    %v719 = vshrl.u32 %v718, 7
    %v720 = vsub.s32 3, %v719
    %v721 = vrot.slane %v704, %v720
    %v722 = vlaneseq
    %v723 = vshrl.u32 %v722, 7
    %v724 = vsub.s32 4, %v723
    %v725 = vrot.slane %v704, %v724
    %v726 = vlaneseq
    %v727 = vshrl.u32 %v726, 7
    %v728 = vsub.s32 5, %v727
    %v729 = vrot.slane %v704, %v728
    %v730 = vlaneseq
    %v731 = vshrl.u32 %v730, 7
    %v732 = vsub.s32 6, %v731
    %v733 = vrot.slane %v704, %v732
    %v734 = vlaneseq
    %v735 = vshrl.u32 %v734, 7
    %v736 = vsub.s32 7, %v735
    %v737 = vrot.slane %v704, %v736
    %v1258 = vunpack.c.l.b16 %v192
    %v1259 = vunpack.c.h.b16 %v192
    %v1260 = vunpack.c.l.b16 %v193
    %v1261 = vunpack.c.h.b16 %v193
    %v1262 = vunpack.c.l.b16 %v194
    %v1263 = vunpack.c.h.b16 %v194
    %v1264 = vunpack.c.l.b16 %v195
    %v1265 = vunpack.c.h.b16 %v195
    %v1266 = vunpack.c.l.b16 %v196
    %v1267 = vunpack.c.h.b16 %v196
    %v1268 = vunpack.c.l.b16 %v197
    %v1269 = vunpack.c.h.b16 %v197
    %v1270 = vunpack.c.l.b16 %v198
    %v1271 = vunpack.c.h.b16 %v198
    %v1272 = vunpack.c.l.b16 %v199
    %v1273 = vunpack.c.h.b16 %v199
    %v1274 = vunpack.c.l.b16 %v200
    %v1275 = vunpack.c.h.b16 %v200
    %v1276 = vunpack.c.l.b16 %v201
    %v1277 = vunpack.c.h.b16 %v201
    %v1278 = vunpack.c.l.b16 %v202
    %v1279 = vunpack.c.h.b16 %v202
    %v1280 = vunpack.c.l.b16 %v203
    %v1281 = vunpack.c.h.b16 %v203
    %v1282 = vunpack.c.l.b16 %v204
    %v1283 = vunpack.c.h.b16 %v204
    %v1284 = vunpack.c.l.b16 %v205
    %v1285 = vunpack.c.h.b16 %v205
    %v1286 = vunpack.c.l.b16 %v206
    %v1287 = vunpack.c.h.b16 %v206
    %v1288 = vunpack.c.l.b16 %v207
    %v1289 = vunpack.c.h.b16 %v207
    %v1290 = vunpack.c.l.b16 %v208
    %v1291 = vunpack.c.h.b16 %v208
    %v1292 = vunpack.c.l.b16 %v209
    %v1293 = vunpack.c.h.b16 %v209
    %v1294 = vunpack.c.l.b16 %v210
    %v1295 = vunpack.c.h.b16 %v210
    %v1296 = vunpack.c.l.b16 %v211
    %v1297 = vunpack.c.h.b16 %v211
    %v1298 = vunpack.c.l.b16 %v212
    %v1299 = vunpack.c.h.b16 %v212
    %v1300 = vunpack.c.l.b16 %v213
    %v1301 = vunpack.c.h.b16 %v213
    %v1302 = vunpack.c.l.b16 %v214
    %v1303 = vunpack.c.h.b16 %v214
    %v1304 = vunpack.c.l.b16 %v215
    %v1305 = vunpack.c.h.b16 %v215
    %v1306 = vunpack.c.l.b16 %v216
    %v1307 = vunpack.c.h.b16 %v216
    %v1308 = vunpack.c.l.b16 %v217
    %v1309 = vunpack.c.h.b16 %v217
    %v1310 = vunpack.c.l.b16 %v218
    %v1311 = vunpack.c.h.b16 %v218
    %v1312 = vunpack.c.l.b16 %v219
    %v1313 = vunpack.c.h.b16 %v219
    %v1314 = vunpack.c.l.b16 %v220
    %v1315 = vunpack.c.h.b16 %v220
    %v1316 = vunpack.c.l.b16 %v221
    %v1317 = vunpack.c.h.b16 %v221
    %v1318 = vunpack.c.l.b16 %v222
    %v1319 = vunpack.c.h.b16 %v222
    %v1320 = vunpack.c.l.b16 %v223
    %v1321 = vunpack.c.h.b16 %v223
    %v1322 = vunpack.c.l.b16 %v224
    %v1323 = vunpack.c.h.b16 %v224
    %v1324 = vunpack.c.l.b16 %v225
    %v1325 = vunpack.c.h.b16 %v225
    %v1326 = vunpack.c.l.b16 %v226
    %v1327 = vunpack.c.h.b16 %v226
    %v1328 = vunpack.c.l.b16 %v227
    %v1329 = vunpack.c.h.b16 %v227
    %v1330 = vunpack.c.l.b16 %v228
    %v1331 = vunpack.c.h.b16 %v228
    %v1332 = vunpack.c.l.b16 %v229
    %v1333 = vunpack.c.h.b16 %v229
    %v1334 = vunpack.c.l.b16 %v230
    %v1335 = vunpack.c.h.b16 %v230
    %v1336 = vunpack.c.l.b16 %v231
    %v1337 = vunpack.c.h.b16 %v231
    %v1338 = vunpack.c.l.b16 %v232
    %v1339 = vunpack.c.h.b16 %v232
    %v1340 = vunpack.c.l.b16 %v233
    %v1341 = vunpack.c.h.b16 %v233
    %v1342 = vunpack.c.l.b16 %v234
    %v1343 = vunpack.c.h.b16 %v234
    %v1344 = vunpack.c.l.b16 %v235
    %v1345 = vunpack.c.h.b16 %v235
    %v1346 = vunpack.c.l.b16 %v236
    %v1347 = vunpack.c.h.b16 %v236
    %v1348 = vunpack.c.l.b16 %v237
    %v1349 = vunpack.c.h.b16 %v237
    %v1350 = vunpack.c.l.b16 %v238
    %v1351 = vunpack.c.h.b16 %v238
    %v1352 = vunpack.c.l.b16 %v239
    %v1353 = vunpack.c.h.b16 %v239
    %v1354 = vunpack.c.l.b16 %v240
    %v1355 = vunpack.c.h.b16 %v240
    %v1356 = vunpack.c.l.b16 %v241
    %v1357 = vunpack.c.h.b16 %v241
    %v1358 = vunpack.c.l.b16 %v242
    %v1359 = vunpack.c.h.b16 %v242
    %v1360 = vunpack.c.l.b16 %v243
    %v1361 = vunpack.c.h.b16 %v243
    %v1362 = vunpack.c.l.b16 %v244
    %v1363 = vunpack.c.h.b16 %v244
    %v1364 = vunpack.c.l.b16 %v245
    %v1365 = vunpack.c.h.b16 %v245
    %v1366 = vunpack.c.l.b16 %v246
    %v1367 = vunpack.c.h.b16 %v246
    %v1368 = vunpack.c.l.b16 %v247
    %v1369 = vunpack.c.h.b16 %v247
    %v1370 = vunpack.c.l.b16 %v248
    %v1371 = vunpack.c.h.b16 %v248
    %v1372 = vunpack.c.l.b16 %v249
    %v1373 = vunpack.c.h.b16 %v249
    %v1374 = vunpack.c.l.b16 %v250
    %v1375 = vunpack.c.h.b16 %v250
    %v1376 = vunpack.c.l.b16 %v251
    %v1377 = vunpack.c.h.b16 %v251
    %v1378 = vunpack.c.l.b16 %v252
    %v1379 = vunpack.c.h.b16 %v252
    %v1380 = vunpack.c.l.b16 %v253
    %v1381 = vunpack.c.h.b16 %v253
    %v1382 = vunpack.c.l.b16 %v254
    %v1383 = vunpack.c.h.b16 %v254
    %v1384 = vunpack.c.l.b16 %v255
    %v1385 = vunpack.c.h.b16 %v255
    %v1386 = vunpack.c.l.b16 %v256
    %v1387 = vunpack.c.h.b16 %v256
    %v1388 = vunpack.c.l.b16 %v257
    %v1389 = vunpack.c.h.b16 %v257
    %v1390 = vunpack.c.l.b16 %v258
    %v1391 = vunpack.c.h.b16 %v258
    %v1392 = vunpack.c.l.b16 %v259
    %v1393 = vunpack.c.h.b16 %v259
    %v1394 = vunpack.c.l.b16 %v260
    %v1395 = vunpack.c.h.b16 %v260
    %v1396 = vunpack.c.l.b16 %v261
    %v1397 = vunpack.c.h.b16 %v261
    %v1398 = vunpack.c.l.b16 %v262
    %v1399 = vunpack.c.h.b16 %v262
    %v1400 = vunpack.c.l.b16 %v263
    %v1401 = vunpack.c.h.b16 %v263
    %v1402 = vunpack.c.l.b16 %v264
    %v1403 = vunpack.c.h.b16 %v264
    %v1404 = vunpack.c.l.b16 %v265
    %v1405 = vunpack.c.h.b16 %v265
    %v1406 = vunpack.c.l.b16 %v266
    %v1407 = vunpack.c.h.b16 %v266
    %v1408 = vunpack.c.l.b16 %v267
    %v1409 = vunpack.c.h.b16 %v267
    %v1410 = vunpack.c.l.b16 %v268
    %v1411 = vunpack.c.h.b16 %v268
    %v1412 = vunpack.c.l.b16 %v269
    %v1413 = vunpack.c.h.b16 %v269
    %v1414 = vunpack.c.l.b16 %v270
    %v1415 = vunpack.c.h.b16 %v270
    %v1416 = vunpack.c.l.b16 %v271
    %v1417 = vunpack.c.h.b16 %v271
    %v1418 = vunpack.c.l.b16 %v272
    %v1419 = vunpack.c.h.b16 %v272
    %v1420 = vunpack.c.l.b16 %v273
    %v1421 = vunpack.c.h.b16 %v273
    %v1422 = vunpack.c.l.b16 %v274
    %v1423 = vunpack.c.h.b16 %v274
    %v1424 = vunpack.c.l.b16 %v275
    %v1425 = vunpack.c.h.b16 %v275
    %v1426 = vunpack.c.l.b16 %v276
    %v1427 = vunpack.c.h.b16 %v276
    %v1428 = vunpack.c.l.b16 %v277
    %v1429 = vunpack.c.h.b16 %v277
    %v1430 = vunpack.c.l.b16 %v278
    %v1431 = vunpack.c.h.b16 %v278
    %v1432 = vunpack.c.l.b16 %v279
    %v1433 = vunpack.c.h.b16 %v279
    %v1434 = vunpack.c.l.b16 %v280
    %v1435 = vunpack.c.h.b16 %v280
    %v1436 = vunpack.c.l.b16 %v281
    %v1437 = vunpack.c.h.b16 %v281
    %v1438 = vunpack.c.l.b16 %v282
    %v1439 = vunpack.c.h.b16 %v282
    %v1440 = vunpack.c.l.b16 %v283
    %v1441 = vunpack.c.h.b16 %v283
    %v1442 = vunpack.c.l.b16 %v284
    %v1443 = vunpack.c.h.b16 %v284
    %v1444 = vunpack.c.l.b16 %v285
    %v1445 = vunpack.c.h.b16 %v285
    %v1446 = vunpack.c.l.b16 %v286
    %v1447 = vunpack.c.h.b16 %v286
    %v1448 = vunpack.c.l.b16 %v287
    %v1449 = vunpack.c.h.b16 %v287
    %v1450 = vunpack.c.l.b16 %v288
    %v1451 = vunpack.c.h.b16 %v288
    %v1452 = vunpack.c.l.b16 %v289
    %v1453 = vunpack.c.h.b16 %v289
    %v1454 = vunpack.c.l.b16 %v290
    %v1455 = vunpack.c.h.b16 %v290
    %v1456 = vunpack.c.l.b16 %v291
    %v1457 = vunpack.c.h.b16 %v291
    %v1458 = vunpack.c.l.b16 %v292
    %v1459 = vunpack.c.h.b16 %v292
    %v1460 = vunpack.c.l.b16 %v293
    %v1461 = vunpack.c.h.b16 %v293
    %v1462 = vunpack.c.l.b16 %v294
    %v1463 = vunpack.c.h.b16 %v294
    %v1464 = vunpack.c.l.b16 %v295
    %v1465 = vunpack.c.h.b16 %v295
    %v1466 = vunpack.c.l.b16 %v296
    %v1467 = vunpack.c.h.b16 %v296
    %v1468 = vunpack.c.l.b16 %v297
    %v1469 = vunpack.c.h.b16 %v297
    %v1470 = vunpack.c.l.b16 %v298
    %v1471 = vunpack.c.h.b16 %v298
    %v1472 = vunpack.c.l.b16 %v299
    %v1473 = vunpack.c.h.b16 %v299
    %v1474 = vunpack.c.l.b16 %v300
    %v1475 = vunpack.c.h.b16 %v300
    %v1476 = vunpack.c.l.b16 %v301
    %v1477 = vunpack.c.h.b16 %v301
    %v1478 = vunpack.c.l.b16 %v302
    %v1479 = vunpack.c.h.b16 %v302
    %v1480 = vunpack.c.l.b16 %v303
    %v1481 = vunpack.c.h.b16 %v303
    %v1482 = vunpack.c.l.b16 %v304
    %v1483 = vunpack.c.h.b16 %v304
    %v1484 = vunpack.c.l.b16 %v305
    %v1485 = vunpack.c.h.b16 %v305
    %v1486 = vunpack.c.l.b16 %v306
    %v1487 = vunpack.c.h.b16 %v306
    %v1488 = vunpack.c.l.b16 %v307
    %v1489 = vunpack.c.h.b16 %v307
    %v1490 = vunpack.c.l.b16 %v308
    %v1491 = vunpack.c.h.b16 %v308
    %v1492 = vunpack.c.l.b16 %v309
    %v1493 = vunpack.c.h.b16 %v309
    %v1494 = vunpack.c.l.b16 %v310
    %v1495 = vunpack.c.h.b16 %v310
    %v1496 = vunpack.c.l.b16 %v311
    %v1497 = vunpack.c.h.b16 %v311
    %v1498 = vunpack.c.l.b16 %v312
    %v1499 = vunpack.c.h.b16 %v312
    %v1500 = vunpack.c.l.b16 %v313
    %v1501 = vunpack.c.h.b16 %v313
    %v1502 = vunpack.c.l.b16 %v314
    %v1503 = vunpack.c.h.b16 %v314
    %v1504 = vunpack.c.l.b16 %v315
    %v1505 = vunpack.c.h.b16 %v315
    %v1506 = vunpack.c.l.b16 %v316
    %v1507 = vunpack.c.h.b16 %v316
    %v1508 = vunpack.c.l.b16 %v317
    %v1509 = vunpack.c.h.b16 %v317
    %v1510 = vunpack.c.l.b16 %v318
    %v1511 = vunpack.c.h.b16 %v318
    %v1512 = vunpack.c.l.b16 %v319
    %v1513 = vunpack.c.h.b16 %v319
    %v1514 = vunpack.c.l.b16 %v320
    %v1515 = vunpack.c.h.b16 %v320
    %v1516 = vunpack.c.l.b16 %v321
    %v1517 = vunpack.c.h.b16 %v321
    %v1518 = vunpack.c.l.b16 %v322
    %v1519 = vunpack.c.h.b16 %v322
    %v1520 = vunpack.c.l.b16 %v323
    %v1521 = vunpack.c.h.b16 %v323
    %v1522 = vunpack.c.l.b16 %v324
    %v1523 = vunpack.c.h.b16 %v324
    %v1524 = vunpack.c.l.b16 %v325
    %v1525 = vunpack.c.h.b16 %v325
    %v1526 = vunpack.c.l.b16 %v326
    %v1527 = vunpack.c.h.b16 %v326
    %v1528 = vunpack.c.l.b16 %v327
    %v1529 = vunpack.c.h.b16 %v327
    %v1530 = vunpack.c.l.b16 %v328
    %v1531 = vunpack.c.h.b16 %v328
    %v1532 = vunpack.c.l.b16 %v329
    %v1533 = vunpack.c.h.b16 %v329
    %v1534 = vunpack.c.l.b16 %v330
    %v1535 = vunpack.c.h.b16 %v330
    %v1536 = vunpack.c.l.b16 %v331
    %v1537 = vunpack.c.h.b16 %v331
    %v1538 = vunpack.c.l.b16 %v332
    %v1539 = vunpack.c.h.b16 %v332
    %v1540 = vunpack.c.l.b16 %v333
    %v1541 = vunpack.c.h.b16 %v333
    %v1542 = vunpack.c.l.b16 %v334
    %v1543 = vunpack.c.h.b16 %v334
    %v1544 = vunpack.c.l.b16 %v335
    %v1545 = vunpack.c.h.b16 %v335
    %v1546 = vunpack.c.l.b16 %v336
    %v1547 = vunpack.c.h.b16 %v336
    %v1548 = vunpack.c.l.b16 %v337
    %v1549 = vunpack.c.h.b16 %v337
    %v1550 = vunpack.c.l.b16 %v338
    %v1551 = vunpack.c.h.b16 %v338
    %v1552 = vunpack.c.l.b16 %v339
    %v1553 = vunpack.c.h.b16 %v339
    %v1554 = vunpack.c.l.b16 %v340
    %v1555 = vunpack.c.h.b16 %v340
    %v1556 = vunpack.c.l.b16 %v341
    %v1557 = vunpack.c.h.b16 %v341
    %v1558 = vunpack.c.l.b16 %v342
    %v1559 = vunpack.c.h.b16 %v342
    %v1560 = vunpack.c.l.b16 %v343
    %v1561 = vunpack.c.h.b16 %v343
    %v1562 = vunpack.c.l.b16 %v344
    %v1563 = vunpack.c.h.b16 %v344
    %v1564 = vunpack.c.l.b16 %v345
    %v1565 = vunpack.c.h.b16 %v345
    %v1566 = vunpack.c.l.b16 %v346
    %v1567 = vunpack.c.h.b16 %v346
    %v1568 = vunpack.c.l.b16 %v347
    %v1569 = vunpack.c.h.b16 %v347
    %v1570 = vunpack.c.l.b16 %v348
    %v1571 = vunpack.c.h.b16 %v348
    %v1572 = vunpack.c.l.b16 %v349
    %v1573 = vunpack.c.h.b16 %v349
    %v1574 = vunpack.c.l.b16 %v350
    %v1575 = vunpack.c.h.b16 %v350
    %v1576 = vunpack.c.l.b16 %v351
    %v1577 = vunpack.c.h.b16 %v351
    %v1578 = vunpack.c.l.b16 %v352
    %v1579 = vunpack.c.h.b16 %v352
    %v1580 = vunpack.c.l.b16 %v353
    %v1581 = vunpack.c.h.b16 %v353
    %v1582 = vunpack.c.l.b16 %v354
    %v1583 = vunpack.c.h.b16 %v354
    %v1584 = vunpack.c.l.b16 %v355
    %v1585 = vunpack.c.h.b16 %v355
    %v1586 = vunpack.c.l.b16 %v356
    %v1587 = vunpack.c.h.b16 %v356
    %v1588 = vunpack.c.l.b16 %v357
    %v1589 = vunpack.c.h.b16 %v357
    %v1590 = vunpack.c.l.b16 %v358
    %v1591 = vunpack.c.h.b16 %v358
    %v1592 = vunpack.c.l.b16 %v359
    %v1593 = vunpack.c.h.b16 %v359
    %v1594 = vunpack.c.l.b16 %v360
    %v1595 = vunpack.c.h.b16 %v360
    %v1596 = vunpack.c.l.b16 %v361
    %v1597 = vunpack.c.h.b16 %v361
    %v1598 = vunpack.c.l.b16 %v362
    %v1599 = vunpack.c.h.b16 %v362
    %v1600 = vunpack.c.l.b16 %v363
    %v1601 = vunpack.c.h.b16 %v363
    %v1602 = vunpack.c.l.b16 %v364
    %v1603 = vunpack.c.h.b16 %v364
    %v1604 = vunpack.c.l.b16 %v365
    %v1605 = vunpack.c.h.b16 %v365
    %v1606 = vunpack.c.l.b16 %v366
    %v1607 = vunpack.c.h.b16 %v366
    %v1608 = vunpack.c.l.b16 %v367
    %v1609 = vunpack.c.h.b16 %v367
    %v1610 = vunpack.c.l.b16 %v368
    %v1611 = vunpack.c.h.b16 %v368
    %v1612 = vunpack.c.l.b16 %v369
    %v1613 = vunpack.c.h.b16 %v369
    %v1614 = vunpack.c.l.b16 %v370
    %v1615 = vunpack.c.h.b16 %v370
    %v1616 = vunpack.c.l.b16 %v371
    %v1617 = vunpack.c.h.b16 %v371
    %v1618 = vunpack.c.l.b16 %v372
    %v1619 = vunpack.c.h.b16 %v372
    %v1620 = vunpack.c.l.b16 %v373
    %v1621 = vunpack.c.h.b16 %v373
    %v1622 = vunpack.c.l.b16 %v374
    %v1623 = vunpack.c.h.b16 %v374
    %v1624 = vunpack.c.l.b16 %v375
    %v1625 = vunpack.c.h.b16 %v375
    %v1626 = vunpack.c.l.b16 %v376
    %v1627 = vunpack.c.h.b16 %v376
    %v1628 = vunpack.c.l.b16 %v377
    %v1629 = vunpack.c.h.b16 %v377
    %v1630 = vunpack.c.l.b16 %v378
    %v1631 = vunpack.c.h.b16 %v378
    %v1632 = vunpack.c.l.b16 %v379
    %v1633 = vunpack.c.h.b16 %v379
    %v1634 = vunpack.c.l.b16 %v380
    %v1635 = vunpack.c.h.b16 %v380
    %v1636 = vunpack.c.l.b16 %v381
    %v1637 = vunpack.c.h.b16 %v381
    %v1638 = vunpack.c.l.b16 %v382
    %v1639 = vunpack.c.h.b16 %v382
    %v1640 = vunpack.c.l.b16 %v383
    %v1641 = vunpack.c.h.b16 %v383
    %v1642 = vunpack.c.l.b16 %v384
    %v1643 = vunpack.c.h.b16 %v384
    %v1644 = vunpack.c.l.b16 %v385
    %v1645 = vunpack.c.h.b16 %v385
    %v1646 = vunpack.c.l.b16 %v386
    %v1647 = vunpack.c.h.b16 %v386
    %v1648 = vunpack.c.l.b16 %v387
    %v1649 = vunpack.c.h.b16 %v387
    %v1650 = vunpack.c.l.b16 %v388
    %v1651 = vunpack.c.h.b16 %v388
    %v1652 = vunpack.c.l.b16 %v389
    %v1653 = vunpack.c.h.b16 %v389
    %v1654 = vunpack.c.l.b16 %v390
    %v1655 = vunpack.c.h.b16 %v390
    %v1656 = vunpack.c.l.b16 %v391
    %v1657 = vunpack.c.h.b16 %v391
    %v1658 = vunpack.c.l.b16 %v392
    %v1659 = vunpack.c.h.b16 %v392
    %v1660 = vunpack.c.l.b16 %v393
    %v1661 = vunpack.c.h.b16 %v393
    %v1662 = vunpack.c.l.b16 %v394
    %v1663 = vunpack.c.h.b16 %v394
    %v1664 = vunpack.c.l.b16 %v395
    %v1665 = vunpack.c.h.b16 %v395
    %v1666 = vunpack.c.l.b16 %v396
    %v1667 = vunpack.c.h.b16 %v396
    %v1668 = vunpack.c.l.b16 %v397
    %v1669 = vunpack.c.h.b16 %v397
    %v1670 = vunpack.c.l.b16 %v398
    %v1671 = vunpack.c.h.b16 %v398
    %v1672 = vunpack.c.l.b16 %v399
    %v1673 = vunpack.c.h.b16 %v399
    %v1674 = vunpack.c.l.b16 %v400
    %v1675 = vunpack.c.h.b16 %v400
    %v1676 = vunpack.c.l.b16 %v401
    %v1677 = vunpack.c.h.b16 %v401
    %v1678 = vunpack.c.l.b16 %v402
    %v1679 = vunpack.c.h.b16 %v402
    %v1680 = vunpack.c.l.b16 %v403
    %v1681 = vunpack.c.h.b16 %v403
    %v1682 = vunpack.c.l.b16 %v404
    %v1683 = vunpack.c.h.b16 %v404
    %v1684 = vunpack.c.l.b16 %v405
    %v1685 = vunpack.c.h.b16 %v405
    %v1686 = vunpack.c.l.b16 %v406
    %v1687 = vunpack.c.h.b16 %v406
    %v1688 = vunpack.c.l.b16 %v407
    %v1689 = vunpack.c.h.b16 %v407
    %v1690 = vunpack.c.l.b16 %v408
    %v1691 = vunpack.c.h.b16 %v408
    %v1692 = vunpack.c.l.b16 %v409
    %v1693 = vunpack.c.h.b16 %v409
    %v1694 = vunpack.c.l.b16 %v410
    %v1695 = vunpack.c.h.b16 %v410
    %v1696 = vunpack.c.l.b16 %v411
    %v1697 = vunpack.c.h.b16 %v411
    %v1698 = vunpack.c.l.b16 %v412
    %v1699 = vunpack.c.h.b16 %v412
    %v1700 = vunpack.c.l.b16 %v413
    %v1701 = vunpack.c.h.b16 %v413
    %v1702 = vunpack.c.l.b16 %v414
    %v1703 = vunpack.c.h.b16 %v414
    %v1704 = vunpack.c.l.b16 %v415
    %v1705 = vunpack.c.h.b16 %v415
    %v1706 = vunpack.c.l.b16 %v416
    %v1707 = vunpack.c.h.b16 %v416
    %v1708 = vunpack.c.l.b16 %v417
    %v1709 = vunpack.c.h.b16 %v417
    %v1710 = vunpack.c.l.b16 %v418
    %v1711 = vunpack.c.h.b16 %v418
    %v1712 = vunpack.c.l.b16 %v419
    %v1713 = vunpack.c.h.b16 %v419
    %v1714 = vunpack.c.l.b16 %v420
    %v1715 = vunpack.c.h.b16 %v420
    %v1716 = vunpack.c.l.b16 %v421
    %v1717 = vunpack.c.h.b16 %v421
    %v1718 = vunpack.c.l.b16 %v422
    %v1719 = vunpack.c.h.b16 %v422
    %v1720 = vunpack.c.l.b16 %v423
    %v1721 = vunpack.c.h.b16 %v423
    %v1722 = vunpack.c.l.b16 %v424
    %v1723 = vunpack.c.h.b16 %v424
    %v1724 = vunpack.c.l.b16 %v425
    %v1725 = vunpack.c.h.b16 %v425
    %v1726 = vunpack.c.l.b16 %v426
    %v1727 = vunpack.c.h.b16 %v426
    %v1728 = vunpack.c.l.b16 %v427
    %v1729 = vunpack.c.h.b16 %v427
    %v1730 = vunpack.c.l.b16 %v428
    %v1731 = vunpack.c.h.b16 %v428
    %v1732 = vunpack.c.l.b16 %v429
    %v1733 = vunpack.c.h.b16 %v429
    %v1734 = vunpack.c.l.b16 %v430
    %v1735 = vunpack.c.h.b16 %v430
    %v1736 = vunpack.c.l.b16 %v431
    %v1737 = vunpack.c.h.b16 %v431
    %v1738 = vunpack.c.l.b16 %v432
    %v1739 = vunpack.c.h.b16 %v432
    %v1740 = vunpack.c.l.b16 %v433
    %v1741 = vunpack.c.h.b16 %v433
    %v1742 = vunpack.c.l.b16 %v434
    %v1743 = vunpack.c.h.b16 %v434
    %v1744 = vunpack.c.l.b16 %v435
    %v1745 = vunpack.c.h.b16 %v435
    %v1746 = vunpack.c.l.b16 %v436
    %v1747 = vunpack.c.h.b16 %v436
    %v1748 = vunpack.c.l.b16 %v437
    %v1749 = vunpack.c.h.b16 %v437
    %v1750 = vunpack.c.l.b16 %v438
    %v1751 = vunpack.c.h.b16 %v438
    %v1752 = vunpack.c.l.b16 %v439
    %v1753 = vunpack.c.h.b16 %v439
    %v1754 = vunpack.c.l.b16 %v440
    %v1755 = vunpack.c.h.b16 %v440
    %v1756 = vunpack.c.l.b16 %v441
    %v1757 = vunpack.c.h.b16 %v441
    %v1758 = vunpack.c.l.b16 %v442
    %v1759 = vunpack.c.h.b16 %v442
    %v1760 = vunpack.c.l.b16 %v443
    %v1761 = vunpack.c.h.b16 %v443
    %v1762 = vunpack.c.l.b16 %v444
    %v1763 = vunpack.c.h.b16 %v444
    %v1764 = vunpack.c.l.b16 %v445
    %v1765 = vunpack.c.h.b16 %v445
    %v1766 = vunpack.c.l.b16 %v446
    %v1767 = vunpack.c.h.b16 %v446
    %v1768 = vunpack.c.l.b16 %v447
    %v1769 = vunpack.c.h.b16 %v447
    %v1770 = vunpack.c.l.b16 %v448
    %v1771 = vunpack.c.h.b16 %v448
    %v1772 = vunpack.c.l.b16 %v449
    %v1773 = vunpack.c.h.b16 %v449
    %v1774 = vunpack.c.l.b16 %v450
    %v1775 = vunpack.c.h.b16 %v450
    %v1776 = vunpack.c.l.b16 %v451
    %v1777 = vunpack.c.h.b16 %v451
    %v1778 = vunpack.c.l.b16 %v452
    %v1779 = vunpack.c.h.b16 %v452
    %v1780 = vunpack.c.l.b16 %v453
    %v1781 = vunpack.c.h.b16 %v453
    %v1782 = vunpack.c.l.b16 %v454
    %v1783 = vunpack.c.h.b16 %v454
    %v1784 = vunpack.c.l.b16 %v455
    %v1785 = vunpack.c.h.b16 %v455
    %v1786 = vunpack.c.l.b16 %v456
    %v1787 = vunpack.c.h.b16 %v456
    %v1788 = vunpack.c.l.b16 %v457
    %v1789 = vunpack.c.h.b16 %v457
    %v1790 = vunpack.c.l.b16 %v458
    %v1791 = vunpack.c.h.b16 %v458
    %v1792 = vunpack.c.l.b16 %v459
    %v1793 = vunpack.c.h.b16 %v459
    %v1794 = vunpack.c.l.b16 %v460
    %v1795 = vunpack.c.h.b16 %v460
    %v1796 = vunpack.c.l.b16 %v461
    %v1797 = vunpack.c.h.b16 %v461
    %v1798 = vunpack.c.l.b16 %v462
    %v1799 = vunpack.c.h.b16 %v462
    %v1800 = vunpack.c.l.b16 %v463
    %v1801 = vunpack.c.h.b16 %v463
    %v1802 = vunpack.c.l.b16 %v464
    %v1803 = vunpack.c.h.b16 %v464
    %v1804 = vunpack.c.l.b16 %v465
    %v1805 = vunpack.c.h.b16 %v465
    %v1806 = vunpack.c.l.b16 %v466
    %v1807 = vunpack.c.h.b16 %v466
    %v1808 = vunpack.c.l.b16 %v467
    %v1809 = vunpack.c.h.b16 %v467
    %v1810 = vunpack.c.l.b16 %v468
    %v1811 = vunpack.c.h.b16 %v468
    %v1812 = vunpack.c.l.b16 %v469
    %v1813 = vunpack.c.h.b16 %v469
    %v1814 = vunpack.c.l.b16 %v470
    %v1815 = vunpack.c.h.b16 %v470
    %v1816 = vunpack.c.l.b16 %v471
    %v1817 = vunpack.c.h.b16 %v471
    %v1818 = vunpack.c.l.b16 %v472
    %v1819 = vunpack.c.h.b16 %v472
    %v1820 = vunpack.c.l.b16 %v473
    %v1821 = vunpack.c.h.b16 %v473
    %v1822 = vunpack.c.l.b16 %v474
    %v1823 = vunpack.c.h.b16 %v474
    %v1824 = vunpack.c.l.b16 %v475
    %v1825 = vunpack.c.h.b16 %v475
    %v1826 = vunpack.c.l.b16 %v476
    %v1827 = vunpack.c.h.b16 %v476
    %v1828 = vunpack.c.l.b16 %v477
    %v1829 = vunpack.c.h.b16 %v477
    %v1830 = vunpack.c.l.b16 %v478
    %v1831 = vunpack.c.h.b16 %v478
    %v1832 = vunpack.c.l.b16 %v479
    %v1833 = vunpack.c.h.b16 %v479
    %v1834 = vunpack.c.l.b16 %v480
    %v1835 = vunpack.c.h.b16 %v480
    %v1836 = vunpack.c.l.b16 %v481
    %v1837 = vunpack.c.h.b16 %v481
    %v1838 = vunpack.c.l.b16 %v482
    %v1839 = vunpack.c.h.b16 %v482
    %v1840 = vunpack.c.l.b16 %v483
    %v1841 = vunpack.c.h.b16 %v483
    %v1842 = vunpack.c.l.b16 %v484
    %v1843 = vunpack.c.h.b16 %v484
    %v1844 = vunpack.c.l.b16 %v485
    %v1845 = vunpack.c.h.b16 %v485
    %v1846 = vunpack.c.l.b16 %v486
    %v1847 = vunpack.c.h.b16 %v486
    %v1848 = vunpack.c.l.b16 %v487
    %v1849 = vunpack.c.h.b16 %v487
    %v1850 = vunpack.c.l.b16 %v488
    %v1851 = vunpack.c.h.b16 %v488
    %v1852 = vunpack.c.l.b16 %v489
    %v1853 = vunpack.c.h.b16 %v489
    %v1854 = vunpack.c.l.b16 %v490
    %v1855 = vunpack.c.h.b16 %v490
    %v1856 = vunpack.c.l.b16 %v491
    %v1857 = vunpack.c.h.b16 %v491
    %v1858 = vunpack.c.l.b16 %v492
    %v1859 = vunpack.c.h.b16 %v492
    %v1860 = vunpack.c.l.b16 %v493
    %v1861 = vunpack.c.h.b16 %v493
    %v1862 = vunpack.c.l.b16 %v494
    %v1863 = vunpack.c.h.b16 %v494
    %v1864 = vunpack.c.l.b16 %v495
    %v1865 = vunpack.c.h.b16 %v495
    %v1866 = vunpack.c.l.b16 %v496
    %v1867 = vunpack.c.h.b16 %v496
    %v1868 = vunpack.c.l.b16 %v497
    %v1869 = vunpack.c.h.b16 %v497
    %v1870 = vunpack.c.l.b16 %v498
    %v1871 = vunpack.c.h.b16 %v498
    %v1872 = vunpack.c.l.b16 %v499
    %v1873 = vunpack.c.h.b16 %v499
    %v1874 = vunpack.c.l.b16 %v500
    %v1875 = vunpack.c.h.b16 %v500
    %v1876 = vunpack.c.l.b16 %v501
    %v1877 = vunpack.c.h.b16 %v501
    %v1878 = vunpack.c.l.b16 %v502
    %v1879 = vunpack.c.h.b16 %v502
    %v1880 = vunpack.c.l.b16 %v503
    %v1881 = vunpack.c.h.b16 %v503
    %v1882 = vunpack.c.l.b16 %v504
    %v1883 = vunpack.c.h.b16 %v504
    %v1884 = vunpack.c.l.b16 %v505
    %v1885 = vunpack.c.h.b16 %v505
    %v1886 = vunpack.c.l.b16 %v506
    %v1887 = vunpack.c.h.b16 %v506
    %v1888 = vunpack.c.l.b16 %v507
    %v1889 = vunpack.c.h.b16 %v507
    %v1890 = vunpack.c.l.b16 %v508
    %v1891 = vunpack.c.h.b16 %v508
    %v1892 = vunpack.c.l.b16 %v509
    %v1893 = vunpack.c.h.b16 %v509
    %v1894 = vunpack.c.l.b16 %v510
    %v1895 = vunpack.c.h.b16 %v510
    %v1896 = vunpack.c.l.b16 %v511
    %v1897 = vunpack.c.h.b16 %v511
    %v1898 = vunpack.c.l.b16 %v512
    %v1899 = vunpack.c.h.b16 %v512
    %v1900 = vunpack.c.l.b16 %v513
    %v1901 = vunpack.c.h.b16 %v513
    %v1902 = vunpack.c.l.b16 %v514
    %v1903 = vunpack.c.h.b16 %v514
    %v1904 = vunpack.c.l.b16 %v515
    %v1905 = vunpack.c.h.b16 %v515
    %v1906 = vunpack.c.l.b16 %v516
    %v1907 = vunpack.c.h.b16 %v516
    %v1908 = vunpack.c.l.b16 %v517
    %v1909 = vunpack.c.h.b16 %v517
    %v1910 = vunpack.c.l.b16 %v518
    %v1911 = vunpack.c.h.b16 %v518
    %v1912 = vunpack.c.l.b16 %v519
    %v1913 = vunpack.c.h.b16 %v519
    %v1914 = vunpack.c.l.b16 %v520
    %v1915 = vunpack.c.h.b16 %v520
    %v1916 = vunpack.c.l.b16 %v521
    %v1917 = vunpack.c.h.b16 %v521
    %v1918 = vunpack.c.l.b16 %v522
    %v1919 = vunpack.c.h.b16 %v522
    %v1920 = vunpack.c.l.b16 %v523
    %v1921 = vunpack.c.h.b16 %v523
    %v1922 = vunpack.c.l.b16 %v524
    %v1923 = vunpack.c.h.b16 %v524
    %v1924 = vunpack.c.l.b16 %v525
    %v1925 = vunpack.c.h.b16 %v525
    %v1926 = vunpack.c.l.b16 %v526
    %v1927 = vunpack.c.h.b16 %v526
    %v1928 = vunpack.c.l.b16 %v527
    %v1929 = vunpack.c.h.b16 %v527
    %v1930 = vunpack.c.l.b16 %v528
    %v1931 = vunpack.c.h.b16 %v528
    %v1932 = vunpack.c.l.b16 %v529
    %v1933 = vunpack.c.h.b16 %v529
    %v1934 = vunpack.c.l.b16 %v530
    %v1935 = vunpack.c.h.b16 %v530
    %v1936 = vunpack.c.l.b16 %v531
    %v1937 = vunpack.c.h.b16 %v531
    %v1938 = vunpack.c.l.b16 %v532
    %v1939 = vunpack.c.h.b16 %v532
    %v1940 = vunpack.c.l.b16 %v533
    %v1941 = vunpack.c.h.b16 %v533
    %v1942 = vunpack.c.l.b16 %v534
    %v1943 = vunpack.c.h.b16 %v534
    %v1944 = vunpack.c.l.b16 %v535
    %v1945 = vunpack.c.h.b16 %v535
    %v1946 = vunpack.c.l.b16 %v536
    %v1947 = vunpack.c.h.b16 %v536
    %v1948 = vunpack.c.l.b16 %v537
    %v1949 = vunpack.c.h.b16 %v537
    %v1950 = vunpack.c.l.b16 %v538
    %v1951 = vunpack.c.h.b16 %v538
    %v1952 = vunpack.c.l.b16 %v539
    %v1953 = vunpack.c.h.b16 %v539
    %v1954 = vunpack.c.l.b16 %v540
    %v1955 = vunpack.c.h.b16 %v540
    %v1956 = vunpack.c.l.b16 %v541
    %v1957 = vunpack.c.h.b16 %v541
    %v1958 = vunpack.c.l.b16 %v542
    %v1959 = vunpack.c.h.b16 %v542
    %v1960 = vunpack.c.l.b16 %v543
    %v1961 = vunpack.c.h.b16 %v543
    %v1962 = vunpack.c.l.b16 %v544
    %v1963 = vunpack.c.h.b16 %v544
    %v1964 = vunpack.c.l.b16 %v545
    %v1965 = vunpack.c.h.b16 %v545
    %v1966 = vunpack.c.l.b16 %v546
    %v1967 = vunpack.c.h.b16 %v546
    %v1968 = vunpack.c.l.b16 %v547
    %v1969 = vunpack.c.h.b16 %v547
    %v1970 = vunpack.c.l.b16 %v548
    %v1971 = vunpack.c.h.b16 %v548
    %v1972 = vunpack.c.l.b16 %v549
    %v1973 = vunpack.c.h.b16 %v549
    %v1974 = vunpack.c.l.b16 %v550
    %v1975 = vunpack.c.h.b16 %v550
    %v1976 = vunpack.c.l.b16 %v551
    %v1977 = vunpack.c.h.b16 %v551
    %v1978 = vunpack.c.l.b16 %v552
    %v1979 = vunpack.c.h.b16 %v552
    %v1980 = vunpack.c.l.b16 %v553
    %v1981 = vunpack.c.h.b16 %v553
    %v1982 = vunpack.c.l.b16 %v554
    %v1983 = vunpack.c.h.b16 %v554
    %v1984 = vunpack.c.l.b16 %v555
    %v1985 = vunpack.c.h.b16 %v555
    %v1986 = vunpack.c.l.b16 %v556
    %v1987 = vunpack.c.h.b16 %v556
    %v1988 = vunpack.c.l.b16 %v557
    %v1989 = vunpack.c.h.b16 %v557
    %v1990 = vunpack.c.l.b16 %v558
    %v1991 = vunpack.c.h.b16 %v558
    %v1992 = vunpack.c.l.b16 %v559
    %v1993 = vunpack.c.h.b16 %v559
    %v1994 = vunpack.c.l.b16 %v560
    %v1995 = vunpack.c.h.b16 %v560
    %v1996 = vunpack.c.l.b16 %v561
    %v1997 = vunpack.c.h.b16 %v561
    %v1998 = vunpack.c.l.b16 %v562
    %v1999 = vunpack.c.h.b16 %v562
    %v2000 = vunpack.c.l.b16 %v563
    %v2001 = vunpack.c.h.b16 %v563
    %v2002 = vunpack.c.l.b16 %v564
    %v2003 = vunpack.c.h.b16 %v564
    %v2004 = vunpack.c.l.b16 %v565
    %v2005 = vunpack.c.h.b16 %v565
    %v2006 = vunpack.c.l.b16 %v566
    %v2007 = vunpack.c.h.b16 %v566
    %v2008 = vunpack.c.l.b16 %v567
    %v2009 = vunpack.c.h.b16 %v567
    %v2010 = vunpack.c.l.b16 %v568
    %v2011 = vunpack.c.h.b16 %v568
    %v2012 = vunpack.c.l.b16 %v569
    %v2013 = vunpack.c.h.b16 %v569
    %v2014 = vunpack.c.l.b16 %v570
    %v2015 = vunpack.c.h.b16 %v570
    %v2016 = vunpack.c.l.b16 %v571
    %v2017 = vunpack.c.h.b16 %v571
    %v2018 = vunpack.c.l.b16 %v572
    %v2019 = vunpack.c.h.b16 %v572
    %v2020 = vunpack.c.l.b16 %v573
    %v2021 = vunpack.c.h.b16 %v573
    %v2022 = vunpack.c.l.b16 %v574
    %v2023 = vunpack.c.h.b16 %v574
    %v2024 = vunpack.c.l.b16 %v575
    %v2025 = vunpack.c.h.b16 %v575
    %v2026 = vunpack.c.l.b16 %v576
    %v2027 = vunpack.c.h.b16 %v576
    %v2028 = vunpack.c.l.b16 %v577
    %v2029 = vunpack.c.h.b16 %v577
    %v2030 = vunpack.c.l.b16 %v578
    %v2031 = vunpack.c.h.b16 %v578
    %v2032 = vunpack.c.l.b16 %v579
    %v2033 = vunpack.c.h.b16 %v579
    %v2034 = vunpack.c.l.b16 %v580
    %v2035 = vunpack.c.h.b16 %v580
    %v2036 = vunpack.c.l.b16 %v581
    %v2037 = vunpack.c.h.b16 %v581
    %v2038 = vunpack.c.l.b16 %v582
    %v2039 = vunpack.c.h.b16 %v582
    %v2040 = vunpack.c.l.b16 %v583
    %v2041 = vunpack.c.h.b16 %v583
    %v2042 = vunpack.c.l.b16 %v584
    %v2043 = vunpack.c.h.b16 %v584
    %v2044 = vunpack.c.l.b16 %v585
    %v2045 = vunpack.c.h.b16 %v585
    %v2046 = vunpack.c.l.b16 %v586
    %v2047 = vunpack.c.h.b16 %v586
    %v2048 = vunpack.c.l.b16 %v587
    %v2049 = vunpack.c.h.b16 %v587
    %v2050 = vunpack.c.l.b16 %v588
    %v2051 = vunpack.c.h.b16 %v588
    %v2052 = vunpack.c.l.b16 %v589
    %v2053 = vunpack.c.h.b16 %v589
    %v2054 = vunpack.c.l.b16 %v590
    %v2055 = vunpack.c.h.b16 %v590
    %v2056 = vunpack.c.l.b16 %v591
    %v2057 = vunpack.c.h.b16 %v591
    %v2058 = vunpack.c.l.b16 %v592
    %v2059 = vunpack.c.h.b16 %v592
    %v2060 = vunpack.c.l.b16 %v593
    %v2061 = vunpack.c.h.b16 %v593
    %v2062 = vunpack.c.l.b16 %v594
    %v2063 = vunpack.c.h.b16 %v594
    %v2064 = vunpack.c.l.b16 %v595
    %v2065 = vunpack.c.h.b16 %v595
    %v2066 = vunpack.c.l.b16 %v596
    %v2067 = vunpack.c.h.b16 %v596
    %v2068 = vunpack.c.l.b16 %v597
    %v2069 = vunpack.c.h.b16 %v597
    %v2070 = vunpack.c.l.b16 %v598
    %v2071 = vunpack.c.h.b16 %v598
    %v2072 = vunpack.c.l.b16 %v599
    %v2073 = vunpack.c.h.b16 %v599
    %v2074 = vunpack.c.l.b16 %v600
    %v2075 = vunpack.c.h.b16 %v600
    %v2076 = vunpack.c.l.b16 %v601
    %v2077 = vunpack.c.h.b16 %v601
    %v2078 = vunpack.c.l.b16 %v602
    %v2079 = vunpack.c.h.b16 %v602
    %v2080 = vunpack.c.l.b16 %v603
    %v2081 = vunpack.c.h.b16 %v603
    %v2082 = vunpack.c.l.b16 %v604
    %v2083 = vunpack.c.h.b16 %v604
    %v2084 = vunpack.c.l.b16 %v605
    %v2085 = vunpack.c.h.b16 %v605
    %v2086 = vunpack.c.l.b16 %v606
    %v2087 = vunpack.c.h.b16 %v606
    %v2088 = vunpack.c.l.b16 %v607
    %v2089 = vunpack.c.h.b16 %v607
    %v2090 = vunpack.c.l.b16 %v608
    %v2091 = vunpack.c.h.b16 %v608
    %v2092 = vunpack.c.l.b16 %v609
    %v2093 = vunpack.c.h.b16 %v609
    %v2094 = vunpack.c.l.b16 %v610
    %v2095 = vunpack.c.h.b16 %v610
    %v2096 = vunpack.c.l.b16 %v611
    %v2097 = vunpack.c.h.b16 %v611
    %v2098 = vunpack.c.l.b16 %v612
    %v2099 = vunpack.c.h.b16 %v612
    %v2100 = vunpack.c.l.b16 %v613
    %v2101 = vunpack.c.h.b16 %v613
    %v2102 = vunpack.c.l.b16 %v614
    %v2103 = vunpack.c.h.b16 %v614
    %v2104 = vunpack.c.l.b16 %v615
    %v2105 = vunpack.c.h.b16 %v615
    %v2106 = vunpack.c.l.b16 %v616
    %v2107 = vunpack.c.h.b16 %v616
    %v2108 = vunpack.c.l.b16 %v617
    %v2109 = vunpack.c.h.b16 %v617
    %v2110 = vunpack.c.l.b16 %v618
    %v2111 = vunpack.c.h.b16 %v618
    %v2112 = vunpack.c.l.b16 %v619
    %v2113 = vunpack.c.h.b16 %v619
    %v2114 = vunpack.c.l.b16 %v620
    %v2115 = vunpack.c.h.b16 %v620
    %v2116 = vunpack.c.l.b16 %v621
    %v2117 = vunpack.c.h.b16 %v621
    %v2118 = vunpack.c.l.b16 %v622
    %v2119 = vunpack.c.h.b16 %v622
    %v2120 = vunpack.c.l.b16 %v623
    %v2121 = vunpack.c.h.b16 %v623
    %v2122 = vunpack.c.l.b16 %v624
    %v2123 = vunpack.c.h.b16 %v624
    %v2124 = vunpack.c.l.b16 %v625
    %v2125 = vunpack.c.h.b16 %v625
    %v2126 = vunpack.c.l.b16 %v626
    %v2127 = vunpack.c.h.b16 %v626
    %v2128 = vunpack.c.l.b16 %v627
    %v2129 = vunpack.c.h.b16 %v627
    %v2130 = vunpack.c.l.b16 %v628
    %v2131 = vunpack.c.h.b16 %v628
    %v2132 = vunpack.c.l.b16 %v629
    %v2133 = vunpack.c.h.b16 %v629
    %v2134 = vunpack.c.l.b16 %v630
    %v2135 = vunpack.c.h.b16 %v630
    %v2136 = vunpack.c.l.b16 %v631
    %v2137 = vunpack.c.h.b16 %v631
    %v2138 = vunpack.c.l.b16 %v632
    %v2139 = vunpack.c.h.b16 %v632
    %v2140 = vunpack.c.l.b16 %v633
    %v2141 = vunpack.c.h.b16 %v633
    %v2142 = vunpack.c.l.b16 %v634
    %v2143 = vunpack.c.h.b16 %v634
    %v2144 = vunpack.c.l.b16 %v635
    %v2145 = vunpack.c.h.b16 %v635
    %v2146 = vunpack.c.l.b16 %v636
    %v2147 = vunpack.c.h.b16 %v636
    %v2148 = vunpack.c.l.b16 %v637
    %v2149 = vunpack.c.h.b16 %v637
    %v2150 = vunpack.c.l.b16 %v638
    %v2151 = vunpack.c.h.b16 %v638
    %v2152 = vunpack.c.l.b16 %v639
    %v2153 = vunpack.c.h.b16 %v639
    %v2154 = vunpack.c.l.b16 %v640
    %v2155 = vunpack.c.h.b16 %v640
    %v2156 = vunpack.c.l.b16 %v641
    %v2157 = vunpack.c.h.b16 %v641
    %v2158 = vunpack.c.l.b16 %v642
    %v2159 = vunpack.c.h.b16 %v642
    %v2160 = vunpack.c.l.b16 %v643
    %v2161 = vunpack.c.h.b16 %v643
    %v2162 = vunpack.c.l.b16 %v644
    %v2163 = vunpack.c.h.b16 %v644
    %v2164 = vunpack.c.l.b16 %v645
    %v2165 = vunpack.c.h.b16 %v645
    %v2166 = vunpack.c.l.b16 %v646
    %v2167 = vunpack.c.h.b16 %v646
    %v2168 = vunpack.c.l.b16 %v647
    %v2169 = vunpack.c.h.b16 %v647
    %v2170 = vunpack.c.l.b16 %v648
    %v2171 = vunpack.c.h.b16 %v648
    %v2172 = vunpack.c.l.b16 %v649
    %v2173 = vunpack.c.h.b16 %v649
    %v2174 = vunpack.c.l.b16 %v650
    %v2175 = vunpack.c.h.b16 %v650
    %v2176 = vunpack.c.l.b16 %v651
    %v2177 = vunpack.c.h.b16 %v651
    %v2178 = vunpack.c.l.b16 %v652
    %v2179 = vunpack.c.h.b16 %v652
    %v2180 = vunpack.c.l.b16 %v653
    %v2181 = vunpack.c.h.b16 %v653
    %v2182 = vunpack.c.l.b16 %v654
    %v2183 = vunpack.c.h.b16 %v654
    %v2184 = vunpack.c.l.b16 %v655
    %v2185 = vunpack.c.h.b16 %v655
    %v2186 = vunpack.c.l.b16 %v656
    %v2187 = vunpack.c.h.b16 %v656
    %v2188 = vunpack.c.l.b16 %v657
    %v2189 = vunpack.c.h.b16 %v657
    %v2190 = vunpack.c.l.b16 %v658
    %v2191 = vunpack.c.h.b16 %v658
    %v2192 = vunpack.c.l.b16 %v659
    %v2193 = vunpack.c.h.b16 %v659
    %v2194 = vunpack.c.l.b16 %v660
    %v2195 = vunpack.c.h.b16 %v660
    %v2196 = vunpack.c.l.b16 %v661
    %v2197 = vunpack.c.h.b16 %v661
    %v2198 = vunpack.c.l.b16 %v662
    %v2199 = vunpack.c.h.b16 %v662
    %v2200 = vunpack.c.l.b16 %v663
    %v2201 = vunpack.c.h.b16 %v663
    %v2202 = vunpack.c.l.b16 %v664
    %v2203 = vunpack.c.h.b16 %v664
    %v2204 = vunpack.c.l.b16 %v665
    %v2205 = vunpack.c.h.b16 %v665
    %v2206 = vunpack.c.l.b16 %v666
    %v2207 = vunpack.c.h.b16 %v666
    %v2208 = vunpack.c.l.b16 %v667
    %v2209 = vunpack.c.h.b16 %v667
    %v2210 = vunpack.c.l.b16 %v668
    %v2211 = vunpack.c.h.b16 %v668
    %v2212 = vunpack.c.l.b16 %v669
    %v2213 = vunpack.c.h.b16 %v669
    %v2214 = vunpack.c.l.b16 %v670
    %v2215 = vunpack.c.h.b16 %v670
    %v2216 = vunpack.c.l.b16 %v671
    %v2217 = vunpack.c.h.b16 %v671
    %v2218 = vunpack.c.l.b16 %v672
    %v2219 = vunpack.c.h.b16 %v672
    %v2220 = vunpack.c.l.b16 %v673
    %v2221 = vunpack.c.h.b16 %v673
    %v2222 = vunpack.c.l.b16 %v674
    %v2223 = vunpack.c.h.b16 %v674
    %v2224 = vunpack.c.l.b16 %v675
    %v2225 = vunpack.c.h.b16 %v675
    %v2226 = vunpack.c.l.b16 %v676
    %v2227 = vunpack.c.h.b16 %v676
    %v2228 = vunpack.c.l.b16 %v677
    %v2229 = vunpack.c.h.b16 %v677
    %v2230 = vunpack.c.l.b16 %v678
    %v2231 = vunpack.c.h.b16 %v678
    %v2232 = vunpack.c.l.b16 %v679
    %v2233 = vunpack.c.h.b16 %v679
    %v2234 = vunpack.c.l.b16 %v680
    %v2235 = vunpack.c.h.b16 %v680
    %v2236 = vunpack.c.l.b16 %v681
    %v2237 = vunpack.c.h.b16 %v681
    %v2238 = vunpack.c.l.b16 %v682
    %v2239 = vunpack.c.h.b16 %v682
    %v2240 = vunpack.c.l.b16 %v683
    %v2241 = vunpack.c.h.b16 %v683
    %v2242 = vunpack.c.l.b16 %v684
    %v2243 = vunpack.c.h.b16 %v684
    %v2244 = vunpack.c.l.b16 %v685
    %v2245 = vunpack.c.h.b16 %v685
    %v2246 = vunpack.c.l.b16 %v686
    %v2247 = vunpack.c.h.b16 %v686
    %v2248 = vunpack.c.l.b16 %v687
    %v2249 = vunpack.c.h.b16 %v687
    %v2250 = vunpack.c.l.b16 %v688
    %v2251 = vunpack.c.h.b16 %v688
    %v2252 = vunpack.c.l.b16 %v689
    %v2253 = vunpack.c.h.b16 %v689
    %v2254 = vunpack.c.l.b16 %v690
    %v2255 = vunpack.c.h.b16 %v690
    %v2256 = vunpack.c.l.b16 %v691
    %v2257 = vunpack.c.h.b16 %v691
    %v2258 = vunpack.c.l.b16 %v692
    %v2259 = vunpack.c.h.b16 %v692
    %v2260 = vunpack.c.l.b16 %v693
    %v2261 = vunpack.c.h.b16 %v693
    %v2262 = vunpack.c.l.b16 %v694
    %v2263 = vunpack.c.h.b16 %v694
    %v2264 = vunpack.c.l.b16 %v695
    %v2265 = vunpack.c.h.b16 %v695
    %v2266 = vunpack.c.l.b16 %v696
    %v2267 = vunpack.c.h.b16 %v696
    %v2268 = vunpack.c.l.b16 %v697
    %v2269 = vunpack.c.h.b16 %v697
    %v2270 = vunpack.c.l.b16 %v698
    %v2271 = vunpack.c.h.b16 %v698
    %v2272 = vunpack.c.l.b16 %v699
    %v2273 = vunpack.c.h.b16 %v699
    %v2274 = vunpack.c.l.b16 %v700
    %v2275 = vunpack.c.h.b16 %v700
    %v2276 = vunpack.c.l.b16 %v701
    %v2277 = vunpack.c.h.b16 %v701
    %v2278 = vunpack.c.l.b16 %v702
    %v2279 = vunpack.c.h.b16 %v702
    %v2280 = vunpack.c.l.b16 %v703
    %v2281 = vunpack.c.h.b16 %v703
    %v2282 = vpack.c.b16 %v1266, %v1258
    %v2283 = vpack.c.b16 %v1267, %v1259
    %v2284 = vpack.c.b16 %v1268, %v1260
    %v2285 = vpack.c.b16 %v1269, %v1261
    %v2286 = vpack.c.b16 %v1270, %v1262
    %v2287 = vpack.c.b16 %v1271, %v1263
    %v2288 = vpack.c.b16 %v1272, %v1264
    %v2289 = vpack.c.b16 %v1273, %v1265
    %v2290 = vpack.c.b16 %v1282, %v1274
    %v2291 = vpack.c.b16 %v1283, %v1275
    %v2292 = vpack.c.b16 %v1284, %v1276
    %v2293 = vpack.c.b16 %v1285, %v1277
    %v2294 = vpack.c.b16 %v1286, %v1278
    %v2295 = vpack.c.b16 %v1287, %v1279
    %v2296 = vpack.c.b16 %v1288, %v1280
    %v2297 = vpack.c.b16 %v1289, %v1281
    %v2298 = vpack.c.b16 %v1298, %v1290
    %v2299 = vpack.c.b16 %v1299, %v1291
    %v2300 = vpack.c.b16 %v1300, %v1292
    %v2301 = vpack.c.b16 %v1301, %v1293
    %v2302 = vpack.c.b16 %v1302, %v1294
    %v2303 = vpack.c.b16 %v1303, %v1295
    %v2304 = vpack.c.b16 %v1304, %v1296
    %v2305 = vpack.c.b16 %v1305, %v1297
    %v2306 = vpack.c.b16 %v1314, %v1306
    %v2307 = vpack.c.b16 %v1315, %v1307
    %v2308 = vpack.c.b16 %v1316, %v1308
    %v2309 = vpack.c.b16 %v1317, %v1309
    %v2310 = vpack.c.b16 %v1318, %v1310
    %v2311 = vpack.c.b16 %v1319, %v1311
    %v2312 = vpack.c.b16 %v1320, %v1312
    %v2313 = vpack.c.b16 %v1321, %v1313
    %v2314 = vpack.c.b16 %v1330, %v1322
    %v2315 = vpack.c.b16 %v1331, %v1323
    %v2316 = vpack.c.b16 %v1332, %v1324
    %v2317 = vpack.c.b16 %v1333, %v1325
    %v2318 = vpack.c.b16 %v1334, %v1326
    %v2319 = vpack.c.b16 %v1335, %v1327
    %v2320 = vpack.c.b16 %v1336, %v1328
    %v2321 = vpack.c.b16 %v1337, %v1329
    %v2322 = vpack.c.b16 %v1346, %v1338
    %v2323 = vpack.c.b16 %v1347, %v1339
    %v2324 = vpack.c.b16 %v1348, %v1340
    %v2325 = vpack.c.b16 %v1349, %v1341
    %v2326 = vpack.c.b16 %v1350, %v1342
    %v2327 = vpack.c.b16 %v1351, %v1343
    %v2328 = vpack.c.b16 %v1352, %v1344
    %v2329 = vpack.c.b16 %v1353, %v1345
    %v2330 = vpack.c.b16 %v1362, %v1354
    %v2331 = vpack.c.b16 %v1363, %v1355
    %v2332 = vpack.c.b16 %v1364, %v1356
    %v2333 = vpack.c.b16 %v1365, %v1357
    %v2334 = vpack.c.b16 %v1366, %v1358
    %v2335 = vpack.c.b16 %v1367, %v1359
    %v2336 = vpack.c.b16 %v1368, %v1360
    %v2337 = vpack.c.b16 %v1369, %v1361
    %v2338 = vpack.c.b16 %v1378, %v1370
    %v2339 = vpack.c.b16 %v1379, %v1371
    %v2340 = vpack.c.b16 %v1380, %v1372
    %v2341 = vpack.c.b16 %v1381, %v1373
    %v2342 = vpack.c.b16 %v1382, %v1374
    %v2343 = vpack.c.b16 %v1383, %v1375
    %v2344 = vpack.c.b16 %v1384, %v1376
    %v2345 = vpack.c.b16 %v1385, %v1377
    %v2346 = vpack.c.b16 %v1394, %v1386
    %v2347 = vpack.c.b16 %v1395, %v1387
    %v2348 = vpack.c.b16 %v1396, %v1388
    %v2349 = vpack.c.b16 %v1397, %v1389
    %v2350 = vpack.c.b16 %v1398, %v1390
    %v2351 = vpack.c.b16 %v1399, %v1391
    %v2352 = vpack.c.b16 %v1400, %v1392
    %v2353 = vpack.c.b16 %v1401, %v1393
    %v2354 = vpack.c.b16 %v1410, %v1402
    %v2355 = vpack.c.b16 %v1411, %v1403
    %v2356 = vpack.c.b16 %v1412, %v1404
    %v2357 = vpack.c.b16 %v1413, %v1405
    %v2358 = vpack.c.b16 %v1414, %v1406
    %v2359 = vpack.c.b16 %v1415, %v1407
    %v2360 = vpack.c.b16 %v1416, %v1408
    %v2361 = vpack.c.b16 %v1417, %v1409
    %v2362 = vpack.c.b16 %v1426, %v1418
    %v2363 = vpack.c.b16 %v1427, %v1419
    %v2364 = vpack.c.b16 %v1428, %v1420
    %v2365 = vpack.c.b16 %v1429, %v1421
    %v2366 = vpack.c.b16 %v1430, %v1422
    %v2367 = vpack.c.b16 %v1431, %v1423
    %v2368 = vpack.c.b16 %v1432, %v1424
    %v2369 = vpack.c.b16 %v1433, %v1425
    %v2370 = vpack.c.b16 %v1442, %v1434
    %v2371 = vpack.c.b16 %v1443, %v1435
    %v2372 = vpack.c.b16 %v1444, %v1436
    %v2373 = vpack.c.b16 %v1445, %v1437
    %v2374 = vpack.c.b16 %v1446, %v1438
    %v2375 = vpack.c.b16 %v1447, %v1439
    %v2376 = vpack.c.b16 %v1448, %v1440
    %v2377 = vpack.c.b16 %v1449, %v1441
    %v2378 = vpack.c.b16 %v1458, %v1450
    %v2379 = vpack.c.b16 %v1459, %v1451
    %v2380 = vpack.c.b16 %v1460, %v1452
    %v2381 = vpack.c.b16 %v1461, %v1453
    %v2382 = vpack.c.b16 %v1462, %v1454
    %v2383 = vpack.c.b16 %v1463, %v1455
    %v2384 = vpack.c.b16 %v1464, %v1456
    %v2385 = vpack.c.b16 %v1465, %v1457
    %v2386 = vpack.c.b16 %v1474, %v1466
    %v2387 = vpack.c.b16 %v1475, %v1467
    %v2388 = vpack.c.b16 %v1476, %v1468
    %v2389 = vpack.c.b16 %v1477, %v1469
    %v2390 = vpack.c.b16 %v1478, %v1470
    %v2391 = vpack.c.b16 %v1479, %v1471
    %v2392 = vpack.c.b16 %v1480, %v1472
    %v2393 = vpack.c.b16 %v1481, %v1473
    %v2394 = vpack.c.b16 %v1490, %v1482
    %v2395 = vpack.c.b16 %v1491, %v1483
    %v2396 = vpack.c.b16 %v1492, %v1484
    %v2397 = vpack.c.b16 %v1493, %v1485
    %v2398 = vpack.c.b16 %v1494, %v1486
    %v2399 = vpack.c.b16 %v1495, %v1487
    %v2400 = vpack.c.b16 %v1496, %v1488
    %v2401 = vpack.c.b16 %v1497, %v1489
    %v2402 = vpack.c.b16 %v1506, %v1498
    %v2403 = vpack.c.b16 %v1507, %v1499
    %v2404 = vpack.c.b16 %v1508, %v1500
    %v2405 = vpack.c.b16 %v1509, %v1501
    %v2406 = vpack.c.b16 %v1510, %v1502
    %v2407 = vpack.c.b16 %v1511, %v1503
    %v2408 = vpack.c.b16 %v1512, %v1504
    %v2409 = vpack.c.b16 %v1513, %v1505
    %v2410 = vpack.c.b16 %v1522, %v1514
    %v2411 = vpack.c.b16 %v1523, %v1515
    %v2412 = vpack.c.b16 %v1524, %v1516
    %v2413 = vpack.c.b16 %v1525, %v1517
    %v2414 = vpack.c.b16 %v1526, %v1518
    %v2415 = vpack.c.b16 %v1527, %v1519
    %v2416 = vpack.c.b16 %v1528, %v1520
    %v2417 = vpack.c.b16 %v1529, %v1521
    %v2418 = vpack.c.b16 %v1538, %v1530
    %v2419 = vpack.c.b16 %v1539, %v1531
    %v2420 = vpack.c.b16 %v1540, %v1532
    %v2421 = vpack.c.b16 %v1541, %v1533
    %v2422 = vpack.c.b16 %v1542, %v1534
    %v2423 = vpack.c.b16 %v1543, %v1535
    %v2424 = vpack.c.b16 %v1544, %v1536
    %v2425 = vpack.c.b16 %v1545, %v1537
    %v2426 = vpack.c.b16 %v1554, %v1546
    %v2427 = vpack.c.b16 %v1555, %v1547
    %v2428 = vpack.c.b16 %v1556, %v1548
    %v2429 = vpack.c.b16 %v1557, %v1549
    %v2430 = vpack.c.b16 %v1558, %v1550
    %v2431 = vpack.c.b16 %v1559, %v1551
    %v2432 = vpack.c.b16 %v1560, %v1552
    %v2433 = vpack.c.b16 %v1561, %v1553
    %v2434 = vpack.c.b16 %v1570, %v1562
    %v2435 = vpack.c.b16 %v1571, %v1563
    %v2436 = vpack.c.b16 %v1572, %v1564
    %v2437 = vpack.c.b16 %v1573, %v1565
    %v2438 = vpack.c.b16 %v1574, %v1566
    %v2439 = vpack.c.b16 %v1575, %v1567
    %v2440 = vpack.c.b16 %v1576, %v1568
    %v2441 = vpack.c.b16 %v1577, %v1569
    %v2442 = vpack.c.b16 %v1586, %v1578
    %v2443 = vpack.c.b16 %v1587, %v1579
    %v2444 = vpack.c.b16 %v1588, %v1580
    %v2445 = vpack.c.b16 %v1589, %v1581
    %v2446 = vpack.c.b16 %v1590, %v1582
    %v2447 = vpack.c.b16 %v1591, %v1583
    %v2448 = vpack.c.b16 %v1592, %v1584
    %v2449 = vpack.c.b16 %v1593, %v1585
    %v2450 = vpack.c.b16 %v1602, %v1594
    %v2451 = vpack.c.b16 %v1603, %v1595
    %v2452 = vpack.c.b16 %v1604, %v1596
    %v2453 = vpack.c.b16 %v1605, %v1597
    %v2454 = vpack.c.b16 %v1606, %v1598
    %v2455 = vpack.c.b16 %v1607, %v1599
    %v2456 = vpack.c.b16 %v1608, %v1600
    %v2457 = vpack.c.b16 %v1609, %v1601
    %v2458 = vpack.c.b16 %v1618, %v1610
    %v2459 = vpack.c.b16 %v1619, %v1611
    %v2460 = vpack.c.b16 %v1620, %v1612
    %v2461 = vpack.c.b16 %v1621, %v1613
    %v2462 = vpack.c.b16 %v1622, %v1614
    %v2463 = vpack.c.b16 %v1623, %v1615
    %v2464 = vpack.c.b16 %v1624, %v1616
    %v2465 = vpack.c.b16 %v1625, %v1617
    %v2466 = vpack.c.b16 %v1634, %v1626
    %v2467 = vpack.c.b16 %v1635, %v1627
    %v2468 = vpack.c.b16 %v1636, %v1628
    %v2469 = vpack.c.b16 %v1637, %v1629
    %v2470 = vpack.c.b16 %v1638, %v1630
    %v2471 = vpack.c.b16 %v1639, %v1631
    %v2472 = vpack.c.b16 %v1640, %v1632
    %v2473 = vpack.c.b16 %v1641, %v1633
    %v2474 = vpack.c.b16 %v1650, %v1642
    %v2475 = vpack.c.b16 %v1651, %v1643
    %v2476 = vpack.c.b16 %v1652, %v1644
    %v2477 = vpack.c.b16 %v1653, %v1645
    %v2478 = vpack.c.b16 %v1654, %v1646
    %v2479 = vpack.c.b16 %v1655, %v1647
    %v2480 = vpack.c.b16 %v1656, %v1648
    %v2481 = vpack.c.b16 %v1657, %v1649
    %v2482 = vpack.c.b16 %v1666, %v1658
    %v2483 = vpack.c.b16 %v1667, %v1659
    %v2484 = vpack.c.b16 %v1668, %v1660
    %v2485 = vpack.c.b16 %v1669, %v1661
    %v2486 = vpack.c.b16 %v1670, %v1662
    %v2487 = vpack.c.b16 %v1671, %v1663
    %v2488 = vpack.c.b16 %v1672, %v1664
    %v2489 = vpack.c.b16 %v1673, %v1665
    %v2490 = vpack.c.b16 %v1682, %v1674
    %v2491 = vpack.c.b16 %v1683, %v1675
    %v2492 = vpack.c.b16 %v1684, %v1676
    %v2493 = vpack.c.b16 %v1685, %v1677
    %v2494 = vpack.c.b16 %v1686, %v1678
    %v2495 = vpack.c.b16 %v1687, %v1679
    %v2496 = vpack.c.b16 %v1688, %v1680
    %v2497 = vpack.c.b16 %v1689, %v1681
    %v2498 = vpack.c.b16 %v1698, %v1690
    %v2499 = vpack.c.b16 %v1699, %v1691
    %v2500 = vpack.c.b16 %v1700, %v1692
    %v2501 = vpack.c.b16 %v1701, %v1693
    %v2502 = vpack.c.b16 %v1702, %v1694
    %v2503 = vpack.c.b16 %v1703, %v1695
    %v2504 = vpack.c.b16 %v1704, %v1696
    %v2505 = vpack.c.b16 %v1705, %v1697
    %v2506 = vpack.c.b16 %v1714, %v1706
    %v2507 = vpack.c.b16 %v1715, %v1707
    %v2508 = vpack.c.b16 %v1716, %v1708
    %v2509 = vpack.c.b16 %v1717, %v1709
    %v2510 = vpack.c.b16 %v1718, %v1710
    %v2511 = vpack.c.b16 %v1719, %v1711
    %v2512 = vpack.c.b16 %v1720, %v1712
    %v2513 = vpack.c.b16 %v1721, %v1713
    %v2514 = vpack.c.b16 %v1730, %v1722
    %v2515 = vpack.c.b16 %v1731, %v1723
    %v2516 = vpack.c.b16 %v1732, %v1724
    %v2517 = vpack.c.b16 %v1733, %v1725
    %v2518 = vpack.c.b16 %v1734, %v1726
    %v2519 = vpack.c.b16 %v1735, %v1727
    %v2520 = vpack.c.b16 %v1736, %v1728
    %v2521 = vpack.c.b16 %v1737, %v1729
    %v2522 = vpack.c.b16 %v1746, %v1738
    %v2523 = vpack.c.b16 %v1747, %v1739
    %v2524 = vpack.c.b16 %v1748, %v1740
    %v2525 = vpack.c.b16 %v1749, %v1741
    %v2526 = vpack.c.b16 %v1750, %v1742
    %v2527 = vpack.c.b16 %v1751, %v1743
    %v2528 = vpack.c.b16 %v1752, %v1744
    %v2529 = vpack.c.b16 %v1753, %v1745
    %v2530 = vpack.c.b16 %v1762, %v1754
    %v2531 = vpack.c.b16 %v1763, %v1755
    %v2532 = vpack.c.b16 %v1764, %v1756
    %v2533 = vpack.c.b16 %v1765, %v1757
    %v2534 = vpack.c.b16 %v1766, %v1758
    %v2535 = vpack.c.b16 %v1767, %v1759
    %v2536 = vpack.c.b16 %v1768, %v1760
    %v2537 = vpack.c.b16 %v1769, %v1761
    %v2538 = vpack.c.b16 %v1778, %v1770
    %v2539 = vpack.c.b16 %v1779, %v1771
    %v2540 = vpack.c.b16 %v1780, %v1772
    %v2541 = vpack.c.b16 %v1781, %v1773
    %v2542 = vpack.c.b16 %v1782, %v1774
    %v2543 = vpack.c.b16 %v1783, %v1775
    %v2544 = vpack.c.b16 %v1784, %v1776
    %v2545 = vpack.c.b16 %v1785, %v1777
    %v2546 = vpack.c.b16 %v1794, %v1786
    %v2547 = vpack.c.b16 %v1795, %v1787
    %v2548 = vpack.c.b16 %v1796, %v1788
    %v2549 = vpack.c.b16 %v1797, %v1789
    %v2550 = vpack.c.b16 %v1798, %v1790
    %v2551 = vpack.c.b16 %v1799, %v1791
    %v2552 = vpack.c.b16 %v1800, %v1792
    %v2553 = vpack.c.b16 %v1801, %v1793
    %v2554 = vpack.c.b16 %v1810, %v1802
    %v2555 = vpack.c.b16 %v1811, %v1803
    %v2556 = vpack.c.b16 %v1812, %v1804
    %v2557 = vpack.c.b16 %v1813, %v1805
    %v2558 = vpack.c.b16 %v1814, %v1806
    %v2559 = vpack.c.b16 %v1815, %v1807
    %v2560 = vpack.c.b16 %v1816, %v1808
    %v2561 = vpack.c.b16 %v1817, %v1809
    %v2562 = vpack.c.b16 %v1826, %v1818
    %v2563 = vpack.c.b16 %v1827, %v1819
    %v2564 = vpack.c.b16 %v1828, %v1820
    %v2565 = vpack.c.b16 %v1829, %v1821
    %v2566 = vpack.c.b16 %v1830, %v1822
    %v2567 = vpack.c.b16 %v1831, %v1823
    %v2568 = vpack.c.b16 %v1832, %v1824
    %v2569 = vpack.c.b16 %v1833, %v1825
    %v2570 = vpack.c.b16 %v1842, %v1834
    %v2571 = vpack.c.b16 %v1843, %v1835
    %v2572 = vpack.c.b16 %v1844, %v1836
    %v2573 = vpack.c.b16 %v1845, %v1837
    %v2574 = vpack.c.b16 %v1846, %v1838
    %v2575 = vpack.c.b16 %v1847, %v1839
    %v2576 = vpack.c.b16 %v1848, %v1840
    %v2577 = vpack.c.b16 %v1849, %v1841
    %v2578 = vpack.c.b16 %v1858, %v1850
    %v2579 = vpack.c.b16 %v1859, %v1851
    %v2580 = vpack.c.b16 %v1860, %v1852
    %v2581 = vpack.c.b16 %v1861, %v1853
    %v2582 = vpack.c.b16 %v1862, %v1854
    %v2583 = vpack.c.b16 %v1863, %v1855
    %v2584 = vpack.c.b16 %v1864, %v1856
    %v2585 = vpack.c.b16 %v1865, %v1857
    %v2586 = vpack.c.b16 %v1874, %v1866
    %v2587 = vpack.c.b16 %v1875, %v1867
    %v2588 = vpack.c.b16 %v1876, %v1868
    %v2589 = vpack.c.b16 %v1877, %v1869
    %v2590 = vpack.c.b16 %v1878, %v1870
    %v2591 = vpack.c.b16 %v1879, %v1871
    %v2592 = vpack.c.b16 %v1880, %v1872
    %v2593 = vpack.c.b16 %v1881, %v1873
    %v2594 = vpack.c.b16 %v1890, %v1882
    %v2595 = vpack.c.b16 %v1891, %v1883
    %v2596 = vpack.c.b16 %v1892, %v1884
    %v2597 = vpack.c.b16 %v1893, %v1885
    %v2598 = vpack.c.b16 %v1894, %v1886
    %v2599 = vpack.c.b16 %v1895, %v1887
    %v2600 = vpack.c.b16 %v1896, %v1888
    %v2601 = vpack.c.b16 %v1897, %v1889
    %v2602 = vpack.c.b16 %v1906, %v1898
    %v2603 = vpack.c.b16 %v1907, %v1899
    %v2604 = vpack.c.b16 %v1908, %v1900
    %v2605 = vpack.c.b16 %v1909, %v1901
    %v2606 = vpack.c.b16 %v1910, %v1902
    %v2607 = vpack.c.b16 %v1911, %v1903
    %v2608 = vpack.c.b16 %v1912, %v1904
    %v2609 = vpack.c.b16 %v1913, %v1905
    %v2610 = vpack.c.b16 %v1922, %v1914
    %v2611 = vpack.c.b16 %v1923, %v1915
    %v2612 = vpack.c.b16 %v1924, %v1916
    %v2613 = vpack.c.b16 %v1925, %v1917
    %v2614 = vpack.c.b16 %v1926, %v1918
    %v2615 = vpack.c.b16 %v1927, %v1919
    %v2616 = vpack.c.b16 %v1928, %v1920
    %v2617 = vpack.c.b16 %v1929, %v1921
    %v2618 = vpack.c.b16 %v1938, %v1930
    %v2619 = vpack.c.b16 %v1939, %v1931
    %v2620 = vpack.c.b16 %v1940, %v1932
    %v2621 = vpack.c.b16 %v1941, %v1933
    %v2622 = vpack.c.b16 %v1942, %v1934
    %v2623 = vpack.c.b16 %v1943, %v1935
    %v2624 = vpack.c.b16 %v1944, %v1936
    %v2625 = vpack.c.b16 %v1945, %v1937
    %v2626 = vpack.c.b16 %v1954, %v1946
    %v2627 = vpack.c.b16 %v1955, %v1947
    %v2628 = vpack.c.b16 %v1956, %v1948
    %v2629 = vpack.c.b16 %v1957, %v1949
    %v2630 = vpack.c.b16 %v1958, %v1950
    %v2631 = vpack.c.b16 %v1959, %v1951
    %v2632 = vpack.c.b16 %v1960, %v1952
    %v2633 = vpack.c.b16 %v1961, %v1953
    %v2634 = vpack.c.b16 %v1970, %v1962
    %v2635 = vpack.c.b16 %v1971, %v1963
    %v2636 = vpack.c.b16 %v1972, %v1964
    %v2637 = vpack.c.b16 %v1973, %v1965
    %v2638 = vpack.c.b16 %v1974, %v1966
    %v2639 = vpack.c.b16 %v1975, %v1967
    %v2640 = vpack.c.b16 %v1976, %v1968
    %v2641 = vpack.c.b16 %v1977, %v1969
    %v2642 = vpack.c.b16 %v1986, %v1978
    %v2643 = vpack.c.b16 %v1987, %v1979
    %v2644 = vpack.c.b16 %v1988, %v1980
    %v2645 = vpack.c.b16 %v1989, %v1981
    %v2646 = vpack.c.b16 %v1990, %v1982
    %v2647 = vpack.c.b16 %v1991, %v1983
    %v2648 = vpack.c.b16 %v1992, %v1984
    %v2649 = vpack.c.b16 %v1993, %v1985
    %v2650 = vpack.c.b16 %v2002, %v1994
    %v2651 = vpack.c.b16 %v2003, %v1995
    %v2652 = vpack.c.b16 %v2004, %v1996
    %v2653 = vpack.c.b16 %v2005, %v1997
    %v2654 = vpack.c.b16 %v2006, %v1998
    %v2655 = vpack.c.b16 %v2007, %v1999
    %v2656 = vpack.c.b16 %v2008, %v2000
    %v2657 = vpack.c.b16 %v2009, %v2001
    %v2658 = vpack.c.b16 %v2018, %v2010
    %v2659 = vpack.c.b16 %v2019, %v2011
    %v2660 = vpack.c.b16 %v2020, %v2012
    %v2661 = vpack.c.b16 %v2021, %v2013
    %v2662 = vpack.c.b16 %v2022, %v2014
    %v2663 = vpack.c.b16 %v2023, %v2015
    %v2664 = vpack.c.b16 %v2024, %v2016
    %v2665 = vpack.c.b16 %v2025, %v2017
    %v2666 = vpack.c.b16 %v2034, %v2026
    %v2667 = vpack.c.b16 %v2035, %v2027
    %v2668 = vpack.c.b16 %v2036, %v2028
    %v2669 = vpack.c.b16 %v2037, %v2029
    %v2670 = vpack.c.b16 %v2038, %v2030
    %v2671 = vpack.c.b16 %v2039, %v2031
    %v2672 = vpack.c.b16 %v2040, %v2032
    %v2673 = vpack.c.b16 %v2041, %v2033
    %v2674 = vpack.c.b16 %v2050, %v2042
    %v2675 = vpack.c.b16 %v2051, %v2043
    %v2676 = vpack.c.b16 %v2052, %v2044
    %v2677 = vpack.c.b16 %v2053, %v2045
    %v2678 = vpack.c.b16 %v2054, %v2046
    %v2679 = vpack.c.b16 %v2055, %v2047
    %v2680 = vpack.c.b16 %v2056, %v2048
    %v2681 = vpack.c.b16 %v2057, %v2049
    %v2682 = vpack.c.b16 %v2066, %v2058
    %v2683 = vpack.c.b16 %v2067, %v2059
    %v2684 = vpack.c.b16 %v2068, %v2060
    %v2685 = vpack.c.b16 %v2069, %v2061
    %v2686 = vpack.c.b16 %v2070, %v2062
    %v2687 = vpack.c.b16 %v2071, %v2063
    %v2688 = vpack.c.b16 %v2072, %v2064
    %v2689 = vpack.c.b16 %v2073, %v2065
    %v2690 = vpack.c.b16 %v2082, %v2074
    %v2691 = vpack.c.b16 %v2083, %v2075
    %v2692 = vpack.c.b16 %v2084, %v2076
    %v2693 = vpack.c.b16 %v2085, %v2077
    %v2694 = vpack.c.b16 %v2086, %v2078
    %v2695 = vpack.c.b16 %v2087, %v2079
    %v2696 = vpack.c.b16 %v2088, %v2080
    %v2697 = vpack.c.b16 %v2089, %v2081
    %v2698 = vpack.c.b16 %v2098, %v2090
    %v2699 = vpack.c.b16 %v2099, %v2091
    %v2700 = vpack.c.b16 %v2100, %v2092
    %v2701 = vpack.c.b16 %v2101, %v2093
    %v2702 = vpack.c.b16 %v2102, %v2094
    %v2703 = vpack.c.b16 %v2103, %v2095
    %v2704 = vpack.c.b16 %v2104, %v2096
    %v2705 = vpack.c.b16 %v2105, %v2097
    %v2706 = vpack.c.b16 %v2114, %v2106
    %v2707 = vpack.c.b16 %v2115, %v2107
    %v2708 = vpack.c.b16 %v2116, %v2108
    %v2709 = vpack.c.b16 %v2117, %v2109
    %v2710 = vpack.c.b16 %v2118, %v2110
    %v2711 = vpack.c.b16 %v2119, %v2111
    %v2712 = vpack.c.b16 %v2120, %v2112
    %v2713 = vpack.c.b16 %v2121, %v2113
    %v2714 = vpack.c.b16 %v2130, %v2122
    %v2715 = vpack.c.b16 %v2131, %v2123
    %v2716 = vpack.c.b16 %v2132, %v2124
    %v2717 = vpack.c.b16 %v2133, %v2125
    %v2718 = vpack.c.b16 %v2134, %v2126
    %v2719 = vpack.c.b16 %v2135, %v2127
    %v2720 = vpack.c.b16 %v2136, %v2128
    %v2721 = vpack.c.b16 %v2137, %v2129
    %v2722 = vpack.c.b16 %v2146, %v2138
    %v2723 = vpack.c.b16 %v2147, %v2139
    %v2724 = vpack.c.b16 %v2148, %v2140
    %v2725 = vpack.c.b16 %v2149, %v2141
    %v2726 = vpack.c.b16 %v2150, %v2142
    %v2727 = vpack.c.b16 %v2151, %v2143
    %v2728 = vpack.c.b16 %v2152, %v2144
    %v2729 = vpack.c.b16 %v2153, %v2145
    %v2730 = vpack.c.b16 %v2162, %v2154
    %v2731 = vpack.c.b16 %v2163, %v2155
    %v2732 = vpack.c.b16 %v2164, %v2156
    %v2733 = vpack.c.b16 %v2165, %v2157
    %v2734 = vpack.c.b16 %v2166, %v2158
    %v2735 = vpack.c.b16 %v2167, %v2159
    %v2736 = vpack.c.b16 %v2168, %v2160
    %v2737 = vpack.c.b16 %v2169, %v2161
    %v2738 = vpack.c.b16 %v2178, %v2170
    %v2739 = vpack.c.b16 %v2179, %v2171
    %v2740 = vpack.c.b16 %v2180, %v2172
    %v2741 = vpack.c.b16 %v2181, %v2173
    %v2742 = vpack.c.b16 %v2182, %v2174
    %v2743 = vpack.c.b16 %v2183, %v2175
    %v2744 = vpack.c.b16 %v2184, %v2176
    %v2745 = vpack.c.b16 %v2185, %v2177
    %v2746 = vpack.c.b16 %v2194, %v2186
    %v2747 = vpack.c.b16 %v2195, %v2187
    %v2748 = vpack.c.b16 %v2196, %v2188
    %v2749 = vpack.c.b16 %v2197, %v2189
    %v2750 = vpack.c.b16 %v2198, %v2190
    %v2751 = vpack.c.b16 %v2199, %v2191
    %v2752 = vpack.c.b16 %v2200, %v2192
    %v2753 = vpack.c.b16 %v2201, %v2193
    %v2754 = vpack.c.b16 %v2210, %v2202
    %v2755 = vpack.c.b16 %v2211, %v2203
    %v2756 = vpack.c.b16 %v2212, %v2204
    %v2757 = vpack.c.b16 %v2213, %v2205
    %v2758 = vpack.c.b16 %v2214, %v2206
    %v2759 = vpack.c.b16 %v2215, %v2207
    %v2760 = vpack.c.b16 %v2216, %v2208
    %v2761 = vpack.c.b16 %v2217, %v2209
    %v2762 = vpack.c.b16 %v2226, %v2218
    %v2763 = vpack.c.b16 %v2227, %v2219
    %v2764 = vpack.c.b16 %v2228, %v2220
    %v2765 = vpack.c.b16 %v2229, %v2221
    %v2766 = vpack.c.b16 %v2230, %v2222
    %v2767 = vpack.c.b16 %v2231, %v2223
    %v2768 = vpack.c.b16 %v2232, %v2224
    %v2769 = vpack.c.b16 %v2233, %v2225
    %v2770 = vpack.c.b16 %v2242, %v2234
    %v2771 = vpack.c.b16 %v2243, %v2235
    %v2772 = vpack.c.b16 %v2244, %v2236
    %v2773 = vpack.c.b16 %v2245, %v2237
    %v2774 = vpack.c.b16 %v2246, %v2238
    %v2775 = vpack.c.b16 %v2247, %v2239
    %v2776 = vpack.c.b16 %v2248, %v2240
    %v2777 = vpack.c.b16 %v2249, %v2241
    %v2778 = vpack.c.b16 %v2258, %v2250
    %v2779 = vpack.c.b16 %v2259, %v2251
    %v2780 = vpack.c.b16 %v2260, %v2252
    %v2781 = vpack.c.b16 %v2261, %v2253
    %v2782 = vpack.c.b16 %v2262, %v2254
    %v2783 = vpack.c.b16 %v2263, %v2255
    %v2784 = vpack.c.b16 %v2264, %v2256
    %v2785 = vpack.c.b16 %v2265, %v2257
    %v2786 = vpack.c.b16 %v2274, %v2266
    %v2787 = vpack.c.b16 %v2275, %v2267
    %v2788 = vpack.c.b16 %v2276, %v2268
    %v2789 = vpack.c.b16 %v2277, %v2269
    %v2790 = vpack.c.b16 %v2278, %v2270
    %v2791 = vpack.c.b16 %v2279, %v2271
    %v2792 = vpack.c.b16 %v2280, %v2272
    %v2793 = vpack.c.b16 %v2281, %v2273
    %3306 = vmatprep.subr.bf16.mxu0 %v2283
    %3307 = vmatpush1.bf16.msra.mxu0 %v2282
    %3308 = vmatprep.subr.bf16.mxu0 %v2291
    %3309 = vmatpush1.bf16.msra.mxu0 %v2290
    %3310 = vmatprep.subr.bf16.mxu0 %v2299
    %3311 = vmatpush1.bf16.msra.mxu0 %v2298
    %3312 = vmatprep.subr.bf16.mxu0 %v2307
    %3313 = vmatpush1.bf16.msra.mxu0 %v2306
    %3314 = vmatprep.subr.bf16.mxu0 %v2315
    %3315 = vmatpush1.bf16.msra.mxu0 %v2314
    %3316 = vmatprep.subr.bf16.mxu0 %v2323
    %3317 = vmatpush1.bf16.msra.mxu0 %v2322
    %3318 = vmatprep.subr.bf16.mxu0 %v2331
    %3319 = vmatpush1.bf16.msra.mxu0 %v2330
    %3320 = vmatprep.subr.bf16.mxu0 %v2339
    %3321 = vmatpush1.bf16.msra.mxu0 %v2338
    %3322 = vmatprep.subr.bf16.mxu0 %v2347
    %3323 = vmatpush1.bf16.msra.mxu0 %v2346
    %3324 = vmatprep.subr.bf16.mxu0 %v2355
    %3325 = vmatpush1.bf16.msra.mxu0 %v2354
    %3326 = vmatprep.subr.bf16.mxu0 %v2363
    %3327 = vmatpush1.bf16.msra.mxu0 %v2362
    %3328 = vmatprep.subr.bf16.mxu0 %v2371
    %3329 = vmatpush1.bf16.msra.mxu0 %v2370
    %3330 = vmatprep.subr.bf16.mxu0 %v2379
    %3331 = vmatpush1.bf16.msra.mxu0 %v2378
    %3332 = vmatprep.subr.bf16.mxu0 %v2387
    %3333 = vmatpush1.bf16.msra.mxu0 %v2386
    %3334 = vmatprep.subr.bf16.mxu0 %v2395
    %3335 = vmatpush1.bf16.msra.mxu0 %v2394
    %3336 = vmatprep.subr.bf16.mxu0 %v2403
    %3337 = vmatpush1.bf16.msra.mxu0 %v2402
    %3338 = vmatprep.mubr.bf16.mxu0 %v185
    %3339 = vmatmul.mubr.bf16.gmra.mrb[0].mxu0 %v184
    %v3340 = vpop.f32.mrb[0].mxu0
    %v3341 = vadd.f32 %v709, %v3340
    %v3342 = vpop.f32.mrb[0].mxu0
    %v3343 = vadd.f32 %v713, %v3342
    %v3344 = vpop.f32.mrb[0].mxu0
    %v3345 = vadd.f32 %v709, %v3344
    %v3346 = vpop.f32.mrb[0].mxu0
    %v3347 = vadd.f32 %v713, %v3346
    %3348 = vdwg.mxu0
    %3349 = vmatprep.subr.bf16.mxu0 %v2411
    %3350 = vmatpush1.bf16.msra.mxu0 %v2410
    %3351 = vmatprep.subr.bf16.mxu0 %v2419
    %3352 = vmatpush1.bf16.msra.mxu0 %v2418
    %3353 = vmatprep.subr.bf16.mxu0 %v2427
    %3354 = vmatpush1.bf16.msra.mxu0 %v2426
    %3355 = vmatprep.subr.bf16.mxu0 %v2435
    %3356 = vmatpush1.bf16.msra.mxu0 %v2434
    %3357 = vmatprep.subr.bf16.mxu0 %v2443
    %3358 = vmatpush1.bf16.msra.mxu0 %v2442
    %3359 = vmatprep.subr.bf16.mxu0 %v2451
    %3360 = vmatpush1.bf16.msra.mxu0 %v2450
    %3361 = vmatprep.subr.bf16.mxu0 %v2459
    %3362 = vmatpush1.bf16.msra.mxu0 %v2458
    %3363 = vmatprep.subr.bf16.mxu0 %v2467
    %3364 = vmatpush1.bf16.msra.mxu0 %v2466
    %3365 = vmatprep.subr.bf16.mxu0 %v2475
    %3366 = vmatpush1.bf16.msra.mxu0 %v2474
    %3367 = vmatprep.subr.bf16.mxu0 %v2483
    %3368 = vmatpush1.bf16.msra.mxu0 %v2482
    %3369 = vmatprep.subr.bf16.mxu0 %v2491
    %3370 = vmatpush1.bf16.msra.mxu0 %v2490
    %3371 = vmatprep.subr.bf16.mxu0 %v2499
    %3372 = vmatpush1.bf16.msra.mxu0 %v2498
    %3373 = vmatprep.subr.bf16.mxu0 %v2507
    %3374 = vmatpush1.bf16.msra.mxu0 %v2506
    %3375 = vmatprep.subr.bf16.mxu0 %v2515
    %3376 = vmatpush1.bf16.msra.mxu0 %v2514
    %3377 = vmatprep.subr.bf16.mxu0 %v2523
    %3378 = vmatpush1.bf16.msra.mxu0 %v2522
    %3379 = vmatprep.subr.bf16.mxu0 %v2531
    %3380 = vmatpush1.bf16.msra.mxu0 %v2530
    %3381 = vmatprep.mubr.bf16.mxu0 %v187
    %3382 = vmatmul.mubr.bf16.gmra.mrb[0].mxu0 %v186
    %v3383 = vpop.f32.mrb[0].mxu0
    %v3384 = vadd.f32 %v3341, %v3383
    %v3385 = vpop.f32.mrb[0].mxu0
    %v3386 = vadd.f32 %v3343, %v3385
    %v3387 = vpop.f32.mrb[0].mxu0
    %v3388 = vadd.f32 %v3345, %v3387
    %v3389 = vpop.f32.mrb[0].mxu0
    %v3390 = vadd.f32 %v3347, %v3389
    %3391 = vdwg.mxu0
    %3392 = vmatprep.subr.bf16.mxu0 %v2539
    %3393 = vmatpush1.bf16.msra.mxu0 %v2538
    %3394 = vmatprep.subr.bf16.mxu0 %v2547
    %3395 = vmatpush1.bf16.msra.mxu0 %v2546
    %3396 = vmatprep.subr.bf16.mxu0 %v2555
    %3397 = vmatpush1.bf16.msra.mxu0 %v2554
    %3398 = vmatprep.subr.bf16.mxu0 %v2563
    %3399 = vmatpush1.bf16.msra.mxu0 %v2562
    %3400 = vmatprep.subr.bf16.mxu0 %v2571
    %3401 = vmatpush1.bf16.msra.mxu0 %v2570
    %3402 = vmatprep.subr.bf16.mxu0 %v2579
    %3403 = vmatpush1.bf16.msra.mxu0 %v2578
    %3404 = vmatprep.subr.bf16.mxu0 %v2587
    %3405 = vmatpush1.bf16.msra.mxu0 %v2586
    %3406 = vmatprep.subr.bf16.mxu0 %v2595
    %3407 = vmatpush1.bf16.msra.mxu0 %v2594
    %3408 = vmatprep.subr.bf16.mxu0 %v2603
    %3409 = vmatpush1.bf16.msra.mxu0 %v2602
    %3410 = vmatprep.subr.bf16.mxu0 %v2611
    %3411 = vmatpush1.bf16.msra.mxu0 %v2610
    %3412 = vmatprep.subr.bf16.mxu0 %v2619
    %3413 = vmatpush1.bf16.msra.mxu0 %v2618
    %3414 = vmatprep.subr.bf16.mxu0 %v2627
    %3415 = vmatpush1.bf16.msra.mxu0 %v2626
    %3416 = vmatprep.subr.bf16.mxu0 %v2635
    %3417 = vmatpush1.bf16.msra.mxu0 %v2634
    %3418 = vmatprep.subr.bf16.mxu0 %v2643
    %3419 = vmatpush1.bf16.msra.mxu0 %v2642
    %3420 = vmatprep.subr.bf16.mxu0 %v2651
    %3421 = vmatpush1.bf16.msra.mxu0 %v2650
    %3422 = vmatprep.subr.bf16.mxu0 %v2659
    %3423 = vmatpush1.bf16.msra.mxu0 %v2658
    %3424 = vmatprep.mubr.bf16.mxu0 %v189
    %3425 = vmatmul.mubr.bf16.gmra.mrb[0].mxu0 %v188
    %v3426 = vpop.f32.mrb[0].mxu0
    %v3427 = vadd.f32 %v3384, %v3426
    %v3428 = vpop.f32.mrb[0].mxu0
    %v3429 = vadd.f32 %v3386, %v3428
    %v3430 = vpop.f32.mrb[0].mxu0
    %v3431 = vadd.f32 %v3388, %v3430
    %v3432 = vpop.f32.mrb[0].mxu0
    %v3433 = vadd.f32 %v3390, %v3432
    %3434 = vdwg.mxu0
    %3435 = vmatprep.subr.bf16.mxu0 %v2667
    %3436 = vmatpush1.bf16.msra.mxu0 %v2666
    %3437 = vmatprep.subr.bf16.mxu0 %v2675
    %3438 = vmatpush1.bf16.msra.mxu0 %v2674
    %3439 = vmatprep.subr.bf16.mxu0 %v2683
    %3440 = vmatpush1.bf16.msra.mxu0 %v2682
    %3441 = vmatprep.subr.bf16.mxu0 %v2691
    %3442 = vmatpush1.bf16.msra.mxu0 %v2690
    %3443 = vmatprep.subr.bf16.mxu0 %v2699
    %3444 = vmatpush1.bf16.msra.mxu0 %v2698
    %3445 = vmatprep.subr.bf16.mxu0 %v2707
    %3446 = vmatpush1.bf16.msra.mxu0 %v2706
    %3447 = vmatprep.subr.bf16.mxu0 %v2715
    %3448 = vmatpush1.bf16.msra.mxu0 %v2714
    %3449 = vmatprep.subr.bf16.mxu0 %v2723
    %3450 = vmatpush1.bf16.msra.mxu0 %v2722
    %3451 = vmatprep.subr.bf16.mxu0 %v2731
    %3452 = vmatpush1.bf16.msra.mxu0 %v2730
    %3453 = vmatprep.subr.bf16.mxu0 %v2739
    %3454 = vmatpush1.bf16.msra.mxu0 %v2738
    %3455 = vmatprep.subr.bf16.mxu0 %v2747
    %3456 = vmatpush1.bf16.msra.mxu0 %v2746
    %3457 = vmatprep.subr.bf16.mxu0 %v2755
    %3458 = vmatpush1.bf16.msra.mxu0 %v2754
    %3459 = vmatprep.subr.bf16.mxu0 %v2763
    %3460 = vmatpush1.bf16.msra.mxu0 %v2762
    %3461 = vmatprep.subr.bf16.mxu0 %v2771
    %3462 = vmatpush1.bf16.msra.mxu0 %v2770
    %3463 = vmatprep.subr.bf16.mxu0 %v2779
    %3464 = vmatpush1.bf16.msra.mxu0 %v2778
    %3465 = vmatprep.subr.bf16.mxu0 %v2787
    %3466 = vmatpush1.bf16.msra.mxu0 %v2786
    %3467 = vmatprep.mubr.bf16.mxu0 %v191
    %3468 = vmatmul.mubr.bf16.gmra.mrb[0].mxu0 %v190
    %v3469 = vpop.f32.mrb[0].mxu0
    %v3470 = vadd.f32 %v3427, %v3469
    %v3471 = vpop.f32.mrb[0].mxu0
    %v3472 = vadd.f32 %v3429, %v3471
    %v3473 = vpop.f32.mrb[0].mxu0
    %v3474 = vadd.f32 %v3431, %v3473
    %v3475 = vpop.f32.mrb[0].mxu0
    %v3476 = vadd.f32 %v3433, %v3475
    %3477 = vdwg.mxu0
    %3478 = vmatprep.subr.bf16.mxu0 %v2285
    %3479 = vmatpush1.bf16.msra.mxu0 %v2284
    %3480 = vmatprep.subr.bf16.mxu0 %v2293
    %3481 = vmatpush1.bf16.msra.mxu0 %v2292
    %3482 = vmatprep.subr.bf16.mxu0 %v2301
    %3483 = vmatpush1.bf16.msra.mxu0 %v2300
    %3484 = vmatprep.subr.bf16.mxu0 %v2309
    %3485 = vmatpush1.bf16.msra.mxu0 %v2308
    %3486 = vmatprep.subr.bf16.mxu0 %v2317
    %3487 = vmatpush1.bf16.msra.mxu0 %v2316
    %3488 = vmatprep.subr.bf16.mxu0 %v2325
    %3489 = vmatpush1.bf16.msra.mxu0 %v2324
    %3490 = vmatprep.subr.bf16.mxu0 %v2333
    %3491 = vmatpush1.bf16.msra.mxu0 %v2332
    %3492 = vmatprep.subr.bf16.mxu0 %v2341
    %3493 = vmatpush1.bf16.msra.mxu0 %v2340
    %3494 = vmatprep.subr.bf16.mxu0 %v2349
    %3495 = vmatpush1.bf16.msra.mxu0 %v2348
    %3496 = vmatprep.subr.bf16.mxu0 %v2357
    %3497 = vmatpush1.bf16.msra.mxu0 %v2356
    %3498 = vmatprep.subr.bf16.mxu0 %v2365
    %3499 = vmatpush1.bf16.msra.mxu0 %v2364
    %3500 = vmatprep.subr.bf16.mxu0 %v2373
    %3501 = vmatpush1.bf16.msra.mxu0 %v2372
    %3502 = vmatprep.subr.bf16.mxu0 %v2381
    %3503 = vmatpush1.bf16.msra.mxu0 %v2380
    %3504 = vmatprep.subr.bf16.mxu0 %v2389
    %3505 = vmatpush1.bf16.msra.mxu0 %v2388
    %3506 = vmatprep.subr.bf16.mxu0 %v2397
    %3507 = vmatpush1.bf16.msra.mxu0 %v2396
    %3508 = vmatprep.subr.bf16.mxu0 %v2405
    %3509 = vmatpush1.bf16.msra.mxu0 %v2404
    %3510 = vmatprep.mubr.bf16.mxu0 %v185
    %3511 = vmatmul.mubr.bf16.gmra.mrb[0].mxu0 %v184
    %v3512 = vpop.f32.mrb[0].mxu0
    %v3513 = vadd.f32 %v717, %v3512
    %v3514 = vpop.f32.mrb[0].mxu0
    %v3515 = vadd.f32 %v721, %v3514
    %v3516 = vpop.f32.mrb[0].mxu0
    %v3517 = vadd.f32 %v717, %v3516
    %v3518 = vpop.f32.mrb[0].mxu0
    %v3519 = vadd.f32 %v721, %v3518
    %3520 = vdwg.mxu0
    %3521 = vmatprep.subr.bf16.mxu0 %v2413
    %3522 = vmatpush1.bf16.msra.mxu0 %v2412
    %3523 = vmatprep.subr.bf16.mxu0 %v2421
    %3524 = vmatpush1.bf16.msra.mxu0 %v2420
    %3525 = vmatprep.subr.bf16.mxu0 %v2429
    %3526 = vmatpush1.bf16.msra.mxu0 %v2428
    %3527 = vmatprep.subr.bf16.mxu0 %v2437
    %3528 = vmatpush1.bf16.msra.mxu0 %v2436
    %3529 = vmatprep.subr.bf16.mxu0 %v2445
    %3530 = vmatpush1.bf16.msra.mxu0 %v2444
    %3531 = vmatprep.subr.bf16.mxu0 %v2453
    %3532 = vmatpush1.bf16.msra.mxu0 %v2452
    %3533 = vmatprep.subr.bf16.mxu0 %v2461
    %3534 = vmatpush1.bf16.msra.mxu0 %v2460
    %3535 = vmatprep.subr.bf16.mxu0 %v2469
    %3536 = vmatpush1.bf16.msra.mxu0 %v2468
    %3537 = vmatprep.subr.bf16.mxu0 %v2477
    %3538 = vmatpush1.bf16.msra.mxu0 %v2476
    %3539 = vmatprep.subr.bf16.mxu0 %v2485
    %3540 = vmatpush1.bf16.msra.mxu0 %v2484
    %3541 = vmatprep.subr.bf16.mxu0 %v2493
    %3542 = vmatpush1.bf16.msra.mxu0 %v2492
    %3543 = vmatprep.subr.bf16.mxu0 %v2501
    %3544 = vmatpush1.bf16.msra.mxu0 %v2500
    %3545 = vmatprep.subr.bf16.mxu0 %v2509
    %3546 = vmatpush1.bf16.msra.mxu0 %v2508
    %3547 = vmatprep.subr.bf16.mxu0 %v2517
    %3548 = vmatpush1.bf16.msra.mxu0 %v2516
    %3549 = vmatprep.subr.bf16.mxu0 %v2525
    %3550 = vmatpush1.bf16.msra.mxu0 %v2524
    %3551 = vmatprep.subr.bf16.mxu0 %v2533
    %3552 = vmatpush1.bf16.msra.mxu0 %v2532
    %3553 = vmatprep.mubr.bf16.mxu0 %v187
    %3554 = vmatmul.mubr.bf16.gmra.mrb[0].mxu0 %v186
    %v3555 = vpop.f32.mrb[0].mxu0
    %v3556 = vadd.f32 %v3513, %v3555
    %v3557 = vpop.f32.mrb[0].mxu0
    %v3558 = vadd.f32 %v3515, %v3557
    %v3559 = vpop.f32.mrb[0].mxu0
    %v3560 = vadd.f32 %v3517, %v3559
    %v3561 = vpop.f32.mrb[0].mxu0
    %v3562 = vadd.f32 %v3519, %v3561
    %3563 = vdwg.mxu0
    %3564 = vmatprep.subr.bf16.mxu0 %v2541
    %3565 = vmatpush1.bf16.msra.mxu0 %v2540
    %3566 = vmatprep.subr.bf16.mxu0 %v2549
    %3567 = vmatpush1.bf16.msra.mxu0 %v2548
    %3568 = vmatprep.subr.bf16.mxu0 %v2557
    %3569 = vmatpush1.bf16.msra.mxu0 %v2556
    %3570 = vmatprep.subr.bf16.mxu0 %v2565
    %3571 = vmatpush1.bf16.msra.mxu0 %v2564
    %3572 = vmatprep.subr.bf16.mxu0 %v2573
    %3573 = vmatpush1.bf16.msra.mxu0 %v2572
    %3574 = vmatprep.subr.bf16.mxu0 %v2581
    %3575 = vmatpush1.bf16.msra.mxu0 %v2580
    %3576 = vmatprep.subr.bf16.mxu0 %v2589
    %3577 = vmatpush1.bf16.msra.mxu0 %v2588
    %3578 = vmatprep.subr.bf16.mxu0 %v2597
    %3579 = vmatpush1.bf16.msra.mxu0 %v2596
    %3580 = vmatprep.subr.bf16.mxu0 %v2605
    %3581 = vmatpush1.bf16.msra.mxu0 %v2604
    %3582 = vmatprep.subr.bf16.mxu0 %v2613
    %3583 = vmatpush1.bf16.msra.mxu0 %v2612
    %3584 = vmatprep.subr.bf16.mxu0 %v2621
    %3585 = vmatpush1.bf16.msra.mxu0 %v2620
    %3586 = vmatprep.subr.bf16.mxu0 %v2629
    %3587 = vmatpush1.bf16.msra.mxu0 %v2628
    %3588 = vmatprep.subr.bf16.mxu0 %v2637
    %3589 = vmatpush1.bf16.msra.mxu0 %v2636
    %3590 = vmatprep.subr.bf16.mxu0 %v2645
    %3591 = vmatpush1.bf16.msra.mxu0 %v2644
    %3592 = vmatprep.subr.bf16.mxu0 %v2653
    %3593 = vmatpush1.bf16.msra.mxu0 %v2652
    %3594 = vmatprep.subr.bf16.mxu0 %v2661
    %3595 = vmatpush1.bf16.msra.mxu0 %v2660
    %3596 = vmatprep.mubr.bf16.mxu0 %v189
    %3597 = vmatmul.mubr.bf16.gmra.mrb[0].mxu0 %v188
    %v3598 = vpop.f32.mrb[0].mxu0
    %v3599 = vadd.f32 %v3556, %v3598
    %v3600 = vpop.f32.mrb[0].mxu0
    %v3601 = vadd.f32 %v3558, %v3600
    %v3602 = vpop.f32.mrb[0].mxu0
    %v3603 = vadd.f32 %v3560, %v3602
    %v3604 = vpop.f32.mrb[0].mxu0
    %v3605 = vadd.f32 %v3562, %v3604
    %3606 = vdwg.mxu0
    %3607 = vmatprep.subr.bf16.mxu0 %v2669
    %3608 = vmatpush1.bf16.msra.mxu0 %v2668
    %3609 = vmatprep.subr.bf16.mxu0 %v2677
    %3610 = vmatpush1.bf16.msra.mxu0 %v2676
    %3611 = vmatprep.subr.bf16.mxu0 %v2685
    %3612 = vmatpush1.bf16.msra.mxu0 %v2684
    %3613 = vmatprep.subr.bf16.mxu0 %v2693
    %3614 = vmatpush1.bf16.msra.mxu0 %v2692
    %3615 = vmatprep.subr.bf16.mxu0 %v2701
    %3616 = vmatpush1.bf16.msra.mxu0 %v2700
    %3617 = vmatprep.subr.bf16.mxu0 %v2709
    %3618 = vmatpush1.bf16.msra.mxu0 %v2708
    %3619 = vmatprep.subr.bf16.mxu0 %v2717
    %3620 = vmatpush1.bf16.msra.mxu0 %v2716
    %3621 = vmatprep.subr.bf16.mxu0 %v2725
    %3622 = vmatpush1.bf16.msra.mxu0 %v2724
    %3623 = vmatprep.subr.bf16.mxu0 %v2733
    %3624 = vmatpush1.bf16.msra.mxu0 %v2732
    %3625 = vmatprep.subr.bf16.mxu0 %v2741
    %3626 = vmatpush1.bf16.msra.mxu0 %v2740
    %3627 = vmatprep.subr.bf16.mxu0 %v2749
    %3628 = vmatpush1.bf16.msra.mxu0 %v2748
    %3629 = vmatprep.subr.bf16.mxu0 %v2757
    %3630 = vmatpush1.bf16.msra.mxu0 %v2756
    %3631 = vmatprep.subr.bf16.mxu0 %v2765
    %3632 = vmatpush1.bf16.msra.mxu0 %v2764
    %3633 = vmatprep.subr.bf16.mxu0 %v2773
    %3634 = vmatpush1.bf16.msra.mxu0 %v2772
    %3635 = vmatprep.subr.bf16.mxu0 %v2781
    %3636 = vmatpush1.bf16.msra.mxu0 %v2780
    %3637 = vmatprep.subr.bf16.mxu0 %v2789
    %3638 = vmatpush1.bf16.msra.mxu0 %v2788
    %3639 = vmatprep.mubr.bf16.mxu0 %v191
    %3640 = vmatmul.mubr.bf16.gmra.mrb[0].mxu0 %v190
    %v3641 = vpop.f32.mrb[0].mxu0
    %v3642 = vadd.f32 %v3599, %v3641
    %v3643 = vpop.f32.mrb[0].mxu0
    %v3644 = vadd.f32 %v3601, %v3643
    %v3645 = vpop.f32.mrb[0].mxu0
    %v3646 = vadd.f32 %v3603, %v3645
    %v3647 = vpop.f32.mrb[0].mxu0
    %v3648 = vadd.f32 %v3605, %v3647
    %3649 = vdwg.mxu0
    %3650 = vmatprep.subr.bf16.mxu0 %v2287
    %3651 = vmatpush1.bf16.msra.mxu0 %v2286
    %3652 = vmatprep.subr.bf16.mxu0 %v2295
    %3653 = vmatpush1.bf16.msra.mxu0 %v2294
    %3654 = vmatprep.subr.bf16.mxu0 %v2303
    %3655 = vmatpush1.bf16.msra.mxu0 %v2302
    %3656 = vmatprep.subr.bf16.mxu0 %v2311
    %3657 = vmatpush1.bf16.msra.mxu0 %v2310
    %3658 = vmatprep.subr.bf16.mxu0 %v2319
    %3659 = vmatpush1.bf16.msra.mxu0 %v2318
    %3660 = vmatprep.subr.bf16.mxu0 %v2327
    %3661 = vmatpush1.bf16.msra.mxu0 %v2326
    %3662 = vmatprep.subr.bf16.mxu0 %v2335
    %3663 = vmatpush1.bf16.msra.mxu0 %v2334
    %3664 = vmatprep.subr.bf16.mxu0 %v2343
    %3665 = vmatpush1.bf16.msra.mxu0 %v2342
    %3666 = vmatprep.subr.bf16.mxu0 %v2351
    %3667 = vmatpush1.bf16.msra.mxu0 %v2350
    %3668 = vmatprep.subr.bf16.mxu0 %v2359
    %3669 = vmatpush1.bf16.msra.mxu0 %v2358
    %3670 = vmatprep.subr.bf16.mxu0 %v2367
    %3671 = vmatpush1.bf16.msra.mxu0 %v2366
    %3672 = vmatprep.subr.bf16.mxu0 %v2375
    %3673 = vmatpush1.bf16.msra.mxu0 %v2374
    %3674 = vmatprep.subr.bf16.mxu0 %v2383
    %3675 = vmatpush1.bf16.msra.mxu0 %v2382
    %3676 = vmatprep.subr.bf16.mxu0 %v2391
    %3677 = vmatpush1.bf16.msra.mxu0 %v2390
    %3678 = vmatprep.subr.bf16.mxu0 %v2399
    %3679 = vmatpush1.bf16.msra.mxu0 %v2398
    %3680 = vmatprep.subr.bf16.mxu0 %v2407
    %3681 = vmatpush1.bf16.msra.mxu0 %v2406
    %3682 = vmatprep.mubr.bf16.mxu0 %v185
    %3683 = vmatmul.mubr.bf16.gmra.mrb[0].mxu0 %v184
    %v3684 = vpop.f32.mrb[0].mxu0
    %v3685 = vadd.f32 %v725, %v3684
    %v3686 = vpop.f32.mrb[0].mxu0
    %v3687 = vadd.f32 %v729, %v3686
    %v3688 = vpop.f32.mrb[0].mxu0
    %v3689 = vadd.f32 %v725, %v3688
    %v3690 = vpop.f32.mrb[0].mxu0
    %v3691 = vadd.f32 %v729, %v3690
    %3692 = vdwg.mxu0
    %3693 = vmatprep.subr.bf16.mxu0 %v2415
    %3694 = vmatpush1.bf16.msra.mxu0 %v2414
    %3695 = vmatprep.subr.bf16.mxu0 %v2423
    %3696 = vmatpush1.bf16.msra.mxu0 %v2422
    %3697 = vmatprep.subr.bf16.mxu0 %v2431
    %3698 = vmatpush1.bf16.msra.mxu0 %v2430
    %3699 = vmatprep.subr.bf16.mxu0 %v2439
    %3700 = vmatpush1.bf16.msra.mxu0 %v2438
    %3701 = vmatprep.subr.bf16.mxu0 %v2447
    %3702 = vmatpush1.bf16.msra.mxu0 %v2446
    %3703 = vmatprep.subr.bf16.mxu0 %v2455
    %3704 = vmatpush1.bf16.msra.mxu0 %v2454
    %3705 = vmatprep.subr.bf16.mxu0 %v2463
    %3706 = vmatpush1.bf16.msra.mxu0 %v2462
    %3707 = vmatprep.subr.bf16.mxu0 %v2471
    %3708 = vmatpush1.bf16.msra.mxu0 %v2470
    %3709 = vmatprep.subr.bf16.mxu0 %v2479
    %3710 = vmatpush1.bf16.msra.mxu0 %v2478
    %3711 = vmatprep.subr.bf16.mxu0 %v2487
    %3712 = vmatpush1.bf16.msra.mxu0 %v2486
    %3713 = vmatprep.subr.bf16.mxu0 %v2495
    %3714 = vmatpush1.bf16.msra.mxu0 %v2494
    %3715 = vmatprep.subr.bf16.mxu0 %v2503
    %3716 = vmatpush1.bf16.msra.mxu0 %v2502
    %3717 = vmatprep.subr.bf16.mxu0 %v2511
    %3718 = vmatpush1.bf16.msra.mxu0 %v2510
    %3719 = vmatprep.subr.bf16.mxu0 %v2519
    %3720 = vmatpush1.bf16.msra.mxu0 %v2518
    %3721 = vmatprep.subr.bf16.mxu0 %v2527
    %3722 = vmatpush1.bf16.msra.mxu0 %v2526
    %3723 = vmatprep.subr.bf16.mxu0 %v2535
    %3724 = vmatpush1.bf16.msra.mxu0 %v2534
    %3725 = vmatprep.mubr.bf16.mxu0 %v187
    %3726 = vmatmul.mubr.bf16.gmra.mrb[0].mxu0 %v186
    %v3727 = vpop.f32.mrb[0].mxu0
    %v3728 = vadd.f32 %v3685, %v3727
    %v3729 = vpop.f32.mrb[0].mxu0
    %v3730 = vadd.f32 %v3687, %v3729
    %v3731 = vpop.f32.mrb[0].mxu0
    %v3732 = vadd.f32 %v3689, %v3731
    %v3733 = vpop.f32.mrb[0].mxu0
    %v3734 = vadd.f32 %v3691, %v3733
    %3735 = vdwg.mxu0
    %3736 = vmatprep.subr.bf16.mxu0 %v2543
    %3737 = vmatpush1.bf16.msra.mxu0 %v2542
    %3738 = vmatprep.subr.bf16.mxu0 %v2551
    %3739 = vmatpush1.bf16.msra.mxu0 %v2550
    %3740 = vmatprep.subr.bf16.mxu0 %v2559
    %3741 = vmatpush1.bf16.msra.mxu0 %v2558
    %3742 = vmatprep.subr.bf16.mxu0 %v2567
    %3743 = vmatpush1.bf16.msra.mxu0 %v2566
    %3744 = vmatprep.subr.bf16.mxu0 %v2575
    %3745 = vmatpush1.bf16.msra.mxu0 %v2574
    %3746 = vmatprep.subr.bf16.mxu0 %v2583
    %3747 = vmatpush1.bf16.msra.mxu0 %v2582
    %3748 = vmatprep.subr.bf16.mxu0 %v2591
    %3749 = vmatpush1.bf16.msra.mxu0 %v2590
    %3750 = vmatprep.subr.bf16.mxu0 %v2599
    %3751 = vmatpush1.bf16.msra.mxu0 %v2598
    %3752 = vmatprep.subr.bf16.mxu0 %v2607
    %3753 = vmatpush1.bf16.msra.mxu0 %v2606
    %3754 = vmatprep.subr.bf16.mxu0 %v2615
    %3755 = vmatpush1.bf16.msra.mxu0 %v2614
    %3756 = vmatprep.subr.bf16.mxu0 %v2623
    %3757 = vmatpush1.bf16.msra.mxu0 %v2622
    %3758 = vmatprep.subr.bf16.mxu0 %v2631
    %3759 = vmatpush1.bf16.msra.mxu0 %v2630
    %3760 = vmatprep.subr.bf16.mxu0 %v2639
    %3761 = vmatpush1.bf16.msra.mxu0 %v2638
    %3762 = vmatprep.subr.bf16.mxu0 %v2647
    %3763 = vmatpush1.bf16.msra.mxu0 %v2646
    %3764 = vmatprep.subr.bf16.mxu0 %v2655
    %3765 = vmatpush1.bf16.msra.mxu0 %v2654
    %3766 = vmatprep.subr.bf16.mxu0 %v2663
    %3767 = vmatpush1.bf16.msra.mxu0 %v2662
    %3768 = vmatprep.mubr.bf16.mxu0 %v189
    %3769 = vmatmul.mubr.bf16.gmra.mrb[0].mxu0 %v188
    %v3770 = vpop.f32.mrb[0].mxu0
    %v3771 = vadd.f32 %v3728, %v3770
    %v3772 = vpop.f32.mrb[0].mxu0
    %v3773 = vadd.f32 %v3730, %v3772
    %v3774 = vpop.f32.mrb[0].mxu0
    %v3775 = vadd.f32 %v3732, %v3774
    %v3776 = vpop.f32.mrb[0].mxu0
    %v3777 = vadd.f32 %v3734, %v3776
    %3778 = vdwg.mxu0
    %3779 = vmatprep.subr.bf16.mxu0 %v2671
    %3780 = vmatpush1.bf16.msra.mxu0 %v2670
    %3781 = vmatprep.subr.bf16.mxu0 %v2679
    %3782 = vmatpush1.bf16.msra.mxu0 %v2678
    %3783 = vmatprep.subr.bf16.mxu0 %v2687
    %3784 = vmatpush1.bf16.msra.mxu0 %v2686
    %3785 = vmatprep.subr.bf16.mxu0 %v2695
    %3786 = vmatpush1.bf16.msra.mxu0 %v2694
    %3787 = vmatprep.subr.bf16.mxu0 %v2703
    %3788 = vmatpush1.bf16.msra.mxu0 %v2702
    %3789 = vmatprep.subr.bf16.mxu0 %v2711
    %3790 = vmatpush1.bf16.msra.mxu0 %v2710
    %3791 = vmatprep.subr.bf16.mxu0 %v2719
    %3792 = vmatpush1.bf16.msra.mxu0 %v2718
    %3793 = vmatprep.subr.bf16.mxu0 %v2727
    %3794 = vmatpush1.bf16.msra.mxu0 %v2726
    %3795 = vmatprep.subr.bf16.mxu0 %v2735
    %3796 = vmatpush1.bf16.msra.mxu0 %v2734
    %3797 = vmatprep.subr.bf16.mxu0 %v2743
    %3798 = vmatpush1.bf16.msra.mxu0 %v2742
    %3799 = vmatprep.subr.bf16.mxu0 %v2751
    %3800 = vmatpush1.bf16.msra.mxu0 %v2750
    %3801 = vmatprep.subr.bf16.mxu0 %v2759
    %3802 = vmatpush1.bf16.msra.mxu0 %v2758
    %3803 = vmatprep.subr.bf16.mxu0 %v2767
    %3804 = vmatpush1.bf16.msra.mxu0 %v2766
    %3805 = vmatprep.subr.bf16.mxu0 %v2775
    %3806 = vmatpush1.bf16.msra.mxu0 %v2774
    %3807 = vmatprep.subr.bf16.mxu0 %v2783
    %3808 = vmatpush1.bf16.msra.mxu0 %v2782
    %3809 = vmatprep.subr.bf16.mxu0 %v2791
    %3810 = vmatpush1.bf16.msra.mxu0 %v2790
    %3811 = vmatprep.mubr.bf16.mxu0 %v191
    %3812 = vmatmul.mubr.bf16.gmra.mrb[0].mxu0 %v190
    %v3813 = vpop.f32.mrb[0].mxu0
    %v3814 = vadd.f32 %v3771, %v3813
    %v3815 = vpop.f32.mrb[0].mxu0
    %v3816 = vadd.f32 %v3773, %v3815
    %v3817 = vpop.f32.mrb[0].mxu0
    %v3818 = vadd.f32 %v3775, %v3817
    %v3819 = vpop.f32.mrb[0].mxu0
    %v3820 = vadd.f32 %v3777, %v3819
    %3821 = vdwg.mxu0
    %3822 = vmatprep.subr.bf16.mxu0 %v2289
    %3823 = vmatpush1.bf16.msra.mxu0 %v2288
    %3824 = vmatprep.subr.bf16.mxu0 %v2297
    %3825 = vmatpush1.bf16.msra.mxu0 %v2296
    %3826 = vmatprep.subr.bf16.mxu0 %v2305
    %3827 = vmatpush1.bf16.msra.mxu0 %v2304
    %3828 = vmatprep.subr.bf16.mxu0 %v2313
    %3829 = vmatpush1.bf16.msra.mxu0 %v2312
    %3830 = vmatprep.subr.bf16.mxu0 %v2321
    %3831 = vmatpush1.bf16.msra.mxu0 %v2320
    %3832 = vmatprep.subr.bf16.mxu0 %v2329
    %3833 = vmatpush1.bf16.msra.mxu0 %v2328
    %3834 = vmatprep.subr.bf16.mxu0 %v2337
    %3835 = vmatpush1.bf16.msra.mxu0 %v2336
    %3836 = vmatprep.subr.bf16.mxu0 %v2345
    %3837 = vmatpush1.bf16.msra.mxu0 %v2344
    %3838 = vmatprep.subr.bf16.mxu0 %v2353
    %3839 = vmatpush1.bf16.msra.mxu0 %v2352
    %3840 = vmatprep.subr.bf16.mxu0 %v2361
    %3841 = vmatpush1.bf16.msra.mxu0 %v2360
    %3842 = vmatprep.subr.bf16.mxu0 %v2369
    %3843 = vmatpush1.bf16.msra.mxu0 %v2368
    %3844 = vmatprep.subr.bf16.mxu0 %v2377
    %3845 = vmatpush1.bf16.msra.mxu0 %v2376
    %3846 = vmatprep.subr.bf16.mxu0 %v2385
    %3847 = vmatpush1.bf16.msra.mxu0 %v2384
    %3848 = vmatprep.subr.bf16.mxu0 %v2393
    %3849 = vmatpush1.bf16.msra.mxu0 %v2392
    %3850 = vmatprep.subr.bf16.mxu0 %v2401
    %3851 = vmatpush1.bf16.msra.mxu0 %v2400
    %3852 = vmatprep.subr.bf16.mxu0 %v2409
    %3853 = vmatpush1.bf16.msra.mxu0 %v2408
    %3854 = vmatprep.mubr.bf16.mxu0 %v185
    %3855 = vmatmul.mubr.bf16.gmra.mrb[0].mxu0 %v184
    %v3856 = vpop.f32.mrb[0].mxu0
    %v3857 = vadd.f32 %v733, %v3856
    %v3858 = vpop.f32.mrb[0].mxu0
    %v3859 = vadd.f32 %v737, %v3858
    %v3860 = vpop.f32.mrb[0].mxu0
    %v3861 = vadd.f32 %v733, %v3860
    %v3862 = vpop.f32.mrb[0].mxu0
    %v3863 = vadd.f32 %v737, %v3862
    %3864 = vdwg.mxu0
    %3865 = vmatprep.subr.bf16.mxu0 %v2417
    %3866 = vmatpush1.bf16.msra.mxu0 %v2416
    %3867 = vmatprep.subr.bf16.mxu0 %v2425
    %3868 = vmatpush1.bf16.msra.mxu0 %v2424
    %3869 = vmatprep.subr.bf16.mxu0 %v2433
    %3870 = vmatpush1.bf16.msra.mxu0 %v2432
    %3871 = vmatprep.subr.bf16.mxu0 %v2441
    %3872 = vmatpush1.bf16.msra.mxu0 %v2440
    %3873 = vmatprep.subr.bf16.mxu0 %v2449
    %3874 = vmatpush1.bf16.msra.mxu0 %v2448
    %3875 = vmatprep.subr.bf16.mxu0 %v2457
    %3876 = vmatpush1.bf16.msra.mxu0 %v2456
    %3877 = vmatprep.subr.bf16.mxu0 %v2465
    %3878 = vmatpush1.bf16.msra.mxu0 %v2464
    %3879 = vmatprep.subr.bf16.mxu0 %v2473
    %3880 = vmatpush1.bf16.msra.mxu0 %v2472
    %3881 = vmatprep.subr.bf16.mxu0 %v2481
    %3882 = vmatpush1.bf16.msra.mxu0 %v2480
    %3883 = vmatprep.subr.bf16.mxu0 %v2489
    %3884 = vmatpush1.bf16.msra.mxu0 %v2488
    %3885 = vmatprep.subr.bf16.mxu0 %v2497
    %3886 = vmatpush1.bf16.msra.mxu0 %v2496
    %3887 = vmatprep.subr.bf16.mxu0 %v2505
    %3888 = vmatpush1.bf16.msra.mxu0 %v2504
    %3889 = vmatprep.subr.bf16.mxu0 %v2513
    %3890 = vmatpush1.bf16.msra.mxu0 %v2512
    %3891 = vmatprep.subr.bf16.mxu0 %v2521
    %3892 = vmatpush1.bf16.msra.mxu0 %v2520
    %3893 = vmatprep.subr.bf16.mxu0 %v2529
    %3894 = vmatpush1.bf16.msra.mxu0 %v2528
    %3895 = vmatprep.subr.bf16.mxu0 %v2537
    %3896 = vmatpush1.bf16.msra.mxu0 %v2536
    %3897 = vmatprep.mubr.bf16.mxu0 %v187
    %3898 = vmatmul.mubr.bf16.gmra.mrb[0].mxu0 %v186
    %v3899 = vpop.f32.mrb[0].mxu0
    %v3900 = vadd.f32 %v3857, %v3899
    %v3901 = vpop.f32.mrb[0].mxu0
    %v3902 = vadd.f32 %v3859, %v3901
    %v3903 = vpop.f32.mrb[0].mxu0
    %v3904 = vadd.f32 %v3861, %v3903
    %v3905 = vpop.f32.mrb[0].mxu0
    %v3906 = vadd.f32 %v3863, %v3905
    %3907 = vdwg.mxu0
    %3908 = vmatprep.subr.bf16.mxu0 %v2545
    %3909 = vmatpush1.bf16.msra.mxu0 %v2544
    %3910 = vmatprep.subr.bf16.mxu0 %v2553
    %3911 = vmatpush1.bf16.msra.mxu0 %v2552
    %3912 = vmatprep.subr.bf16.mxu0 %v2561
    %3913 = vmatpush1.bf16.msra.mxu0 %v2560
    %3914 = vmatprep.subr.bf16.mxu0 %v2569
    %3915 = vmatpush1.bf16.msra.mxu0 %v2568
    %3916 = vmatprep.subr.bf16.mxu0 %v2577
    %3917 = vmatpush1.bf16.msra.mxu0 %v2576
    %3918 = vmatprep.subr.bf16.mxu0 %v2585
    %3919 = vmatpush1.bf16.msra.mxu0 %v2584
    %3920 = vmatprep.subr.bf16.mxu0 %v2593
    %3921 = vmatpush1.bf16.msra.mxu0 %v2592
    %3922 = vmatprep.subr.bf16.mxu0 %v2601
    %3923 = vmatpush1.bf16.msra.mxu0 %v2600
    %3924 = vmatprep.subr.bf16.mxu0 %v2609
    %3925 = vmatpush1.bf16.msra.mxu0 %v2608
    %3926 = vmatprep.subr.bf16.mxu0 %v2617
    %3927 = vmatpush1.bf16.msra.mxu0 %v2616
    %3928 = vmatprep.subr.bf16.mxu0 %v2625
    %3929 = vmatpush1.bf16.msra.mxu0 %v2624
    %3930 = vmatprep.subr.bf16.mxu0 %v2633
    %3931 = vmatpush1.bf16.msra.mxu0 %v2632
    %3932 = vmatprep.subr.bf16.mxu0 %v2641
    %3933 = vmatpush1.bf16.msra.mxu0 %v2640
    %3934 = vmatprep.subr.bf16.mxu0 %v2649
    %3935 = vmatpush1.bf16.msra.mxu0 %v2648
    %3936 = vmatprep.subr.bf16.mxu0 %v2657
    %3937 = vmatpush1.bf16.msra.mxu0 %v2656
    %3938 = vmatprep.subr.bf16.mxu0 %v2665
    %3939 = vmatpush1.bf16.msra.mxu0 %v2664
    %3940 = vmatprep.mubr.bf16.mxu0 %v189
    %3941 = vmatmul.mubr.bf16.gmra.mrb[0].mxu0 %v188
    %v3942 = vpop.f32.mrb[0].mxu0
    %v3943 = vadd.f32 %v3900, %v3942
    %v3944 = vpop.f32.mrb[0].mxu0
    %v3945 = vadd.f32 %v3902, %v3944
    %v3946 = vpop.f32.mrb[0].mxu0
    %v3947 = vadd.f32 %v3904, %v3946
    %v3948 = vpop.f32.mrb[0].mxu0
    %v3949 = vadd.f32 %v3906, %v3948
    %3950 = vdwg.mxu0
    %3951 = vmatprep.subr.bf16.mxu0 %v2673
    %3952 = vmatpush1.bf16.msra.mxu0 %v2672
    %3953 = vmatprep.subr.bf16.mxu0 %v2681
    %3954 = vmatpush1.bf16.msra.mxu0 %v2680
    %3955 = vmatprep.subr.bf16.mxu0 %v2689
    %3956 = vmatpush1.bf16.msra.mxu0 %v2688
    %3957 = vmatprep.subr.bf16.mxu0 %v2697
    %3958 = vmatpush1.bf16.msra.mxu0 %v2696
    %3959 = vmatprep.subr.bf16.mxu0 %v2705
    %3960 = vmatpush1.bf16.msra.mxu0 %v2704
    %3961 = vmatprep.subr.bf16.mxu0 %v2713
    %3962 = vmatpush1.bf16.msra.mxu0 %v2712
    %3963 = vmatprep.subr.bf16.mxu0 %v2721
    %3964 = vmatpush1.bf16.msra.mxu0 %v2720
    %3965 = vmatprep.subr.bf16.mxu0 %v2729
    %3966 = vmatpush1.bf16.msra.mxu0 %v2728
    %3967 = vmatprep.subr.bf16.mxu0 %v2737
    %3968 = vmatpush1.bf16.msra.mxu0 %v2736
    %3969 = vmatprep.subr.bf16.mxu0 %v2745
    %3970 = vmatpush1.bf16.msra.mxu0 %v2744
    %3971 = vmatprep.subr.bf16.mxu0 %v2753
    %3972 = vmatpush1.bf16.msra.mxu0 %v2752
    %3973 = vmatprep.subr.bf16.mxu0 %v2761
    %3974 = vmatpush1.bf16.msra.mxu0 %v2760
    %3975 = vmatprep.subr.bf16.mxu0 %v2769
    %3976 = vmatpush1.bf16.msra.mxu0 %v2768
    %3977 = vmatprep.subr.bf16.mxu0 %v2777
    %3978 = vmatpush1.bf16.msra.mxu0 %v2776
    %3979 = vmatprep.subr.bf16.mxu0 %v2785
    %3980 = vmatpush1.bf16.msra.mxu0 %v2784
    %3981 = vmatprep.subr.bf16.mxu0 %v2793
    %3982 = vmatpush1.bf16.msra.mxu0 %v2792
    %3983 = vmatprep.mubr.bf16.mxu0 %v191
    %3984 = vmatmul.mubr.bf16.gmra.mrb[0].mxu0 %v190
    %v3985 = vpop.f32.mrb[0].mxu0
    %v3986 = vadd.f32 %v3943, %v3985
    %v3987 = vpop.f32.mrb[0].mxu0
    %v3988 = vadd.f32 %v3945, %v3987
    %v3989 = vpop.f32.mrb[0].mxu0
    %v3990 = vadd.f32 %v3947, %v3989
    %v3991 = vpop.f32.mrb[0].mxu0
    %v3992 = vadd.f32 %v3949, %v3991
    %3993 = vdwg.mxu0
    %v3994 = vmax.f32 %v3470, 0.0
    %v3995 = vmax.f32 %v3472, 0.0
    %v3996 = vmax.f32 %v3642, 0.0
    %v3997 = vmax.f32 %v3644, 0.0
    %v3998 = vmax.f32 %v3814, 0.0
    %v3999 = vmax.f32 %v3816, 0.0
    %v4000 = vmax.f32 %v3986, 0.0
    %v4001 = vmax.f32 %v3988, 0.0
    %v4002 = vmax.f32 %v3474, 0.0
    %v4003 = vmax.f32 %v3476, 0.0
    %v4004 = vmax.f32 %v3646, 0.0
    %v4005 = vmax.f32 %v3648, 0.0
    %v4006 = vmax.f32 %v3818, 0.0
    %v4007 = vmax.f32 %v3820, 0.0
    %v4008 = vmax.f32 %v3990, 0.0
    %v4009 = vmax.f32 %v3992, 0.0
    %v4010 = vpack.c.bf16 %v4002, %v3994
    %v4011 = vpack.c.bf16 %v4003, %v3995
    %v4012 = vpack.c.bf16 %v4004, %v3996
    %v4013 = vpack.c.bf16 %v4005, %v3997
    %v4014 = vpack.c.bf16 %v4006, %v3998
    %v4015 = vpack.c.bf16 %v4007, %v3999
    %v4016 = vpack.c.bf16 %v4008, %v4000
    %v4017 = vpack.c.bf16 %v4009, %v4001
    %v4018 = vld [vmem:[#allocation10] sm:$0xff]
    %v4019 = vld [vmem:[#allocation10 + $0x8] sm:$0xff]
    %v4020 = vld [vmem:[#allocation10 + $0x10] sm:$0xff]
    %v4021 = vld [vmem:[#allocation10 + $0x18] sm:$0xff]
    %v4022 = vld [vmem:[#allocation10 + $0x20] sm:$0xff]
    %v4023 = vld [vmem:[#allocation10 + $0x28] sm:$0xff]
    %v4024 = vld [vmem:[#allocation10 + $0x30] sm:$0xff]
    %v4025 = vld [vmem:[#allocation10 + $0x38] sm:$0xff]
    %v4026 = vld [vmem:[#allocation10 + $0x40] sm:$0xff]
    %v4027 = vld [vmem:[#allocation10 + $0x48] sm:$0xff]
    %v4028 = vld [vmem:[#allocation10 + $0x50] sm:$0xff]
    %v4029 = vld [vmem:[#allocation10 + $0x58] sm:$0xff]
    %v4030 = vld [vmem:[#allocation10 + $0x60] sm:$0xff]
    %v4031 = vld [vmem:[#allocation10 + $0x68] sm:$0xff]
    %v4032 = vld [vmem:[#allocation10 + $0x70] sm:$0xff]
    %v4033 = vld [vmem:[#allocation10 + $0x78] sm:$0xff]
    %v4034 = vld [vmem:[#allocation10 + $0x80] sm:$0xff]
    %v4035 = vld [vmem:[#allocation10 + $0x88] sm:$0xff]
    %v4036 = vld [vmem:[#allocation10 + $0x90] sm:$0xff]
    %v4037 = vld [vmem:[#allocation10 + $0x98] sm:$0xff]
    %v4038 = vld [vmem:[#allocation10 + $0xa0] sm:$0xff]
    %v4039 = vld [vmem:[#allocation10 + $0xa8] sm:$0xff]
    %v4040 = vld [vmem:[#allocation10 + $0xb0] sm:$0xff]
    %v4041 = vld [vmem:[#allocation10 + $0xb8] sm:$0xff]
    %v4042 = vld [vmem:[#allocation10 + $0xc0] sm:$0xff]
    %v4043 = vld [vmem:[#allocation10 + $0xc8] sm:$0xff]
    %v4044 = vld [vmem:[#allocation10 + $0xd0] sm:$0xff]
    %v4045 = vld [vmem:[#allocation10 + $0xd8] sm:$0xff]
    %v4046 = vld [vmem:[#allocation10 + $0xe0] sm:$0xff]
    %v4047 = vld [vmem:[#allocation10 + $0xe8] sm:$0xff]
    %v4048 = vld [vmem:[#allocation10 + $0xf0] sm:$0xff]
    %v4049 = vld [vmem:[#allocation10 + $0xf8] sm:$0xff]
    %v4050 = vld [vmem:[#allocation10 + $0x100] sm:$0xff]
    %v4051 = vld [vmem:[#allocation10 + $0x108] sm:$0xff]
    %v4052 = vld [vmem:[#allocation10 + $0x110] sm:$0xff]
    %v4053 = vld [vmem:[#allocation10 + $0x118] sm:$0xff]
    %v4054 = vld [vmem:[#allocation10 + $0x120] sm:$0xff]
    %v4055 = vld [vmem:[#allocation10 + $0x128] sm:$0xff]
    %v4056 = vld [vmem:[#allocation10 + $0x130] sm:$0xff]
    %v4057 = vld [vmem:[#allocation10 + $0x138] sm:$0xff]
    %v4058 = vld [vmem:[#allocation10 + $0x140] sm:$0xff]
    %v4059 = vld [vmem:[#allocation10 + $0x148] sm:$0xff]
    %v4060 = vld [vmem:[#allocation10 + $0x150] sm:$0xff]
    %v4061 = vld [vmem:[#allocation10 + $0x158] sm:$0xff]
    %v4062 = vld [vmem:[#allocation10 + $0x160] sm:$0xff]
    %v4063 = vld [vmem:[#allocation10 + $0x168] sm:$0xff]
    %v4064 = vld [vmem:[#allocation10 + $0x170] sm:$0xff]
    %v4065 = vld [vmem:[#allocation10 + $0x178] sm:$0xff]
    %v4066 = vld [vmem:[#allocation10 + $0x180] sm:$0xff]
    %v4067 = vld [vmem:[#allocation10 + $0x188] sm:$0xff]
    %v4068 = vld [vmem:[#allocation10 + $0x190] sm:$0xff]
    %v4069 = vld [vmem:[#allocation10 + $0x198] sm:$0xff]
    %v4070 = vld [vmem:[#allocation10 + $0x1a0] sm:$0xff]
    %v4071 = vld [vmem:[#allocation10 + $0x1a8] sm:$0xff]
    %v4072 = vld [vmem:[#allocation10 + $0x1b0] sm:$0xff]
    %v4073 = vld [vmem:[#allocation10 + $0x1b8] sm:$0xff]
    %v4074 = vld [vmem:[#allocation10 + $0x1c0] sm:$0xff]
    %v4075 = vld [vmem:[#allocation10 + $0x1c8] sm:$0xff]
    %v4076 = vld [vmem:[#allocation10 + $0x1d0] sm:$0xff]
    %v4077 = vld [vmem:[#allocation10 + $0x1d8] sm:$0xff]
    %v4078 = vld [vmem:[#allocation10 + $0x1e0] sm:$0xff]
    %v4079 = vld [vmem:[#allocation10 + $0x1e8] sm:$0xff]
    %v4080 = vld [vmem:[#allocation10 + $0x1f0] sm:$0xff]
    %v4081 = vld [vmem:[#allocation10 + $0x1f8] sm:$0xff]
    %v4082 = vld [vmem:[#allocation10 + $0x200] sm:$0xff]
    %v4083 = vld [vmem:[#allocation10 + $0x208] sm:$0xff]
    %v4084 = vld [vmem:[#allocation10 + $0x210] sm:$0xff]
    %v4085 = vld [vmem:[#allocation10 + $0x218] sm:$0xff]
    %v4086 = vld [vmem:[#allocation10 + $0x220] sm:$0xff]
    %v4087 = vld [vmem:[#allocation10 + $0x228] sm:$0xff]
    %v4088 = vld [vmem:[#allocation10 + $0x230] sm:$0xff]
    %v4089 = vld [vmem:[#allocation10 + $0x238] sm:$0xff]
    %v4090 = vld [vmem:[#allocation10 + $0x240] sm:$0xff]
    %v4091 = vld [vmem:[#allocation10 + $0x248] sm:$0xff]
    %v4092 = vld [vmem:[#allocation10 + $0x250] sm:$0xff]
    %v4093 = vld [vmem:[#allocation10 + $0x258] sm:$0xff]
    %v4094 = vld [vmem:[#allocation10 + $0x260] sm:$0xff]
    %v4095 = vld [vmem:[#allocation10 + $0x268] sm:$0xff]
    %v4096 = vld [vmem:[#allocation10 + $0x270] sm:$0xff]
    %v4097 = vld [vmem:[#allocation10 + $0x278] sm:$0xff]
    %v4098 = vld [vmem:[#allocation10 + $0x280] sm:$0xff]
    %v4099 = vld [vmem:[#allocation10 + $0x288] sm:$0xff]
    %v4100 = vld [vmem:[#allocation10 + $0x290] sm:$0xff]
    %v4101 = vld [vmem:[#allocation10 + $0x298] sm:$0xff]
    %v4102 = vld [vmem:[#allocation10 + $0x2a0] sm:$0xff]
    %v4103 = vld [vmem:[#allocation10 + $0x2a8] sm:$0xff]
    %v4104 = vld [vmem:[#allocation10 + $0x2b0] sm:$0xff]
    %v4105 = vld [vmem:[#allocation10 + $0x2b8] sm:$0xff]
    %v4106 = vld [vmem:[#allocation10 + $0x2c0] sm:$0xff]
    %v4107 = vld [vmem:[#allocation10 + $0x2c8] sm:$0xff]
    %v4108 = vld [vmem:[#allocation10 + $0x2d0] sm:$0xff]
    %v4109 = vld [vmem:[#allocation10 + $0x2d8] sm:$0xff]
    %v4110 = vld [vmem:[#allocation10 + $0x2e0] sm:$0xff]
    %v4111 = vld [vmem:[#allocation10 + $0x2e8] sm:$0xff]
    %v4112 = vld [vmem:[#allocation10 + $0x2f0] sm:$0xff]
    %v4113 = vld [vmem:[#allocation10 + $0x2f8] sm:$0xff]
    %v4114 = vld [vmem:[#allocation10 + $0x300] sm:$0xff]
    %v4115 = vld [vmem:[#allocation10 + $0x308] sm:$0xff]
    %v4116 = vld [vmem:[#allocation10 + $0x310] sm:$0xff]
    %v4117 = vld [vmem:[#allocation10 + $0x318] sm:$0xff]
    %v4118 = vld [vmem:[#allocation10 + $0x320] sm:$0xff]
    %v4119 = vld [vmem:[#allocation10 + $0x328] sm:$0xff]
    %v4120 = vld [vmem:[#allocation10 + $0x330] sm:$0xff]
    %v4121 = vld [vmem:[#allocation10 + $0x338] sm:$0xff]
    %v4122 = vld [vmem:[#allocation10 + $0x340] sm:$0xff]
    %v4123 = vld [vmem:[#allocation10 + $0x348] sm:$0xff]
    %v4124 = vld [vmem:[#allocation10 + $0x350] sm:$0xff]
    %v4125 = vld [vmem:[#allocation10 + $0x358] sm:$0xff]
    %v4126 = vld [vmem:[#allocation10 + $0x360] sm:$0xff]
    %v4127 = vld [vmem:[#allocation10 + $0x368] sm:$0xff]
    %v4128 = vld [vmem:[#allocation10 + $0x370] sm:$0xff]
    %v4129 = vld [vmem:[#allocation10 + $0x378] sm:$0xff]
    %v4130 = vld [vmem:[#allocation10 + $0x380] sm:$0xff]
    %v4131 = vld [vmem:[#allocation10 + $0x388] sm:$0xff]
    %v4132 = vld [vmem:[#allocation10 + $0x390] sm:$0xff]
    %v4133 = vld [vmem:[#allocation10 + $0x398] sm:$0xff]
    %v4134 = vld [vmem:[#allocation10 + $0x3a0] sm:$0xff]
    %v4135 = vld [vmem:[#allocation10 + $0x3a8] sm:$0xff]
    %v4136 = vld [vmem:[#allocation10 + $0x3b0] sm:$0xff]
    %v4137 = vld [vmem:[#allocation10 + $0x3b8] sm:$0xff]
    %v4138 = vld [vmem:[#allocation10 + $0x3c0] sm:$0xff]
    %v4139 = vld [vmem:[#allocation10 + $0x3c8] sm:$0xff]
    %v4140 = vld [vmem:[#allocation10 + $0x3d0] sm:$0xff]
    %v4141 = vld [vmem:[#allocation10 + $0x3d8] sm:$0xff]
    %v4142 = vld [vmem:[#allocation10 + $0x3e0] sm:$0xff]
    %v4143 = vld [vmem:[#allocation10 + $0x3e8] sm:$0xff]
    %v4144 = vld [vmem:[#allocation10 + $0x3f0] sm:$0xff]
    %v4145 = vld [vmem:[#allocation10 + $0x3f8] sm:$0xff]
    %v4146 = vld [vmem:[#allocation11] sm:$0x3]
    %v4148 = vlaneseq
    %v4149 = vshrl.u32 %v4148, 7
    %v4150 = vsub.s32 0, %v4149
    %v4151 = vrot.slane %v4146, %v4150
    %v4152 = vlaneseq
    %v4153 = vshrl.u32 %v4152, 7
    %v4154 = vsub.s32 1, %v4153
    %v4155 = vrot.slane %v4146, %v4154
    %v4286 = vunpack.c.l.b16 %v4018
    %v4287 = vunpack.c.h.b16 %v4018
    %v4288 = vunpack.c.l.b16 %v4019
    %v4289 = vunpack.c.h.b16 %v4019
    %v4290 = vunpack.c.l.b16 %v4020
    %v4291 = vunpack.c.h.b16 %v4020
    %v4292 = vunpack.c.l.b16 %v4021
    %v4293 = vunpack.c.h.b16 %v4021
    %v4294 = vunpack.c.l.b16 %v4022
    %v4295 = vunpack.c.h.b16 %v4022
    %v4296 = vunpack.c.l.b16 %v4023
    %v4297 = vunpack.c.h.b16 %v4023
    %v4298 = vunpack.c.l.b16 %v4024
    %v4299 = vunpack.c.h.b16 %v4024
    %v4300 = vunpack.c.l.b16 %v4025
    %v4301 = vunpack.c.h.b16 %v4025
    %v4302 = vunpack.c.l.b16 %v4026
    %v4303 = vunpack.c.h.b16 %v4026
    %v4304 = vunpack.c.l.b16 %v4027
    %v4305 = vunpack.c.h.b16 %v4027
    %v4306 = vunpack.c.l.b16 %v4028
    %v4307 = vunpack.c.h.b16 %v4028
    %v4308 = vunpack.c.l.b16 %v4029
    %v4309 = vunpack.c.h.b16 %v4029
    %v4310 = vunpack.c.l.b16 %v4030
    %v4311 = vunpack.c.h.b16 %v4030
    %v4312 = vunpack.c.l.b16 %v4031
    %v4313 = vunpack.c.h.b16 %v4031
    %v4314 = vunpack.c.l.b16 %v4032
    %v4315 = vunpack.c.h.b16 %v4032
    %v4316 = vunpack.c.l.b16 %v4033
    %v4317 = vunpack.c.h.b16 %v4033
    %v4318 = vunpack.c.l.b16 %v4034
    %v4319 = vunpack.c.h.b16 %v4034
    %v4320 = vunpack.c.l.b16 %v4035
    %v4321 = vunpack.c.h.b16 %v4035
    %v4322 = vunpack.c.l.b16 %v4036
    %v4323 = vunpack.c.h.b16 %v4036
    %v4324 = vunpack.c.l.b16 %v4037
    %v4325 = vunpack.c.h.b16 %v4037
    %v4326 = vunpack.c.l.b16 %v4038
    %v4327 = vunpack.c.h.b16 %v4038
    %v4328 = vunpack.c.l.b16 %v4039
    %v4329 = vunpack.c.h.b16 %v4039
    %v4330 = vunpack.c.l.b16 %v4040
    %v4331 = vunpack.c.h.b16 %v4040
    %v4332 = vunpack.c.l.b16 %v4041
    %v4333 = vunpack.c.h.b16 %v4041
    %v4334 = vunpack.c.l.b16 %v4042
    %v4335 = vunpack.c.h.b16 %v4042
    %v4336 = vunpack.c.l.b16 %v4043
    %v4337 = vunpack.c.h.b16 %v4043
    %v4338 = vunpack.c.l.b16 %v4044
    %v4339 = vunpack.c.h.b16 %v4044
    %v4340 = vunpack.c.l.b16 %v4045
    %v4341 = vunpack.c.h.b16 %v4045
    %v4342 = vunpack.c.l.b16 %v4046
    %v4343 = vunpack.c.h.b16 %v4046
    %v4344 = vunpack.c.l.b16 %v4047
    %v4345 = vunpack.c.h.b16 %v4047
    %v4346 = vunpack.c.l.b16 %v4048
    %v4347 = vunpack.c.h.b16 %v4048
    %v4348 = vunpack.c.l.b16 %v4049
    %v4349 = vunpack.c.h.b16 %v4049
    %v4350 = vunpack.c.l.b16 %v4050
    %v4351 = vunpack.c.h.b16 %v4050
    %v4352 = vunpack.c.l.b16 %v4051
    %v4353 = vunpack.c.h.b16 %v4051
    %v4354 = vunpack.c.l.b16 %v4052
    %v4355 = vunpack.c.h.b16 %v4052
    %v4356 = vunpack.c.l.b16 %v4053
    %v4357 = vunpack.c.h.b16 %v4053
    %v4358 = vunpack.c.l.b16 %v4054
    %v4359 = vunpack.c.h.b16 %v4054
    %v4360 = vunpack.c.l.b16 %v4055
    %v4361 = vunpack.c.h.b16 %v4055
    %v4362 = vunpack.c.l.b16 %v4056
    %v4363 = vunpack.c.h.b16 %v4056
    %v4364 = vunpack.c.l.b16 %v4057
    %v4365 = vunpack.c.h.b16 %v4057
    %v4366 = vunpack.c.l.b16 %v4058
    %v4367 = vunpack.c.h.b16 %v4058
    %v4368 = vunpack.c.l.b16 %v4059
    %v4369 = vunpack.c.h.b16 %v4059
    %v4370 = vunpack.c.l.b16 %v4060
    %v4371 = vunpack.c.h.b16 %v4060
    %v4372 = vunpack.c.l.b16 %v4061
    %v4373 = vunpack.c.h.b16 %v4061
    %v4374 = vunpack.c.l.b16 %v4062
    %v4375 = vunpack.c.h.b16 %v4062
    %v4376 = vunpack.c.l.b16 %v4063
    %v4377 = vunpack.c.h.b16 %v4063
    %v4378 = vunpack.c.l.b16 %v4064
    %v4379 = vunpack.c.h.b16 %v4064
    %v4380 = vunpack.c.l.b16 %v4065
    %v4381 = vunpack.c.h.b16 %v4065
    %v4382 = vunpack.c.l.b16 %v4066
    %v4383 = vunpack.c.h.b16 %v4066
    %v4384 = vunpack.c.l.b16 %v4067
    %v4385 = vunpack.c.h.b16 %v4067
    %v4386 = vunpack.c.l.b16 %v4068
    %v4387 = vunpack.c.h.b16 %v4068
    %v4388 = vunpack.c.l.b16 %v4069
    %v4389 = vunpack.c.h.b16 %v4069
    %v4390 = vunpack.c.l.b16 %v4070
    %v4391 = vunpack.c.h.b16 %v4070
    %v4392 = vunpack.c.l.b16 %v4071
    %v4393 = vunpack.c.h.b16 %v4071
    %v4394 = vunpack.c.l.b16 %v4072
    %v4395 = vunpack.c.h.b16 %v4072
    %v4396 = vunpack.c.l.b16 %v4073
    %v4397 = vunpack.c.h.b16 %v4073
    %v4398 = vunpack.c.l.b16 %v4074
    %v4399 = vunpack.c.h.b16 %v4074
    %v4400 = vunpack.c.l.b16 %v4075
    %v4401 = vunpack.c.h.b16 %v4075
    %v4402 = vunpack.c.l.b16 %v4076
    %v4403 = vunpack.c.h.b16 %v4076
    %v4404 = vunpack.c.l.b16 %v4077
    %v4405 = vunpack.c.h.b16 %v4077
    %v4406 = vunpack.c.l.b16 %v4078
    %v4407 = vunpack.c.h.b16 %v4078
    %v4408 = vunpack.c.l.b16 %v4079
    %v4409 = vunpack.c.h.b16 %v4079
    %v4410 = vunpack.c.l.b16 %v4080
    %v4411 = vunpack.c.h.b16 %v4080
    %v4412 = vunpack.c.l.b16 %v4081
    %v4413 = vunpack.c.h.b16 %v4081
    %v4414 = vunpack.c.l.b16 %v4082
    %v4415 = vunpack.c.h.b16 %v4082
    %v4416 = vunpack.c.l.b16 %v4083
    %v4417 = vunpack.c.h.b16 %v4083
    %v4418 = vunpack.c.l.b16 %v4084
    %v4419 = vunpack.c.h.b16 %v4084
    %v4420 = vunpack.c.l.b16 %v4085
    %v4421 = vunpack.c.h.b16 %v4085
    %v4422 = vunpack.c.l.b16 %v4086
    %v4423 = vunpack.c.h.b16 %v4086
    %v4424 = vunpack.c.l.b16 %v4087
    %v4425 = vunpack.c.h.b16 %v4087
    %v4426 = vunpack.c.l.b16 %v4088
    %v4427 = vunpack.c.h.b16 %v4088
    %v4428 = vunpack.c.l.b16 %v4089
    %v4429 = vunpack.c.h.b16 %v4089
    %v4430 = vunpack.c.l.b16 %v4090
    %v4431 = vunpack.c.h.b16 %v4090
    %v4432 = vunpack.c.l.b16 %v4091
    %v4433 = vunpack.c.h.b16 %v4091
    %v4434 = vunpack.c.l.b16 %v4092
    %v4435 = vunpack.c.h.b16 %v4092
    %v4436 = vunpack.c.l.b16 %v4093
    %v4437 = vunpack.c.h.b16 %v4093
    %v4438 = vunpack.c.l.b16 %v4094
    %v4439 = vunpack.c.h.b16 %v4094
    %v4440 = vunpack.c.l.b16 %v4095
    %v4441 = vunpack.c.h.b16 %v4095
    %v4442 = vunpack.c.l.b16 %v4096
    %v4443 = vunpack.c.h.b16 %v4096
    %v4444 = vunpack.c.l.b16 %v4097
    %v4445 = vunpack.c.h.b16 %v4097
    %v4446 = vunpack.c.l.b16 %v4098
    %v4447 = vunpack.c.h.b16 %v4098
    %v4448 = vunpack.c.l.b16 %v4099
    %v4449 = vunpack.c.h.b16 %v4099
    %v4450 = vunpack.c.l.b16 %v4100
    %v4451 = vunpack.c.h.b16 %v4100
    %v4452 = vunpack.c.l.b16 %v4101
    %v4453 = vunpack.c.h.b16 %v4101
    %v4454 = vunpack.c.l.b16 %v4102
    %v4455 = vunpack.c.h.b16 %v4102
    %v4456 = vunpack.c.l.b16 %v4103
    %v4457 = vunpack.c.h.b16 %v4103
    %v4458 = vunpack.c.l.b16 %v4104
    %v4459 = vunpack.c.h.b16 %v4104
    %v4460 = vunpack.c.l.b16 %v4105
    %v4461 = vunpack.c.h.b16 %v4105
    %v4462 = vunpack.c.l.b16 %v4106
    %v4463 = vunpack.c.h.b16 %v4106
    %v4464 = vunpack.c.l.b16 %v4107
    %v4465 = vunpack.c.h.b16 %v4107
    %v4466 = vunpack.c.l.b16 %v4108
    %v4467 = vunpack.c.h.b16 %v4108
    %v4468 = vunpack.c.l.b16 %v4109
    %v4469 = vunpack.c.h.b16 %v4109
    %v4470 = vunpack.c.l.b16 %v4110
    %v4471 = vunpack.c.h.b16 %v4110
    %v4472 = vunpack.c.l.b16 %v4111
    %v4473 = vunpack.c.h.b16 %v4111
    %v4474 = vunpack.c.l.b16 %v4112
    %v4475 = vunpack.c.h.b16 %v4112
    %v4476 = vunpack.c.l.b16 %v4113
    %v4477 = vunpack.c.h.b16 %v4113
    %v4478 = vunpack.c.l.b16 %v4114
    %v4479 = vunpack.c.h.b16 %v4114
    %v4480 = vunpack.c.l.b16 %v4115
    %v4481 = vunpack.c.h.b16 %v4115
    %v4482 = vunpack.c.l.b16 %v4116
    %v4483 = vunpack.c.h.b16 %v4116
    %v4484 = vunpack.c.l.b16 %v4117
    %v4485 = vunpack.c.h.b16 %v4117
    %v4486 = vunpack.c.l.b16 %v4118
    %v4487 = vunpack.c.h.b16 %v4118
    %v4488 = vunpack.c.l.b16 %v4119
    %v4489 = vunpack.c.h.b16 %v4119
    %v4490 = vunpack.c.l.b16 %v4120
    %v4491 = vunpack.c.h.b16 %v4120
    %v4492 = vunpack.c.l.b16 %v4121
    %v4493 = vunpack.c.h.b16 %v4121
    %v4494 = vunpack.c.l.b16 %v4122
    %v4495 = vunpack.c.h.b16 %v4122
    %v4496 = vunpack.c.l.b16 %v4123
    %v4497 = vunpack.c.h.b16 %v4123
    %v4498 = vunpack.c.l.b16 %v4124
    %v4499 = vunpack.c.h.b16 %v4124
    %v4500 = vunpack.c.l.b16 %v4125
    %v4501 = vunpack.c.h.b16 %v4125
    %v4502 = vunpack.c.l.b16 %v4126
    %v4503 = vunpack.c.h.b16 %v4126
    %v4504 = vunpack.c.l.b16 %v4127
    %v4505 = vunpack.c.h.b16 %v4127
    %v4506 = vunpack.c.l.b16 %v4128
    %v4507 = vunpack.c.h.b16 %v4128
    %v4508 = vunpack.c.l.b16 %v4129
    %v4509 = vunpack.c.h.b16 %v4129
    %v4510 = vunpack.c.l.b16 %v4130
    %v4511 = vunpack.c.h.b16 %v4130
    %v4512 = vunpack.c.l.b16 %v4131
    %v4513 = vunpack.c.h.b16 %v4131
    %v4514 = vunpack.c.l.b16 %v4132
    %v4515 = vunpack.c.h.b16 %v4132
    %v4516 = vunpack.c.l.b16 %v4133
    %v4517 = vunpack.c.h.b16 %v4133
    %v4518 = vunpack.c.l.b16 %v4134
    %v4519 = vunpack.c.h.b16 %v4134
    %v4520 = vunpack.c.l.b16 %v4135
    %v4521 = vunpack.c.h.b16 %v4135
    %v4522 = vunpack.c.l.b16 %v4136
    %v4523 = vunpack.c.h.b16 %v4136
    %v4524 = vunpack.c.l.b16 %v4137
    %v4525 = vunpack.c.h.b16 %v4137
    %v4526 = vunpack.c.l.b16 %v4138
    %v4527 = vunpack.c.h.b16 %v4138
    %v4528 = vunpack.c.l.b16 %v4139
    %v4529 = vunpack.c.h.b16 %v4139
    %v4530 = vunpack.c.l.b16 %v4140
    %v4531 = vunpack.c.h.b16 %v4140
    %v4532 = vunpack.c.l.b16 %v4141
    %v4533 = vunpack.c.h.b16 %v4141
    %v4534 = vunpack.c.l.b16 %v4142
    %v4535 = vunpack.c.h.b16 %v4142
    %v4536 = vunpack.c.l.b16 %v4143
    %v4537 = vunpack.c.h.b16 %v4143
    %v4538 = vunpack.c.l.b16 %v4144
    %v4539 = vunpack.c.h.b16 %v4144
    %v4540 = vunpack.c.l.b16 %v4145
    %v4541 = vunpack.c.h.b16 %v4145
    %v4542 = vpack.c.b16 %v4288, %v4286
    %v4543 = vpack.c.b16 %v4289, %v4287
    %v4544 = vpack.c.b16 %v4292, %v4290
    %v4545 = vpack.c.b16 %v4293, %v4291
    %v4546 = vpack.c.b16 %v4296, %v4294
    %v4547 = vpack.c.b16 %v4297, %v4295
    %v4548 = vpack.c.b16 %v4300, %v4298
    %v4549 = vpack.c.b16 %v4301, %v4299
    %v4550 = vpack.c.b16 %v4304, %v4302
    %v4551 = vpack.c.b16 %v4305, %v4303
    %v4552 = vpack.c.b16 %v4308, %v4306
    %v4553 = vpack.c.b16 %v4309, %v4307
    %v4554 = vpack.c.b16 %v4312, %v4310
    %v4555 = vpack.c.b16 %v4313, %v4311
    %v4556 = vpack.c.b16 %v4316, %v4314
    %v4557 = vpack.c.b16 %v4317, %v4315
    %v4558 = vpack.c.b16 %v4320, %v4318
    %v4559 = vpack.c.b16 %v4321, %v4319
    %v4560 = vpack.c.b16 %v4324, %v4322
    %v4561 = vpack.c.b16 %v4325, %v4323
    %v4562 = vpack.c.b16 %v4328, %v4326
    %v4563 = vpack.c.b16 %v4329, %v4327
    %v4564 = vpack.c.b16 %v4332, %v4330
    %v4565 = vpack.c.b16 %v4333, %v4331
    %v4566 = vpack.c.b16 %v4336, %v4334
    %v4567 = vpack.c.b16 %v4337, %v4335
    %v4568 = vpack.c.b16 %v4340, %v4338
    %v4569 = vpack.c.b16 %v4341, %v4339
    %v4570 = vpack.c.b16 %v4344, %v4342
    %v4571 = vpack.c.b16 %v4345, %v4343
    %v4572 = vpack.c.b16 %v4348, %v4346
    %v4573 = vpack.c.b16 %v4349, %v4347
    %v4574 = vpack.c.b16 %v4352, %v4350
    %v4575 = vpack.c.b16 %v4353, %v4351
    %v4576 = vpack.c.b16 %v4356, %v4354
    %v4577 = vpack.c.b16 %v4357, %v4355
    %v4578 = vpack.c.b16 %v4360, %v4358
    %v4579 = vpack.c.b16 %v4361, %v4359
    %v4580 = vpack.c.b16 %v4364, %v4362
    %v4581 = vpack.c.b16 %v4365, %v4363
    %v4582 = vpack.c.b16 %v4368, %v4366
    %v4583 = vpack.c.b16 %v4369, %v4367
    %v4584 = vpack.c.b16 %v4372, %v4370
    %v4585 = vpack.c.b16 %v4373, %v4371
    %v4586 = vpack.c.b16 %v4376, %v4374
    %v4587 = vpack.c.b16 %v4377, %v4375
    %v4588 = vpack.c.b16 %v4380, %v4378
    %v4589 = vpack.c.b16 %v4381, %v4379
    %v4590 = vpack.c.b16 %v4384, %v4382
    %v4591 = vpack.c.b16 %v4385, %v4383
    %v4592 = vpack.c.b16 %v4388, %v4386
    %v4593 = vpack.c.b16 %v4389, %v4387
    %v4594 = vpack.c.b16 %v4392, %v4390
    %v4595 = vpack.c.b16 %v4393, %v4391
    %v4596 = vpack.c.b16 %v4396, %v4394
    %v4597 = vpack.c.b16 %v4397, %v4395
    %v4598 = vpack.c.b16 %v4400, %v4398
    %v4599 = vpack.c.b16 %v4401, %v4399
    %v4600 = vpack.c.b16 %v4404, %v4402
    %v4601 = vpack.c.b16 %v4405, %v4403
    %v4602 = vpack.c.b16 %v4408, %v4406
    %v4603 = vpack.c.b16 %v4409, %v4407
    %v4604 = vpack.c.b16 %v4412, %v4410
    %v4605 = vpack.c.b16 %v4413, %v4411
    %v4606 = vpack.c.b16 %v4416, %v4414
    %v4607 = vpack.c.b16 %v4417, %v4415
    %v4608 = vpack.c.b16 %v4420, %v4418
    %v4609 = vpack.c.b16 %v4421, %v4419
    %v4610 = vpack.c.b16 %v4424, %v4422
    %v4611 = vpack.c.b16 %v4425, %v4423
    %v4612 = vpack.c.b16 %v4428, %v4426
    %v4613 = vpack.c.b16 %v4429, %v4427
    %v4614 = vpack.c.b16 %v4432, %v4430
    %v4615 = vpack.c.b16 %v4433, %v4431
    %v4616 = vpack.c.b16 %v4436, %v4434
    %v4617 = vpack.c.b16 %v4437, %v4435
    %v4618 = vpack.c.b16 %v4440, %v4438
    %v4619 = vpack.c.b16 %v4441, %v4439
    %v4620 = vpack.c.b16 %v4444, %v4442
    %v4621 = vpack.c.b16 %v4445, %v4443
    %v4622 = vpack.c.b16 %v4448, %v4446
    %v4623 = vpack.c.b16 %v4449, %v4447
    %v4624 = vpack.c.b16 %v4452, %v4450
    %v4625 = vpack.c.b16 %v4453, %v4451
    %v4626 = vpack.c.b16 %v4456, %v4454
    %v4627 = vpack.c.b16 %v4457, %v4455
    %v4628 = vpack.c.b16 %v4460, %v4458
    %v4629 = vpack.c.b16 %v4461, %v4459
    %v4630 = vpack.c.b16 %v4464, %v4462
    %v4631 = vpack.c.b16 %v4465, %v4463
    %v4632 = vpack.c.b16 %v4468, %v4466
    %v4633 = vpack.c.b16 %v4469, %v4467
    %v4634 = vpack.c.b16 %v4472, %v4470
    %v4635 = vpack.c.b16 %v4473, %v4471
    %v4636 = vpack.c.b16 %v4476, %v4474
    %v4637 = vpack.c.b16 %v4477, %v4475
    %v4638 = vpack.c.b16 %v4480, %v4478
    %v4639 = vpack.c.b16 %v4481, %v4479
    %v4640 = vpack.c.b16 %v4484, %v4482
    %v4641 = vpack.c.b16 %v4485, %v4483
    %v4642 = vpack.c.b16 %v4488, %v4486
    %v4643 = vpack.c.b16 %v4489, %v4487
    %v4644 = vpack.c.b16 %v4492, %v4490
    %v4645 = vpack.c.b16 %v4493, %v4491
    %v4646 = vpack.c.b16 %v4496, %v4494
    %v4647 = vpack.c.b16 %v4497, %v4495
    %v4648 = vpack.c.b16 %v4500, %v4498
    %v4649 = vpack.c.b16 %v4501, %v4499
    %v4650 = vpack.c.b16 %v4504, %v4502
    %v4651 = vpack.c.b16 %v4505, %v4503
    %v4652 = vpack.c.b16 %v4508, %v4506
    %v4653 = vpack.c.b16 %v4509, %v4507
    %v4654 = vpack.c.b16 %v4512, %v4510
    %v4655 = vpack.c.b16 %v4513, %v4511
    %v4656 = vpack.c.b16 %v4516, %v4514
    %v4657 = vpack.c.b16 %v4517, %v4515
    %v4658 = vpack.c.b16 %v4520, %v4518
    %v4659 = vpack.c.b16 %v4521, %v4519
    %v4660 = vpack.c.b16 %v4524, %v4522
    %v4661 = vpack.c.b16 %v4525, %v4523
    %v4662 = vpack.c.b16 %v4528, %v4526
    %v4663 = vpack.c.b16 %v4529, %v4527
    %v4664 = vpack.c.b16 %v4532, %v4530
    %v4665 = vpack.c.b16 %v4533, %v4531
    %v4666 = vpack.c.b16 %v4536, %v4534
    %v4667 = vpack.c.b16 %v4537, %v4535
    %v4668 = vpack.c.b16 %v4540, %v4538
    %v4669 = vpack.c.b16 %v4541, %v4539
    %4798 = vmatprep.subr.bf16.mxu0 %v4543
    %4799 = vmatpush1.bf16.msra.mxu0 %v4542
    %4800 = vmatprep.subr.bf16.mxu0 %v4545
    %4801 = vmatpush1.bf16.msra.mxu0 %v4544
    %4802 = vmatprep.subr.bf16.mxu0 %v4547
    %4803 = vmatpush1.bf16.msra.mxu0 %v4546
    %4804 = vmatprep.subr.bf16.mxu0 %v4549
    %4805 = vmatpush1.bf16.msra.mxu0 %v4548
    %4806 = vmatprep.subr.bf16.mxu0 %v4551
    %4807 = vmatpush1.bf16.msra.mxu0 %v4550
    %4808 = vmatprep.subr.bf16.mxu0 %v4553
    %4809 = vmatpush1.bf16.msra.mxu0 %v4552
    %4810 = vmatprep.subr.bf16.mxu0 %v4555
    %4811 = vmatpush1.bf16.msra.mxu0 %v4554
    %4812 = vmatprep.subr.bf16.mxu0 %v4557
    %4813 = vmatpush1.bf16.msra.mxu0 %v4556
    %4814 = vmatprep.subr.bf16.mxu0 %v4559
    %4815 = vmatpush1.bf16.msra.mxu0 %v4558
    %4816 = vmatprep.subr.bf16.mxu0 %v4561
    %4817 = vmatpush1.bf16.msra.mxu0 %v4560
    %4818 = vmatprep.subr.bf16.mxu0 %v4563
    %4819 = vmatpush1.bf16.msra.mxu0 %v4562
    %4820 = vmatprep.subr.bf16.mxu0 %v4565
    %4821 = vmatpush1.bf16.msra.mxu0 %v4564
    %4822 = vmatprep.subr.bf16.mxu0 %v4567
    %4823 = vmatpush1.bf16.msra.mxu0 %v4566
    %4824 = vmatprep.subr.bf16.mxu0 %v4569
    %4825 = vmatpush1.bf16.msra.mxu0 %v4568
    %4826 = vmatprep.subr.bf16.mxu0 %v4571
    %4827 = vmatpush1.bf16.msra.mxu0 %v4570
    %4828 = vmatprep.subr.bf16.mxu0 %v4573
    %4829 = vmatpush1.bf16.msra.mxu0 %v4572
    %4830 = vmatprep.mubr.bf16.mxu0 %v4011
    %4831 = vmatmul.mubr.bf16.gmra.mrb[0].mxu0 %v4010
    %v4832 = vpop.f32.mrb[0].mxu0
    %v4833 = vadd.f32 %v4151, %v4832
    %v4834 = vpop.f32.mrb[0].mxu0
    %v4835 = vadd.f32 %v4155, %v4834
    %v4836 = vpop.f32.mrb[0].mxu0
    %v4837 = vadd.f32 %v4151, %v4836
    %v4838 = vpop.f32.mrb[0].mxu0
    %v4839 = vadd.f32 %v4155, %v4838
    %4840 = vdwg.mxu0
    %4841 = vmatprep.subr.bf16.mxu0 %v4575
    %4842 = vmatpush1.bf16.msra.mxu0 %v4574
    %4843 = vmatprep.subr.bf16.mxu0 %v4577
    %4844 = vmatpush1.bf16.msra.mxu0 %v4576
    %4845 = vmatprep.subr.bf16.mxu0 %v4579
    %4846 = vmatpush1.bf16.msra.mxu0 %v4578
    %4847 = vmatprep.subr.bf16.mxu0 %v4581
    %4848 = vmatpush1.bf16.msra.mxu0 %v4580
    %4849 = vmatprep.subr.bf16.mxu0 %v4583
    %4850 = vmatpush1.bf16.msra.mxu0 %v4582
    %4851 = vmatprep.subr.bf16.mxu0 %v4585
    %4852 = vmatpush1.bf16.msra.mxu0 %v4584
    %4853 = vmatprep.subr.bf16.mxu0 %v4587
    %4854 = vmatpush1.bf16.msra.mxu0 %v4586
    %4855 = vmatprep.subr.bf16.mxu0 %v4589
    %4856 = vmatpush1.bf16.msra.mxu0 %v4588
    %4857 = vmatprep.subr.bf16.mxu0 %v4591
    %4858 = vmatpush1.bf16.msra.mxu0 %v4590
    %4859 = vmatprep.subr.bf16.mxu0 %v4593
    %4860 = vmatpush1.bf16.msra.mxu0 %v4592
    %4861 = vmatprep.subr.bf16.mxu0 %v4595
    %4862 = vmatpush1.bf16.msra.mxu0 %v4594
    %4863 = vmatprep.subr.bf16.mxu0 %v4597
    %4864 = vmatpush1.bf16.msra.mxu0 %v4596
    %4865 = vmatprep.subr.bf16.mxu0 %v4599
    %4866 = vmatpush1.bf16.msra.mxu0 %v4598
    %4867 = vmatprep.subr.bf16.mxu0 %v4601
    %4868 = vmatpush1.bf16.msra.mxu0 %v4600
    %4869 = vmatprep.subr.bf16.mxu0 %v4603
    %4870 = vmatpush1.bf16.msra.mxu0 %v4602
    %4871 = vmatprep.subr.bf16.mxu0 %v4605
    %4872 = vmatpush1.bf16.msra.mxu0 %v4604
    %4873 = vmatprep.mubr.bf16.mxu0 %v4013
    %4874 = vmatmul.mubr.bf16.gmra.mrb[0].mxu0 %v4012
    %v4875 = vpop.f32.mrb[0].mxu0
    %v4876 = vadd.f32 %v4833, %v4875
    %v4877 = vpop.f32.mrb[0].mxu0
    %v4878 = vadd.f32 %v4835, %v4877
    %v4879 = vpop.f32.mrb[0].mxu0
    %v4880 = vadd.f32 %v4837, %v4879
    %v4881 = vpop.f32.mrb[0].mxu0
    %v4882 = vadd.f32 %v4839, %v4881
    %4883 = vdwg.mxu0
    %4884 = vmatprep.subr.bf16.mxu0 %v4607
    %4885 = vmatpush1.bf16.msra.mxu0 %v4606
    %4886 = vmatprep.subr.bf16.mxu0 %v4609
    %4887 = vmatpush1.bf16.msra.mxu0 %v4608
    %4888 = vmatprep.subr.bf16.mxu0 %v4611
    %4889 = vmatpush1.bf16.msra.mxu0 %v4610
    %4890 = vmatprep.subr.bf16.mxu0 %v4613
    %4891 = vmatpush1.bf16.msra.mxu0 %v4612
    %4892 = vmatprep.subr.bf16.mxu0 %v4615
    %4893 = vmatpush1.bf16.msra.mxu0 %v4614
    %4894 = vmatprep.subr.bf16.mxu0 %v4617
    %4895 = vmatpush1.bf16.msra.mxu0 %v4616
    %4896 = vmatprep.subr.bf16.mxu0 %v4619
    %4897 = vmatpush1.bf16.msra.mxu0 %v4618
    %4898 = vmatprep.subr.bf16.mxu0 %v4621
    %4899 = vmatpush1.bf16.msra.mxu0 %v4620
    %4900 = vmatprep.subr.bf16.mxu0 %v4623
    %4901 = vmatpush1.bf16.msra.mxu0 %v4622
    %4902 = vmatprep.subr.bf16.mxu0 %v4625
    %4903 = vmatpush1.bf16.msra.mxu0 %v4624
    %4904 = vmatprep.subr.bf16.mxu0 %v4627
    %4905 = vmatpush1.bf16.msra.mxu0 %v4626
    %4906 = vmatprep.subr.bf16.mxu0 %v4629
    %4907 = vmatpush1.bf16.msra.mxu0 %v4628
    %4908 = vmatprep.subr.bf16.mxu0 %v4631
    %4909 = vmatpush1.bf16.msra.mxu0 %v4630
    %4910 = vmatprep.subr.bf16.mxu0 %v4633
    %4911 = vmatpush1.bf16.msra.mxu0 %v4632
    %4912 = vmatprep.subr.bf16.mxu0 %v4635
    %4913 = vmatpush1.bf16.msra.mxu0 %v4634
    %4914 = vmatprep.subr.bf16.mxu0 %v4637
    %4915 = vmatpush1.bf16.msra.mxu0 %v4636
    %4916 = vmatprep.mubr.bf16.mxu0 %v4015
    %4917 = vmatmul.mubr.bf16.gmra.mrb[0].mxu0 %v4014
    %v4918 = vpop.f32.mrb[0].mxu0
    %v4919 = vadd.f32 %v4876, %v4918
    %v4920 = vpop.f32.mrb[0].mxu0
    %v4921 = vadd.f32 %v4878, %v4920
    %v4922 = vpop.f32.mrb[0].mxu0
    %v4923 = vadd.f32 %v4880, %v4922
    %v4924 = vpop.f32.mrb[0].mxu0
    %v4925 = vadd.f32 %v4882, %v4924
    %4926 = vdwg.mxu0
    %4927 = vmatprep.subr.bf16.mxu0 %v4639
    %4928 = vmatpush1.bf16.msra.mxu0 %v4638
    %4929 = vmatprep.subr.bf16.mxu0 %v4641
    %4930 = vmatpush1.bf16.msra.mxu0 %v4640
    %4931 = vmatprep.subr.bf16.mxu0 %v4643
    %4932 = vmatpush1.bf16.msra.mxu0 %v4642
    %4933 = vmatprep.subr.bf16.mxu0 %v4645
    %4934 = vmatpush1.bf16.msra.mxu0 %v4644
    %4935 = vmatprep.subr.bf16.mxu0 %v4647
    %4936 = vmatpush1.bf16.msra.mxu0 %v4646
    %4937 = vmatprep.subr.bf16.mxu0 %v4649
    %4938 = vmatpush1.bf16.msra.mxu0 %v4648
    %4939 = vmatprep.subr.bf16.mxu0 %v4651
    %4940 = vmatpush1.bf16.msra.mxu0 %v4650
    %4941 = vmatprep.subr.bf16.mxu0 %v4653
    %4942 = vmatpush1.bf16.msra.mxu0 %v4652
    %4943 = vmatprep.subr.bf16.mxu0 %v4655
    %4944 = vmatpush1.bf16.msra.mxu0 %v4654
    %4945 = vmatprep.subr.bf16.mxu0 %v4657
    %4946 = vmatpush1.bf16.msra.mxu0 %v4656
    %4947 = vmatprep.subr.bf16.mxu0 %v4659
    %4948 = vmatpush1.bf16.msra.mxu0 %v4658
    %4949 = vmatprep.subr.bf16.mxu0 %v4661
    %4950 = vmatpush1.bf16.msra.mxu0 %v4660
    %4951 = vmatprep.subr.bf16.mxu0 %v4663
    %4952 = vmatpush1.bf16.msra.mxu0 %v4662
    %4953 = vmatprep.subr.bf16.mxu0 %v4665
    %4954 = vmatpush1.bf16.msra.mxu0 %v4664
    %4955 = vmatprep.subr.bf16.mxu0 %v4667
    %4956 = vmatpush1.bf16.msra.mxu0 %v4666
    %4957 = vmatprep.subr.bf16.mxu0 %v4669
    %4958 = vmatpush1.bf16.msra.mxu0 %v4668
    %4959 = vmatprep.mubr.bf16.mxu0 %v4017
    %4960 = vmatmul.mubr.bf16.gmra.mrb[0].mxu0 %v4016
    %v4961 = vpop.f32.mrb[0].mxu0
    %v4962 = vadd.f32 %v4919, %v4961
    %v4963 = vpop.f32.mrb[0].mxu0
    %v4964 = vadd.f32 %v4921, %v4963
    %v4965 = vpop.f32.mrb[0].mxu0
    %v4966 = vadd.f32 %v4923, %v4965
    %v4967 = vpop.f32.mrb[0].mxu0
    %v4968 = vadd.f32 %v4925, %v4967
    %4969 = vdwg.mxu0
    %v4970 = vld [vmem:[#allocation5] sm:$0xff]
    %v4971 = vld [vmem:[#allocation5 + $0x8] sm:$0xff]
    %v4972 = vmul.f32 %v4964, 0.5
    %v4973 = vmul.f32 %v4968, 0.5
    %v4974 = vmul.f32 %v4972, 1.442695
    %v4975 = vpow.pop %v4974
    %v4976 = vmul.f32 %v4973, 1.442695
    %v4977 = vpow.pop %v4976
    %v4978 = vmul.f32 %v4970, %v4975
    %v4979 = vmul.f32 %v4971, %v4977
    %v4980 = vadd.f32 %v4978, %v4962
    %v4981 = vadd.f32 %v4979, %v4966
    %v4982 = vpack.c.bf16 %v4981, %v4980
    %v4983 = vld [vmem:[#allocation13] sm:$0xff]
    %v4984 = vld [vmem:[#allocation13 + $0x8] sm:$0xff]
    %v4985 = vld [vmem:[#allocation13 + $0x10] sm:$0xff]
    %v4986 = vld [vmem:[#allocation13 + $0x18] sm:$0xff]
    %v4987 = vld [vmem:[#allocation13 + $0x20] sm:$0xff]
    %v4988 = vld [vmem:[#allocation13 + $0x28] sm:$0xff]
    %v4989 = vld [vmem:[#allocation13 + $0x30] sm:$0xff]
    %v4990 = vld [vmem:[#allocation13 + $0x38] sm:$0xff]
    %v4991 = vld [vmem:[#allocation13 + $0x40] sm:$0xff]
    %v4992 = vld [vmem:[#allocation13 + $0x48] sm:$0xff]
    %v4993 = vld [vmem:[#allocation13 + $0x50] sm:$0xff]
    %v4994 = vld [vmem:[#allocation13 + $0x58] sm:$0xff]
    %v4995 = vld [vmem:[#allocation13 + $0x60] sm:$0xff]
    %v4996 = vld [vmem:[#allocation13 + $0x68] sm:$0xff]
    %v4997 = vld [vmem:[#allocation13 + $0x70] sm:$0xff]
    %v4998 = vld [vmem:[#allocation13 + $0x78] sm:$0xff]
    %v4999 = vld [vmem:[#allocation14] sm:$0x3]
    %v5001 = vlaneseq
    %v5002 = vshrl.u32 %v5001, 7
    %v5003 = vsub.s32 0, %v5002
    %v5004 = vrot.slane %v4999, %v5003
    %v5005 = vlaneseq
    %v5006 = vshrl.u32 %v5005, 7
    %v5007 = vsub.s32 1, %v5006
    %v5008 = vrot.slane %v4999, %v5007
    %v5027 = vunpack.c.l.b16 %v4983
    %v5028 = vunpack.c.h.b16 %v4983
    %v5029 = vunpack.c.l.b16 %v4984
    %v5030 = vunpack.c.h.b16 %v4984
    %v5031 = vunpack.c.l.b16 %v4985
    %v5032 = vunpack.c.h.b16 %v4985
    %v5033 = vunpack.c.l.b16 %v4986
    %v5034 = vunpack.c.h.b16 %v4986
    %v5035 = vunpack.c.l.b16 %v4987
    %v5036 = vunpack.c.h.b16 %v4987
    %v5037 = vunpack.c.l.b16 %v4988
    %v5038 = vunpack.c.h.b16 %v4988
    %v5039 = vunpack.c.l.b16 %v4989
    %v5040 = vunpack.c.h.b16 %v4989
    %v5041 = vunpack.c.l.b16 %v4990
    %v5042 = vunpack.c.h.b16 %v4990
    %v5043 = vunpack.c.l.b16 %v4991
    %v5044 = vunpack.c.h.b16 %v4991
    %v5045 = vunpack.c.l.b16 %v4992
    %v5046 = vunpack.c.h.b16 %v4992
    %v5047 = vunpack.c.l.b16 %v4993
    %v5048 = vunpack.c.h.b16 %v4993
    %v5049 = vunpack.c.l.b16 %v4994
    %v5050 = vunpack.c.h.b16 %v4994
    %v5051 = vunpack.c.l.b16 %v4995
    %v5052 = vunpack.c.h.b16 %v4995
    %v5053 = vunpack.c.l.b16 %v4996
    %v5054 = vunpack.c.h.b16 %v4996
    %v5055 = vunpack.c.l.b16 %v4997
    %v5056 = vunpack.c.h.b16 %v4997
    %v5057 = vunpack.c.l.b16 %v4998
    %v5058 = vunpack.c.h.b16 %v4998
    %v5059 = vpack.c.b16 %v5029, %v5027
    %v5060 = vpack.c.b16 %v5030, %v5028
    %v5061 = vpack.c.b16 %v5033, %v5031
    %v5062 = vpack.c.b16 %v5034, %v5032
    %v5063 = vpack.c.b16 %v5037, %v5035
    %v5064 = vpack.c.b16 %v5038, %v5036
    %v5065 = vpack.c.b16 %v5041, %v5039
    %v5066 = vpack.c.b16 %v5042, %v5040
    %v5067 = vpack.c.b16 %v5045, %v5043
    %v5068 = vpack.c.b16 %v5046, %v5044
    %v5069 = vpack.c.b16 %v5049, %v5047
    %v5070 = vpack.c.b16 %v5050, %v5048
    %v5071 = vpack.c.b16 %v5053, %v5051
    %v5072 = vpack.c.b16 %v5054, %v5052
    %v5073 = vpack.c.b16 %v5057, %v5055
    %v5074 = vpack.c.b16 %v5058, %v5056
    %5091 = vmatprep.subr.bf16.mxu0 %v5060
    %5092 = vmatpush1.bf16.msra.mxu0 %v5059
    %5093 = vmatprep.subr.bf16.mxu0 %v5062
    %5094 = vmatpush1.bf16.msra.mxu0 %v5061
    %5095 = vmatprep.subr.bf16.mxu0 %v5064
    %5096 = vmatpush1.bf16.msra.mxu0 %v5063
    %5097 = vmatprep.subr.bf16.mxu0 %v5066
    %5098 = vmatpush1.bf16.msra.mxu0 %v5065
    %5099 = vmatprep.subr.bf16.mxu0 %v5068
    %5100 = vmatpush1.bf16.msra.mxu0 %v5067
    %5101 = vmatprep.subr.bf16.mxu0 %v5070
    %5102 = vmatpush1.bf16.msra.mxu0 %v5069
    %5103 = vmatprep.subr.bf16.mxu0 %v5072
    %5104 = vmatpush1.bf16.msra.mxu0 %v5071
    %5105 = vmatprep.subr.bf16.mxu0 %v5074
    %5106 = vmatpush1.bf16.msra.mxu0 %v5073
    %5107 = vmatprep.subr.bf16.mxu0 0
    %5108 = vmatpush1.bf16.msra.mxu0 0
    %5109 = vmatprep.subr.bf16.mxu0 0
    %5110 = vmatpush1.bf16.msra.mxu0 0
    %5111 = vmatprep.subr.bf16.mxu0 0
    %5112 = vmatpush1.bf16.msra.mxu0 0
    %5113 = vmatprep.subr.bf16.mxu0 0
    %5114 = vmatpush1.bf16.msra.mxu0 0
    %5115 = vmatprep.subr.bf16.mxu0 0
    %5116 = vmatpush1.bf16.msra.mxu0 0
    %5117 = vmatprep.subr.bf16.mxu0 0
    %5118 = vmatpush1.bf16.msra.mxu0 0
    %5119 = vmatprep.subr.bf16.mxu0 0
    %5120 = vmatpush1.bf16.msra.mxu0 0
    %5121 = vmatprep.subr.bf16.mxu0 0
    %5122 = vmatpush1.bf16.msra.mxu0 0
    %5123 = vmatprep.mubr.bf16.mxu0 0
    %5124 = vmatmul.mubr.bf16.gmra.mrb[0].mxu0 %v4982
    %v5125 = vpop.f32.mrb[0].mxu0
    %v5126 = vadd.f32 %v5004, %v5125
    %v5127 = vpop.f32.mrb[0].mxu0
    %v5128 = vadd.f32 %v5008, %v5127
    %v5129 = vpop.f32.mrb[0].mxu0
    %v5130 = vadd.f32 %v5004, %v5129
    %v5131 = vpop.f32.mrb[0].mxu0
    %v5132 = vadd.f32 %v5008, %v5131
    %5133 = vdwg.mxu0
    %v5134 = vmax.f32 %v5126, 0.0
    %v5135 = vmax.f32 %v5128, 0.0
    %v5136 = vmax.f32 %v5130, 0.0
    %v5137 = vmax.f32 %v5132, 0.0
    %v5138 = vpack.c.bf16 %v5136, %v5134
    %v5139 = vpack.c.bf16 %v5137, %v5135
    %v5140 = vld [vmem:[#allocation16] sm:$0xf]
    %v5141 = vld [vmem:[#allocation16 + $0x4] sm:$0xf]
    %v5142 = vld [vmem:[#allocation16 + $0x8] sm:$0xf]
    %v5143 = vld [vmem:[#allocation16 + $0xc] sm:$0xf]
    %v5144 = vld [vmem:[#allocation16 + $0x10] sm:$0xf]
    %v5145 = vld [vmem:[#allocation16 + $0x14] sm:$0xf]
    %v5146 = vld [vmem:[#allocation16 + $0x18] sm:$0xf]
    %v5147 = vld [vmem:[#allocation16 + $0x1c] sm:$0xf]
    %v5148 = vld [vmem:[#allocation16 + $0x20] sm:$0xf]
    %v5149 = vld [vmem:[#allocation16 + $0x24] sm:$0xf]
    %v5150 = vld [vmem:[#allocation16 + $0x28] sm:$0xf]
    %v5151 = vld [vmem:[#allocation16 + $0x2c] sm:$0xf]
    %v5152 = vld [vmem:[#allocation16 + $0x30] sm:$0xf]
    %v5153 = vld [vmem:[#allocation16 + $0x34] sm:$0xf]
    %v5154 = vld [vmem:[#allocation16 + $0x38] sm:$0xf]
    %v5155 = vld [vmem:[#allocation16 + $0x3c] sm:$0xf]
    %v5156 = vld [vmem:[#allocation16 + $0x40] sm:$0xf]
    %v5157 = vld [vmem:[#allocation16 + $0x44] sm:$0xf]
    %v5158 = vld [vmem:[#allocation16 + $0x48] sm:$0xf]
    %v5159 = vld [vmem:[#allocation16 + $0x4c] sm:$0xf]
    %v5160 = vld [vmem:[#allocation16 + $0x50] sm:$0xf]
    %v5161 = vld [vmem:[#allocation16 + $0x54] sm:$0xf]
    %v5162 = vld [vmem:[#allocation16 + $0x58] sm:$0xf]
    %v5163 = vld [vmem:[#allocation16 + $0x5c] sm:$0xf]
    %v5164 = vld [vmem:[#allocation16 + $0x60] sm:$0xf]
    %v5165 = vld [vmem:[#allocation16 + $0x64] sm:$0xf]
    %v5166 = vld [vmem:[#allocation16 + $0x68] sm:$0xf]
    %v5167 = vld [vmem:[#allocation16 + $0x6c] sm:$0xf]
    %v5168 = vld [vmem:[#allocation16 + $0x70] sm:$0xf]
    %v5169 = vld [vmem:[#allocation16 + $0x74] sm:$0xf]
    %v5170 = vld [vmem:[#allocation16 + $0x78] sm:$0xf]
    %v5171 = vld [vmem:[#allocation16 + $0x7c] sm:$0xf]
    %v5172 = vld [vmem:[#allocation17] sm:$0x1]
    %v5174 = vlaneseq
    %v5175 = vshrl.u32 %v5174, 7
    %v5176 = vsub.s32 0, %v5175
    %v5177 = vrot.slane %v5172, %v5176
    %v5211 = vunpack.c.l.b16 %v5140
    %v5212 = vunpack.c.l.b16 %v5141
    %v5213 = vunpack.c.l.b16 %v5142
    %v5214 = vunpack.c.l.b16 %v5143
    %v5215 = vunpack.c.l.b16 %v5144
    %v5216 = vunpack.c.l.b16 %v5145
    %v5217 = vunpack.c.l.b16 %v5146
    %v5218 = vunpack.c.l.b16 %v5147
    %v5219 = vunpack.c.l.b16 %v5148
    %v5220 = vunpack.c.l.b16 %v5149
    %v5221 = vunpack.c.l.b16 %v5150
    %v5222 = vunpack.c.l.b16 %v5151
    %v5223 = vunpack.c.l.b16 %v5152
    %v5224 = vunpack.c.l.b16 %v5153
    %v5225 = vunpack.c.l.b16 %v5154
    %v5226 = vunpack.c.l.b16 %v5155
    %v5227 = vunpack.c.l.b16 %v5156
    %v5228 = vunpack.c.l.b16 %v5157
    %v5229 = vunpack.c.l.b16 %v5158
    %v5230 = vunpack.c.l.b16 %v5159
    %v5231 = vunpack.c.l.b16 %v5160
    %v5232 = vunpack.c.l.b16 %v5161
    %v5233 = vunpack.c.l.b16 %v5162
    %v5234 = vunpack.c.l.b16 %v5163
    %v5235 = vunpack.c.l.b16 %v5164
    %v5236 = vunpack.c.l.b16 %v5165
    %v5237 = vunpack.c.l.b16 %v5166
    %v5238 = vunpack.c.l.b16 %v5167
    %v5239 = vunpack.c.l.b16 %v5168
    %v5240 = vunpack.c.l.b16 %v5169
    %v5241 = vunpack.c.l.b16 %v5170
    %v5242 = vunpack.c.l.b16 %v5171
    %v5243 = vpack.c.b16 %v5212, %v5211
    %v5244 = vpack.c.b16 %v5214, %v5213
    %v5245 = vpack.c.b16 %v5216, %v5215
    %v5246 = vpack.c.b16 %v5218, %v5217
    %v5247 = vpack.c.b16 %v5220, %v5219
    %v5248 = vpack.c.b16 %v5222, %v5221
    %v5249 = vpack.c.b16 %v5224, %v5223
    %v5250 = vpack.c.b16 %v5226, %v5225
    %v5251 = vpack.c.b16 %v5228, %v5227
    %v5252 = vpack.c.b16 %v5230, %v5229
    %v5253 = vpack.c.b16 %v5232, %v5231
    %v5254 = vpack.c.b16 %v5234, %v5233
    %v5255 = vpack.c.b16 %v5236, %v5235
    %v5256 = vpack.c.b16 %v5238, %v5237
    %v5257 = vpack.c.b16 %v5240, %v5239
    %v5258 = vpack.c.b16 %v5242, %v5241
    %5275 = vmatprep.subr.bf16.mxu0 0
    %5276 = vmatpush1.bf16.msra.mxu0 %v5243
    %5277 = vmatprep.subr.bf16.mxu0 0
    %5278 = vmatpush1.bf16.msra.mxu0 %v5244
    %5279 = vmatprep.subr.bf16.mxu0 0
    %5280 = vmatpush1.bf16.msra.mxu0 %v5245
    %5281 = vmatprep.subr.bf16.mxu0 0
    %5282 = vmatpush1.bf16.msra.mxu0 %v5246
    %5283 = vmatprep.subr.bf16.mxu0 0
    %5284 = vmatpush1.bf16.msra.mxu0 %v5247
    %5285 = vmatprep.subr.bf16.mxu0 0
    %5286 = vmatpush1.bf16.msra.mxu0 %v5248
    %5287 = vmatprep.subr.bf16.mxu0 0
    %5288 = vmatpush1.bf16.msra.mxu0 %v5249
    %5289 = vmatprep.subr.bf16.mxu0 0
    %5290 = vmatpush1.bf16.msra.mxu0 %v5250
    %5291 = vmatprep.subr.bf16.mxu0 0
    %5292 = vmatpush1.bf16.msra.mxu0 %v5251
    %5293 = vmatprep.subr.bf16.mxu0 0
    %5294 = vmatpush1.bf16.msra.mxu0 %v5252
    %5295 = vmatprep.subr.bf16.mxu0 0
    %5296 = vmatpush1.bf16.msra.mxu0 %v5253
    %5297 = vmatprep.subr.bf16.mxu0 0
    %5298 = vmatpush1.bf16.msra.mxu0 %v5254
    %5299 = vmatprep.subr.bf16.mxu0 0
    %5300 = vmatpush1.bf16.msra.mxu0 %v5255
    %5301 = vmatprep.subr.bf16.mxu0 0
    %5302 = vmatpush1.bf16.msra.mxu0 %v5256
    %5303 = vmatprep.subr.bf16.mxu0 0
    %5304 = vmatpush1.bf16.msra.mxu0 %v5257
    %5305 = vmatprep.subr.bf16.mxu0 0
    %5306 = vmatpush1.bf16.msra.mxu0 %v5258
    %5307 = vmatprep.mubr.bf16.mxu0 %v5139
    %5308 = vmatmul.mubr.bf16.gmra.mrb[0].mxu0 %v5138
    %v5309 = vpop.f32.mrb[0].mxu0
    %v5310 = vadd.f32 %v5177, %v5309
    %v5311 = vpop.f32.mrb[0].mxu0
    %v5312 = vpop.f32.mrb[0].mxu0
    %v5313 = vadd.f32 %v5177, %v5312
    %v5314 = vpop.f32.mrb[0].mxu0
    %5315 = vdwg.mxu0
    %5316 = vst [vmem:[#allocation19] sm:$0xff] %v5310
    %5317 = vst [vmem:[#allocation19 + $0x8] sm:$0xff] %v5313
    %5318 = vst [vmem:[#allocation20] sm:$0xff] %v4962
    %5319 = vst [vmem:[#allocation20 + $0x8] sm:$0xff] %v4964
    %5320 = vst [vmem:[#allocation20 + $0x10] sm:$0xff] %v4966
    %5321 = vst [vmem:[#allocation20 + $0x18] sm:$0xff] %v4968
    // Predicated region
    $region82: #{tpu_custom_call.1} parent=1 // pred_check
      _
    $region83: #{tpu_custom_call.1} parent=1 // pred_check_branch
      %5323 = sbr.rel (0) target = $region85
    $region84: #{tpu_custom_call.1} parent=1 // pred_region
      %s5325 = ssub.s32 256, 256
      %5326 = vsyncadd [#allocation4], %s5325
      %s5327 = sshll.u32 [#allocation19], 4
      %s5328 = int_to_ptr.vmem [resolvable:$true] %s5327
      %5333 = dma.vmem_to_hbm [thread:$0]  %s5328, 256, %s10, [#allocation4], 128, 128, 8
    $region85: #{tpu_custom_call.1} parent=1 // pred_fallthru
      _
    // Predicated region
    $region86: #{tpu_custom_call.1} parent=1 // pred_check
      _
    $region87: #{tpu_custom_call.1} parent=1 // pred_check_branch
      %5335 = sbr.rel (0) target = $region89
    $region88: #{tpu_custom_call.1} parent=1 // pred_region
      %s5337 = ssub.s32 512, 512
      %5338 = vsyncadd [#allocation21], %s5337
      %s5339 = sshll.u32 [#allocation20], 4
      %s5340 = int_to_ptr.vmem [resolvable:$true] %s5339
      %5345 = dma.vmem_to_hbm [thread:$0]  %s5340, 512, %s11, [#allocation21], 256, 256, 16
    $region89: #{tpu_custom_call.1} parent=1 // pred_fallthru
      _
    // Predicated region
    $region90: #{tpu_custom_call.1} parent=1 // pred_check
      _
    $region91: #{tpu_custom_call.1} parent=1 // pred_check_branch
      %5347 = sbr.rel (0) target = $region93
    $region92: #{tpu_custom_call.1} parent=1 // pred_region
      %5348 = dma.done [#allocation4], 256
    $region93: #{tpu_custom_call.1} parent=1 // pred_fallthru
      _
    // Predicated region
    $region94: #{tpu_custom_call.1} parent=1 // pred_check
      _
    $region95: #{tpu_custom_call.1} parent=1 // pred_check_branch
      %5350 = sbr.rel (0) target = $region97
    $region96: #{tpu_custom_call.1} parent=1 // pred_region
      %5351 = dma.done [#allocation21], 512
    $region97: #{tpu_custom_call.1} parent=1 // pred_fallthru
      _
    %5352 = vsyncpa [#allocation3], 1
    %5353 = vsyncpa [#allocation6], 1
    %5354 = vsyncpa [#allocation9], 1
    %5355 = vsyncpa [#allocation12], 1
    %5356 = vsyncpa [#allocation15], 1
    %5357 = vsyncpa [#allocation18], 1
    %5358 = vsyncpa [#allocation4], 1
    %5359 = vsyncpa [#allocation21], 1

</llo_original>
